<compile_context>
chip_gen: v5e
topology: v5e:2x2
jax: 0.10.0
libtpu: 0.0.40
codegen_flags: <defaults>
</compile_context>

<pallas_src>
import functools
import math

import jax
import jax.numpy as jnp
from jax import lax
from jax.experimental import pallas as pl
from jax.experimental.pallas import tpu as pltpu

LN_EPS = 1e-5  # torch.nn.LayerNorm default


# ----------------------------- in-kernel helpers -----------------------------

def _layernorm(x, w, b):
    mu = jnp.mean(x, axis=-1, keepdims=True)
    var = jnp.mean(jnp.square(x - mu), axis=-1, keepdims=True)
    return (x - mu) * lax.rsqrt(var + LN_EPS) * w + b


def _gelu(x):
    # exact GELU (matches torch.nn.GELU default, erf-based)
    return 0.5 * x * (1.0 + lax.erf(x * 0.7071067811865476))


# ------------------------------- fused kernel ---------------------------------

def decoder_kernel(x_ref, a_ref, pe_ref, ee_ref, eo_ref, mask_ref,
                   actw_ref, actb_ref,
                   ln1w_ref, ln1b_ref, qkvw_ref, qkvb_ref,
                   projw_ref, projb_ref, ln2w_ref, ln2b_ref,
                   fc1w_ref, fc1b_ref, fc2w_ref, fc2b_ref,
                   normw_ref, normb_ref,
                   o_ref, seq_ref, ctx_ref, *, num_heads):
    """One transformer layer for a tile of Bt batch rows, residual in VMEM."""
    Bt, T, D = x_ref.shape
    S = 2 * T
    hd = D // num_heads
    scale = 1.0 / math.sqrt(hd)
    d = pl.program_id(1)
    bf16 = jnp.bfloat16

    # ---- d == 0: action embedding + positional embedding + interleave ----
    @pl.when(d == 0)
    def _():
        pe = pe_ref[...]                                         # [T, D] f32
        ee = ee_ref[...]                                         # [S, T] f32
        eo = eo_ref[...]                                         # [S, T] f32
        for b in range(Bt):
            x_pe = x_ref[b] + pe                                 # [T, D]
            a_emb = jnp.dot(a_ref[b].astype(bf16), actw_ref[...],
                            preferred_element_type=jnp.float32) + actb_ref[...]
            a_pe = a_emb + pe                                    # [T, D]
            # (x_0, a_0, x_1, a_1, ...) via exact 0/1 selector matmuls; f32,
            # runs once per batch tile (no sublane shuffles).
            seq_ref[b * S:(b + 1) * S, :] = (
                jnp.dot(ee, x_pe, preferred_element_type=jnp.float32)
                + jnp.dot(eo, a_pe, preferred_element_type=jnp.float32))

    seq = seq_ref[...]                                           # [Bt*S, D] f32

    # ---- causal multi-head self-attention ----
    h = _layernorm(seq, ln1w_ref[0], ln1b_ref[0])
    qkv = (jnp.dot(h.astype(bf16), qkvw_ref[0],
                   preferred_element_type=jnp.float32) + qkvb_ref[0])  # [M, 3D]
    mask = mask_ref[...]                                         # [S, S] f32

    # Per-row / per-head score+softmax (small static loops; the big matmuls
    # above and below carry the MXU work).  Head contexts are written into
    # their column slices of ctx_ref so a single projection matmul follows.
    # TODO(synk): for long sequences tile this flash-style over KV blocks and
    #             skip fully-masked tiles instead of a dense [S, S] mask.
    for b in range(Bt):
        r0 = b * S
        for hh in range(num_heads):
            lo = hh * hd
            qh = (qkv[r0:r0 + S, lo:lo + hd] * scale).astype(bf16)      # [S,hd]
            kh = qkv[r0:r0 + S, D + lo:D + lo + hd].astype(bf16)        # [S,hd]
            vh = qkv[r0:r0 + S, 2 * D + lo:2 * D + lo + hd].astype(bf16)
            s = lax.dot_general(qh, kh, (((1,), (1,)), ((), ())),
                                preferred_element_type=jnp.float32)     # [S,S]
            s = s + mask                                                # f32
            m = jnp.max(s, axis=-1, keepdims=True)
            p = jnp.exp(s - m)
            p = p * pl.reciprocal(jnp.sum(p, axis=-1, keepdims=True),
                                  approx=True)
            ctx_ref[r0:r0 + S, lo:lo + hd] = jnp.dot(
                p.astype(bf16), vh, preferred_element_type=jnp.float32)

    attn = (jnp.dot(ctx_ref[...].astype(bf16), projw_ref[0],
                    preferred_element_type=jnp.float32) + projb_ref[0])
    seq = seq + attn

    # ---- MLP ----
    h2 = _layernorm(seq, ln2w_ref[0], ln2b_ref[0])
    h2 = (jnp.dot(h2.astype(bf16), fc1w_ref[0],
                  preferred_element_type=jnp.float32) + fc1b_ref[0])
    h2 = _gelu(h2)
    h2 = (jnp.dot(h2.astype(bf16), fc2w_ref[0],
                  preferred_element_type=jnp.float32) + fc2b_ref[0])
    seq = seq + h2
    seq_ref[...] = seq                                           # carry to d+1

    # ---- final LayerNorm + output (only on the last layer) ----
    @pl.when(d == pl.num_programs(1) - 1)
    def _():
        out = _layernorm(seq, normw_ref[...], normb_ref[...])
        for b in range(Bt):
            o_ref[b] = out[b * S:(b + 1) * S, :]


# ------------------------------ pallas wrapper --------------------------------

def masked_state_transition_decoder(x, a, params, num_heads, *, batch_tile=None):
    """x: [B, T, D] state embeddings, a: [B, T, A] raw actions -> [B, 2T, D]."""
    B, T, D = x.shape
    A = a.shape[-1]
    depth = params['qkv_w'].shape[0]
    H = params['fc1_w'].shape[-1]
    S = 2 * T
    assert D % num_heads == 0

    if batch_tile is None:
        # keep >= 2 batch-tile grid steps so the "parallel" axis can shard
        # across both v7x TensorCores
        batch_tile = B // 2 if (B % 2 == 0 and B >= 2) else B
    Bt = batch_tile
    assert B % Bt == 0

    # ---- grid-invariant constants, computed once (hoisted out of the kernel) --
    pe = sinusoidal_pos_embed(T, D)
    rows = jnp.arange(S, dtype=jnp.int32)[:, None]
    colsT = jnp.arange(T, dtype=jnp.int32)[None, :]
    e_even = (rows == 2 * colsT).astype(jnp.float32)             # [S, T]
    e_odd = (rows == 2 * colsT + 1).astype(jnp.float32)          # [S, T]
    colsS = jnp.arange(S, dtype=jnp.int32)[None, :]
    mask = jnp.where(colsS <= rows, 0.0, -1e30).astype(jnp.float32)  # [S, S]

    # matmul weights -> bf16 (f32 accumulation in-kernel); biases/LN stay f32
    bf = lambda v: v.astype(jnp.bfloat16)

    def const_spec(shape):   # grid-invariant full-array block (loaded once)
        nd = len(shape)
        return pl.BlockSpec(shape, lambda b, d, _n=nd: (0,) * _n)

    def layer_spec(shape):   # per-layer block along the leading depth axis
        nd = len(shape) + 1
        return pl.BlockSpec((1,) + shape,
                            lambda b, d, _n=nd: (d,) + (0,) * (_n - 1))

    kernel = functools.partial(decoder_kernel, num_heads=num_heads)
    return pl.pallas_call(
        kernel,
        out_shape=jax.ShapeDtypeStruct((B, S, D), jnp.float32),
        grid=(B // Bt, depth),
        in_specs=[
            pl.BlockSpec((Bt, T, D), lambda b, d: (b, 0, 0)),    # x
            pl.BlockSpec((Bt, T, A), lambda b, d: (b, 0, 0)),    # a
            const_spec((T, D)),                                  # positional emb
            const_spec((S, T)), const_spec((S, T)),              # interleave sel
            const_spec((S, S)),                                  # causal mask
            const_spec((A, D)), const_spec((1, D)),              # act_embed w, b
            layer_spec((1, D)), layer_spec((1, D)),              # ln1 w, b
            layer_spec((D, 3 * D)), layer_spec((1, 3 * D)),      # qkv w, b
            layer_spec((D, D)), layer_spec((1, D)),              # proj w, b
            layer_spec((1, D)), layer_spec((1, D)),              # ln2 w, b
            layer_spec((D, H)), layer_spec((1, H)),              # fc1 w, b
            layer_spec((H, D)), layer_spec((1, D)),              # fc2 w, b
            const_spec((1, D)), const_spec((1, D)),              # final norm w, b
        ],
        out_specs=pl.BlockSpec((Bt, S, D), lambda b, d: (b, 0, 0)),
        scratch_shapes=[
            pltpu.VMEM((Bt * S, D), jnp.float32),   # residual stream (persists over depth)
            pltpu.VMEM((Bt * S, D), jnp.float32),   # per-head attention context
        ],
        compiler_params=pltpu.CompilerParams(
            dimension_semantics=("parallel", "arbitrary")),
    )(x, a, pe, e_even, e_odd, mask,
      bf(params['act_w']), params['act_b'],
      params['ln1_w'], params['ln1_b'],
      bf(params['qkv_w']), params['qkv_b'],
      params['proj_w'], params['proj_b'],
      params['ln2_w'], params['ln2_b'],
      bf(params['fc1_w']), params['fc1_b'],
      bf(params['fc2_w']), params['fc2_b'],
      params['norm_w'], params['norm_b'])


# ------------------------------- glue / params --------------------------------

def sinusoidal_pos_embed(T, D):
    pos = jnp.arange(T, dtype=jnp.float32)[:, None]
    i = jnp.arange(0, D, 2, dtype=jnp.float32)[None, :]
    div = jnp.exp(-math.log(10000.0) * i / D)
    ang = pos * div
    pe = jnp.zeros((T, D), jnp.float32)
    pe = pe.at[:, 0::2].set(jnp.sin(ang))
    pe = pe.at[:, 1::2].set(jnp.cos(ang))
    return pe


def xavier_uniform(key, fan_in, fan_out):
    bound = math.sqrt(6.0 / (fan_in + fan_out))
    return jax.random.uniform(key, (fan_in, fan_out), jnp.float32, -bound, bound)


def init_params(key, embed_dim, action_dim, depth, mlp_ratio):
    D = embed_dim
    H = int(D * mlp_ratio)
    keys = jax.random.split(key, 1 + 4 * depth)
    qkv_w = jnp.stack([xavier_uniform(keys[1 + 4 * d + 0], D, 3 * D)
                       for d in range(depth)])
    proj_w = jnp.stack([xavier_uniform(keys[1 + 4 * d + 1], D, D)
                        for d in range(depth)])
    fc1_w = jnp.stack([xavier_uniform(keys[1 + 4 * d + 2], D, H)
                       for d in range(depth)])
    fc2_w = jnp.stack([xavier_uniform(keys[1 + 4 * d + 3], H, D)
                       for d in range(depth)])
    return {
        'act_w': xavier_uniform(keys[0], action_dim, D),   # stored [in, out]
        'act_b': jnp.zeros((1, D), jnp.float32),
        'ln1_w': jnp.ones((depth, 1, D), jnp.float32),
        'ln1_b': jnp.zeros((depth, 1, D), jnp.float32),
        'qkv_w': qkv_w,
        'qkv_b': jnp.zeros((depth, 1, 3 * D), jnp.float32),
        'proj_w': proj_w,
        'proj_b': jnp.zeros((depth, 1, D), jnp.float32),
        'ln2_w': jnp.ones((depth, 1, D), jnp.float32),
        'ln2_b': jnp.zeros((depth, 1, D), jnp.float32),
        'fc1_w': fc1_w,
        'fc1_b': jnp.zeros((depth, 1, H), jnp.float32),
        'fc2_w': fc2_w,
        'fc2_b': jnp.zeros((depth, 1, D), jnp.float32),
        'norm_w': jnp.ones((1, D), jnp.float32),
        'norm_b': jnp.zeros((1, D), jnp.float32),
    }


# ------------------------- pure-JAX reference (check) -------------------------

def reference_forward(x, a, params, num_heads, matmul_dtype=jnp.float32):
    """matmul_dtype=jnp.bfloat16 mirrors the kernel's cast points exactly."""
    B, T, D = x.shape
    depth = params['qkv_w'].shape[0]
    hd = D // num_heads
    scale = 1.0 / math.sqrt(hd)
    S = 2 * T
    md = matmul_dtype
    pe = sinusoidal_pos_embed(T, D)[None]

    def mm(u, w):
        return jnp.dot(u.astype(md), w.astype(md),
                       preferred_element_type=jnp.float32)

    def ln(v, w, b):
        mu = v.mean(-1, keepdims=True)
        var = ((v - mu) ** 2).mean(-1, keepdims=True)
        return (v - mu) / jnp.sqrt(var + LN_EPS) * w + b

    a_emb = mm(a, params['act_w']) + params['act_b']
    seq = jnp.stack([x + pe, a_emb + pe], axis=2).reshape(B, S, D)
    causal = jnp.tril(jnp.ones((S, S), bool))
    for d in range(depth):
        h = ln(seq, params['ln1_w'][d], params['ln1_b'][d])
        qkv = mm(h, params['qkv_w'][d]) + params['qkv_b'][d]
        q, k, v = jnp.split(qkv, 3, axis=-1)
        q = q.reshape(B, S, num_heads, hd).transpose(0, 2, 1, 3)
        k = k.reshape(B, S, num_heads, hd).transpose(0, 2, 1, 3)
        v = v.reshape(B, S, num_heads, hd).transpose(0, 2, 1, 3)
        s = jnp.einsum('bhqd,bhkd->bhqk', (q * scale).astype(md), k.astype(md),
                       preferred_element_type=jnp.float32)
        s = jnp.where(causal, s, -jnp.inf)
        p = jax.nn.softmax(s, axis=-1)
        o = jnp.einsum('bhqk,bhkd->bhqd', p.astype(md), v.astype(md),
                       preferred_element_type=jnp.float32)
        o = o.transpose(0, 2, 1, 3).reshape(B, S, D)
        seq = seq + mm(o, params['proj_w'][d]) + params['proj_b'][d]
        h2 = ln(seq, params['ln2_w'][d], params['ln2_b'][d])
        h2 = mm(h2, params['fc1_w'][d]) + params['fc1_b'][d]
        h2 = 0.5 * h2 * (1.0 + jax.scipy.special.erf(h2 * 0.7071067811865476))
        h2 = mm(h2, params['fc2_w'][d]) + params['fc2_b'][d]
        seq = seq + h2
    return ln(seq, params['norm_w'], params['norm_b'])


# ----------------------------------- main -------------------------------------

if __name__ == "__main__":
    B, T, A, D = 4, 8, 8, 32          # batch, timesteps, action_dim, embed_dim
    depth, num_heads, mlp_ratio = 2, 4, 4.0

    key = jax.random.PRNGKey(0)
    kx, ka, kp = jax.random.split(key, 3)
    x = jax.random.normal(kx, (B, T, D), jnp.float32)
    a = jax.random.normal(ka, (B, T, A), jnp.float32)
    params = init_params(kp, D, A, depth, mlp_ratio)

    out = masked_state_transition_decoder(x, a, params, num_heads, batch_tile=2)
    out = jax.block_until_ready(out)

    assert out.shape == (B, 2 * T, D), out.shape
    assert bool(jnp.all(jnp.isfinite(out)))

    # Tight check vs a reference that mirrors the kernel's bf16 matmul casts.
    ref_bf16 = jax.block_until_ready(
        reference_forward(x, a, params, num_heads, matmul_dtype=jnp.bfloat16))
    err_bf16 = float(jnp.max(jnp.abs(out - ref_bf16)))
    assert err_bf16 < 3e-2, f"mismatch vs bf16-matmul reference: {err_bf16}"

    # Loose sanity check vs the full-f32 module semantics.
    ref_f32 = jax.block_until_ready(
        reference_forward(x, a, params, num_heads, matmul_dtype=jnp.float32))
    err_f32 = float(jnp.max(jnp.abs(out - ref_f32)))
    assert err_f32 < 1.5e-1, f"mismatch vs f32 reference: {err_f32}"

    print("KERNEL_OK")
</pallas_src>

<mosaic_0001>
module attributes {stable_mosaic.version = 11 : i64} {
  func.func @decoder_kernel(%arg0: i32, %arg1: i32, %arg2: memref<2x8x32xf32, #tpu.memory_space<vmem>>, %arg3: memref<2x8x8xf32, #tpu.memory_space<vmem>>, %arg4: memref<8x32xf32, #tpu.memory_space<vmem>>, %arg5: memref<16x8xf32, #tpu.memory_space<vmem>>, %arg6: memref<16x8xf32, #tpu.memory_space<vmem>>, %arg7: memref<16x16xf32, #tpu.memory_space<vmem>>, %arg8: memref<8x32xbf16, #tpu.memory_space<vmem>>, %arg9: memref<1x32xf32, #tpu.memory_space<vmem>>, %arg10: memref<1x1x32xf32, #tpu.memory_space<vmem>>, %arg11: memref<1x1x32xf32, #tpu.memory_space<vmem>>, %arg12: memref<1x32x96xbf16, #tpu.memory_space<vmem>>, %arg13: memref<1x1x96xf32, #tpu.memory_space<vmem>>, %arg14: memref<1x32x32xf32, #tpu.memory_space<vmem>>, %arg15: memref<1x1x32xf32, #tpu.memory_space<vmem>>, %arg16: memref<1x1x32xf32, #tpu.memory_space<vmem>>, %arg17: memref<1x1x32xf32, #tpu.memory_space<vmem>>, %arg18: memref<1x32x128xbf16, #tpu.memory_space<vmem>>, %arg19: memref<1x1x128xf32, #tpu.memory_space<vmem>>, %arg20: memref<1x128x32xbf16, #tpu.memory_space<vmem>>, %arg21: memref<1x1x32xf32, #tpu.memory_space<vmem>>, %arg22: memref<1x32xf32, #tpu.memory_space<vmem>>, %arg23: memref<1x32xf32, #tpu.memory_space<vmem>>, %arg24: memref<2x16x32xf32, #tpu.memory_space<vmem>>, %arg25: memref<32x32xf32, #tpu.memory_space<vmem>>, %arg26: memref<32x32xf32, #tpu.memory_space<vmem>>) attributes {dimension_semantics = [#tpu.dimension_semantics<parallel>, #tpu.dimension_semantics<arbitrary>], iteration_bounds = array<i64: 2, 2>, scalar_prefetch = 0 : i64, scratch_operands = 2 : i64, tpu.core_type = #tpu.core_type<tc>, window_params = [{transform_indices = @transform_0, window_bounds = array<i64: 2, 8, 32>}, {transform_indices = @transform_1, window_bounds = array<i64: 2, 8, 8>}, {pipeline_mode = #tpu.pipeline_mode<synchronous>, transform_indices = @transform_2, window_bounds = array<i64: 8, 32>}, {pipeline_mode = #tpu.pipeline_mode<synchronous>, transform_indices = @transform_3, window_bounds = array<i64: 16, 8>}, {pipeline_mode = #tpu.pipeline_mode<synchronous>, transform_indices = @transform_4, window_bounds = array<i64: 16, 8>}, {pipeline_mode = #tpu.pipeline_mode<synchronous>, transform_indices = @transform_5, window_bounds = array<i64: 16, 16>}, {pipeline_mode = #tpu.pipeline_mode<synchronous>, transform_indices = @transform_6, window_bounds = array<i64: 8, 32>}, {pipeline_mode = #tpu.pipeline_mode<synchronous>, transform_indices = @transform_7, window_bounds = array<i64: 1, 32>}, {transform_indices = @transform_8, window_bounds = array<i64: 1, 1, 32>}, {transform_indices = @transform_9, window_bounds = array<i64: 1, 1, 32>}, {transform_indices = @transform_10, window_bounds = array<i64: 1, 32, 96>}, {transform_indices = @transform_11, window_bounds = array<i64: 1, 1, 96>}, {transform_indices = @transform_12, window_bounds = array<i64: 1, 32, 32>}, {transform_indices = @transform_13, window_bounds = array<i64: 1, 1, 32>}, {transform_indices = @transform_14, window_bounds = array<i64: 1, 1, 32>}, {transform_indices = @transform_15, window_bounds = array<i64: 1, 1, 32>}, {transform_indices = @transform_16, window_bounds = array<i64: 1, 32, 128>}, {transform_indices = @transform_17, window_bounds = array<i64: 1, 1, 128>}, {transform_indices = @transform_18, window_bounds = array<i64: 1, 128, 32>}, {transform_indices = @transform_19, window_bounds = array<i64: 1, 1, 32>}, {pipeline_mode = #tpu.pipeline_mode<synchronous>, transform_indices = @transform_20, window_bounds = array<i64: 1, 32>}, {pipeline_mode = #tpu.pipeline_mode<synchronous>, transform_indices = @transform_21, window_bounds = array<i64: 1, 32>}, {transform_indices = @transform_22, window_bounds = array<i64: 2, 16, 32>}]} {
    %c0_i32 = arith.constant 0 : i32
    %0 = arith.cmpi eq, %arg1, %c0_i32 : i32
    %1 = arith.extui %0 : i1 to i32
    %c0_i32_0 = arith.constant 0 : i32
    %2 = arith.cmpi ne, %1, %c0_i32_0 : i32
    scf.if %2 {
      %c0_114 = arith.constant 0 : index
      %c0_115 = arith.constant 0 : index
      %288 = vector.load %arg4[%c0_114, %c0_115] : memref<8x32xf32, #tpu.memory_space<vmem>>, vector<8x32xf32>
      %c0_116 = arith.constant 0 : index
      %c0_117 = arith.constant 0 : index
      %289 = vector.load %arg5[%c0_116, %c0_117] : memref<16x8xf32, #tpu.memory_space<vmem>>, vector<16x8xf32>
      %c0_118 = arith.constant 0 : index
      %c0_119 = arith.constant 0 : index
      %290 = vector.load %arg6[%c0_118, %c0_119] : memref<16x8xf32, #tpu.memory_space<vmem>>, vector<16x8xf32>
      %c0_120 = arith.constant 0 : index
      %c0_121 = arith.constant 0 : index
      %c0_122 = arith.constant 0 : index
      %291 = vector.load %arg2[%c0_120, %c0_121, %c0_122] : memref<2x8x32xf32, #tpu.memory_space<vmem>>, vector<1x8x32xf32>
      %292 = vector.shape_cast %291 : vector<1x8x32xf32> to vector<8x32xf32>
      %293 = arith.addf %292, %288 : vector<8x32xf32>
      %c0_123 = arith.constant 0 : index
      %c0_124 = arith.constant 0 : index
      %c0_125 = arith.constant 0 : index
      %294 = vector.load %arg3[%c0_123, %c0_124, %c0_125] : memref<2x8x8xf32, #tpu.memory_space<vmem>>, vector<1x8x8xf32>
      %295 = vector.shape_cast %294 : vector<1x8x8xf32> to vector<8x8xf32>
      %296 = arith.truncf %295 : vector<8x8xf32> to vector<8x8xbf16>
      %c0_126 = arith.constant 0 : index
      %c0_127 = arith.constant 0 : index
      %297 = vector.load %arg8[%c0_126, %c0_127] : memref<8x32xbf16, #tpu.memory_space<vmem>>, vector<8x32xbf16>
      %cst_128 = arith.constant dense<0.000000e+00> : vector<8x32xf32>
      %298 = tpu.matmul %296, %297, %cst_128 {dimension_numbers = #tpu.dot_dimension_numbers<[1], [0], [0], [1], [0, 0, 1, 1], [], []>} : vector<8x8xbf16>, vector<8x32xbf16>, vector<8x32xf32> -> vector<8x32xf32>
      %c0_129 = arith.constant 0 : index
      %c0_130 = arith.constant 0 : index
      %299 = vector.load %arg9[%c0_129, %c0_130] : memref<1x32xf32, #tpu.memory_space<vmem>>, vector<1x32xf32>
      %300 = vector.broadcast %299 : vector<1x32xf32> to vector<8x32xf32>
      %301 = arith.addf %298, %300 : vector<8x32xf32>
      %302 = arith.addf %301, %288 : vector<8x32xf32>
      %cst_131 = arith.constant dense<0.000000e+00> : vector<16x32xf32>
      %303 = tpu.matmul %289, %293, %cst_131 {dimension_numbers = #tpu.dot_dimension_numbers<[1], [0], [0], [1], [0, 0, 1, 1], [], []>} : vector<16x8xf32>, vector<8x32xf32>, vector<16x32xf32> -> vector<16x32xf32>
      %cst_132 = arith.constant dense<0.000000e+00> : vector<16x32xf32>
      %304 = tpu.matmul %290, %302, %cst_132 {dimension_numbers = #tpu.dot_dimension_numbers<[1], [0], [0], [1], [0, 0, 1, 1], [], []>} : vector<16x8xf32>, vector<8x32xf32>, vector<16x32xf32> -> vector<16x32xf32>
      %305 = arith.addf %303, %304 : vector<16x32xf32>
      %c0_133 = arith.constant 0 : index
      %c0_134 = arith.constant 0 : index
      %306 = vector.load %arg25[%c0_133, %c0_134] : memref<32x32xf32, #tpu.memory_space<vmem>>, vector<16x32xf32>
      tpu.vector_store %arg25[%c0_133, %c0_134], %305 {strides = array<i32>} : memref<32x32xf32, #tpu.memory_space<vmem>>, vector<16x32xf32>,
      %c1 = arith.constant 1 : index
      %c0_135 = arith.constant 0 : index
      %c0_136 = arith.constant 0 : index
      %307 = vector.load %arg2[%c1, %c0_135, %c0_136] : memref<2x8x32xf32, #tpu.memory_space<vmem>>, vector<1x8x32xf32>
      %308 = vector.shape_cast %307 : vector<1x8x32xf32> to vector<8x32xf32>
      %309 = arith.addf %308, %288 : vector<8x32xf32>
      %c1_137 = arith.constant 1 : index
      %c0_138 = arith.constant 0 : index
      %c0_139 = arith.constant 0 : index
      %310 = vector.load %arg3[%c1_137, %c0_138, %c0_139] : memref<2x8x8xf32, #tpu.memory_space<vmem>>, vector<1x8x8xf32>
      %311 = vector.shape_cast %310 : vector<1x8x8xf32> to vector<8x8xf32>
      %312 = arith.truncf %311 : vector<8x8xf32> to vector<8x8xbf16>
      %c0_140 = arith.constant 0 : index
      %c0_141 = arith.constant 0 : index
      %313 = vector.load %arg8[%c0_140, %c0_141] : memref<8x32xbf16, #tpu.memory_space<vmem>>, vector<8x32xbf16>
      %cst_142 = arith.constant dense<0.000000e+00> : vector<8x32xf32>
      %314 = tpu.matmul %312, %313, %cst_142 {dimension_numbers = #tpu.dot_dimension_numbers<[1], [0], [0], [1], [0, 0, 1, 1], [], []>} : vector<8x8xbf16>, vector<8x32xbf16>, vector<8x32xf32> -> vector<8x32xf32>
      %c0_143 = arith.constant 0 : index
      %c0_144 = arith.constant 0 : index
      %315 = vector.load %arg9[%c0_143, %c0_144] : memref<1x32xf32, #tpu.memory_space<vmem>>, vector<1x32xf32>
      %316 = vector.broadcast %315 : vector<1x32xf32> to vector<8x32xf32>
      %317 = arith.addf %314, %316 : vector<8x32xf32>
      %318 = arith.addf %317, %288 : vector<8x32xf32>
      %cst_145 = arith.constant dense<0.000000e+00> : vector<16x32xf32>
      %319 = tpu.matmul %289, %309, %cst_145 {dimension_numbers = #tpu.dot_dimension_numbers<[1], [0], [0], [1], [0, 0, 1, 1], [], []>} : vector<16x8xf32>, vector<8x32xf32>, vector<16x32xf32> -> vector<16x32xf32>
      %cst_146 = arith.constant dense<0.000000e+00> : vector<16x32xf32>
      %320 = tpu.matmul %290, %318, %cst_146 {dimension_numbers = #tpu.dot_dimension_numbers<[1], [0], [0], [1], [0, 0, 1, 1], [], []>} : vector<16x8xf32>, vector<8x32xf32>, vector<16x32xf32> -> vector<16x32xf32>
      %321 = arith.addf %319, %320 : vector<16x32xf32>
      %c16_147 = arith.constant 16 : index
      %c0_148 = arith.constant 0 : index
      %322 = vector.load %arg25[%c16_147, %c0_148] : memref<32x32xf32, #tpu.memory_space<vmem>>, vector<16x32xf32>
      tpu.vector_store %arg25[%c16_147, %c0_148], %321 {strides = array<i32>} : memref<32x32xf32, #tpu.memory_space<vmem>>, vector<16x32xf32>,
    } else {
    }
    %c0 = arith.constant 0 : index
    %c0_1 = arith.constant 0 : index
    %3 = vector.load %arg25[%c0, %c0_1] : memref<32x32xf32, #tpu.memory_space<vmem>>, vector<32x32xf32>
    %c0_2 = arith.constant 0 : index
    %c0_3 = arith.constant 0 : index
    %c0_4 = arith.constant 0 : index
    %4 = vector.load %arg10[%c0_2, %c0_3, %c0_4] : memref<1x1x32xf32, #tpu.memory_space<vmem>>, vector<1x1x32xf32>
    %5 = vector.shape_cast %4 : vector<1x1x32xf32> to vector<1x32xf32>
    %c0_5 = arith.constant 0 : index
    %c0_6 = arith.constant 0 : index
    %c0_7 = arith.constant 0 : index
    %6 = vector.load %arg11[%c0_5, %c0_6, %c0_7] : memref<1x1x32xf32, #tpu.memory_space<vmem>>, vector<1x1x32xf32>
    %7 = vector.shape_cast %6 : vector<1x1x32xf32> to vector<1x32xf32>
    %cst = arith.constant dense<0.000000e+00> : vector<32xf32>
    %8 = vector.multi_reduction <add>, %3, %cst [1] : vector<32x32xf32> to vector<32xf32>
    %9 = vector.shape_cast %8 : vector<32xf32> to vector<32x1xf32>
    %cst_8 = arith.constant 3.200000e+01 : f32
    %10 = vector.broadcast %cst_8 : f32 to vector<32x1xf32>
    %11 = arith.divf %9, %10 : vector<32x1xf32>
    %12 = vector.broadcast %11 : vector<32x1xf32> to vector<32x32xf32>
    %13 = arith.subf %3, %12 : vector<32x32xf32>
    %14 = arith.mulf %13, %13 : vector<32x32xf32>
    %cst_9 = arith.constant dense<0.000000e+00> : vector<32xf32>
    %15 = vector.multi_reduction <add>, %14, %cst_9 [1] : vector<32x32xf32> to vector<32xf32>
    %16 = vector.shape_cast %15 : vector<32xf32> to vector<32x1xf32>
    %cst_10 = arith.constant 3.200000e+01 : f32
    %17 = vector.broadcast %cst_10 : f32 to vector<32x1xf32>
    %18 = arith.divf %16, %17 : vector<32x1xf32>
    %19 = vector.broadcast %11 : vector<32x1xf32> to vector<32x32xf32>
    %20 = arith.subf %3, %19 : vector<32x32xf32>
    %cst_11 = arith.constant 9.99999974E-6 : f32
    %21 = vector.broadcast %cst_11 : f32 to vector<32x1xf32>
    %22 = arith.addf %18, %21 : vector<32x1xf32>
    %23 = math.rsqrt %22 : vector<32x1xf32>
    %24 = vector.broadcast %23 : vector<32x1xf32> to vector<32x32xf32>
    %25 = arith.mulf %20, %24 : vector<32x32xf32>
    %26 = vector.broadcast %5 : vector<1x32xf32> to vector<32x32xf32>
    %27 = arith.mulf %25, %26 : vector<32x32xf32>
    %28 = vector.broadcast %7 : vector<1x32xf32> to vector<32x32xf32>
    %29 = arith.addf %27, %28 : vector<32x32xf32>
    %30 = arith.truncf %29 : vector<32x32xf32> to vector<32x32xbf16>
    %c0_12 = arith.constant 0 : index
    %c0_13 = arith.constant 0 : index
    %c0_14 = arith.constant 0 : index
    %31 = vector.load %arg12[%c0_12, %c0_13, %c0_14] : memref<1x32x96xbf16, #tpu.memory_space<vmem>>, vector<1x32x96xbf16>
    %32 = vector.shape_cast %31 : vector<1x32x96xbf16> to vector<32x96xbf16>
    %cst_15 = arith.constant dense<0.000000e+00> : vector<32x96xf32>
    %33 = tpu.matmul %30, %32, %cst_15 {dimension_numbers = #tpu.dot_dimension_numbers<[1], [0], [0], [1], [0, 0, 1, 1], [], []>} : vector<32x32xbf16>, vector<32x96xbf16>, vector<32x96xf32> -> vector<32x96xf32>
    %c0_16 = arith.constant 0 : index
    %c0_17 = arith.constant 0 : index
    %c0_18 = arith.constant 0 : index
    %34 = vector.load %arg13[%c0_16, %c0_17, %c0_18] : memref<1x1x96xf32, #tpu.memory_space<vmem>>, vector<1x1x96xf32>
    %35 = vector.shape_cast %34 : vector<1x1x96xf32> to vector<1x96xf32>
    %36 = vector.broadcast %35 : vector<1x96xf32> to vector<32x96xf32>
    %37 = arith.addf %33, %36 : vector<32x96xf32>
    %c0_19 = arith.constant 0 : index
    %c0_20 = arith.constant 0 : index
    %38 = vector.load %arg7[%c0_19, %c0_20] : memref<16x16xf32, #tpu.memory_space<vmem>>, vector<16x16xf32>
    %39 = vector.extract_strided_slice %37 {offsets = [0, 0], sizes = [16, 8], strides = [1, 1]} : vector<32x96xf32> to vector<16x8xf32>
    %cst_21 = arith.constant 0.353553385 : f32
    %40 = vector.broadcast %cst_21 : f32 to vector<16x8xf32>
    %41 = arith.mulf %39, %40 : vector<16x8xf32>
    %42 = arith.truncf %41 : vector<16x8xf32> to vector<16x8xbf16>
    %43 = vector.extract_strided_slice %37 {offsets = [0, 32], sizes = [16, 8], strides = [1, 1]} : vector<32x96xf32> to vector<16x8xf32>
    %44 = arith.truncf %43 : vector<16x8xf32> to vector<16x8xbf16>
    %45 = vector.extract_strided_slice %37 {offsets = [0, 64], sizes = [16, 8], strides = [1, 1]} : vector<32x96xf32> to vector<16x8xf32>
    %46 = arith.truncf %45 : vector<16x8xf32> to vector<16x8xbf16>
    %cst_22 = arith.constant dense<0.000000e+00> : vector<16x16xf32>
    %47 = tpu.matmul %42, %44, %cst_22 {dimension_numbers = #tpu.dot_dimension_numbers<[1], [1], [0], [0], [0, 0, 1, 0], [], []>} : vector<16x8xbf16>, vector<16x8xbf16>, vector<16x16xf32> -> vector<16x16xf32>
    %48 = arith.addf %47, %38 : vector<16x16xf32>
    %cst_23 = arith.constant dense<0xFF800000> : vector<16xf32>
    %49 = vector.multi_reduction <maximumf>, %48, %cst_23 [1] : vector<16x16xf32> to vector<16xf32>
    %50 = vector.shape_cast %49 : vector<16xf32> to vector<16x1xf32>
    %51 = vector.broadcast %50 : vector<16x1xf32> to vector<16x16xf32>
    %52 = arith.subf %48, %51 : vector<16x16xf32>
    %53 = math.exp %52 : vector<16x16xf32>
    %cst_24 = arith.constant dense<0.000000e+00> : vector<16xf32>
    %54 = vector.multi_reduction <add>, %53, %cst_24 [1] : vector<16x16xf32> to vector<16xf32>
    %55 = vector.shape_cast %54 : vector<16xf32> to vector<16x1xf32>
    %56 = tpu.reciprocal %55 {approx = true} : vector<16x1xf32> -> vector<16x1xf32>
    %57 = vector.broadcast %56 : vector<16x1xf32> to vector<16x16xf32>
    %58 = arith.mulf %53, %57 : vector<16x16xf32>
    %59 = arith.truncf %58 : vector<16x16xf32> to vector<16x16xbf16>
    %cst_25 = arith.constant dense<0.000000e+00> : vector<16x8xf32>
    %60 = tpu.matmul %59, %46, %cst_25 {dimension_numbers = #tpu.dot_dimension_numbers<[1], [0], [0], [1], [0, 0, 1, 1], [], []>} : vector<16x16xbf16>, vector<16x8xbf16>, vector<16x8xf32> -> vector<16x8xf32>
    %c0_26 = arith.constant 0 : index
    %c0_27 = arith.constant 0 : index
    %61 = vector.load %arg26[%c0_26, %c0_27] : memref<32x32xf32, #tpu.memory_space<vmem>>, vector<16x8xf32>
    tpu.vector_store %arg26[%c0_26, %c0_27], %60 {strides = array<i32>} : memref<32x32xf32, #tpu.memory_space<vmem>>, vector<16x8xf32>,
    %62 = vector.extract_strided_slice %37 {offsets = [0, 8], sizes = [16, 8], strides = [1, 1]} : vector<32x96xf32> to vector<16x8xf32>
    %cst_28 = arith.constant 0.353553385 : f32
    %63 = vector.broadcast %cst_28 : f32 to vector<16x8xf32>
    %64 = arith.mulf %62, %63 : vector<16x8xf32>
    %65 = arith.truncf %64 : vector<16x8xf32> to vector<16x8xbf16>
    %66 = vector.extract_strided_slice %37 {offsets = [0, 40], sizes = [16, 8], strides = [1, 1]} : vector<32x96xf32> to vector<16x8xf32>
    %67 = arith.truncf %66 : vector<16x8xf32> to vector<16x8xbf16>
    %68 = vector.extract_strided_slice %37 {offsets = [0, 72], sizes = [16, 8], strides = [1, 1]} : vector<32x96xf32> to vector<16x8xf32>
    %69 = arith.truncf %68 : vector<16x8xf32> to vector<16x8xbf16>
    %cst_29 = arith.constant dense<0.000000e+00> : vector<16x16xf32>
    %70 = tpu.matmul %65, %67, %cst_29 {dimension_numbers = #tpu.dot_dimension_numbers<[1], [1], [0], [0], [0, 0, 1, 0], [], []>} : vector<16x8xbf16>, vector<16x8xbf16>, vector<16x16xf32> -> vector<16x16xf32>
    %71 = arith.addf %70, %38 : vector<16x16xf32>
    %cst_30 = arith.constant dense<0xFF800000> : vector<16xf32>
    %72 = vector.multi_reduction <maximumf>, %71, %cst_30 [1] : vector<16x16xf32> to vector<16xf32>
    %73 = vector.shape_cast %72 : vector<16xf32> to vector<16x1xf32>
    %74 = vector.broadcast %73 : vector<16x1xf32> to vector<16x16xf32>
    %75 = arith.subf %71, %74 : vector<16x16xf32>
    %76 = math.exp %75 : vector<16x16xf32>
    %cst_31 = arith.constant dense<0.000000e+00> : vector<16xf32>
    %77 = vector.multi_reduction <add>, %76, %cst_31 [1] : vector<16x16xf32> to vector<16xf32>
    %78 = vector.shape_cast %77 : vector<16xf32> to vector<16x1xf32>
    %79 = tpu.reciprocal %78 {approx = true} : vector<16x1xf32> -> vector<16x1xf32>
    %80 = vector.broadcast %79 : vector<16x1xf32> to vector<16x16xf32>
    %81 = arith.mulf %76, %80 : vector<16x16xf32>
    %82 = arith.truncf %81 : vector<16x16xf32> to vector<16x16xbf16>
    %cst_32 = arith.constant dense<0.000000e+00> : vector<16x8xf32>
    %83 = tpu.matmul %82, %69, %cst_32 {dimension_numbers = #tpu.dot_dimension_numbers<[1], [0], [0], [1], [0, 0, 1, 1], [], []>} : vector<16x16xbf16>, vector<16x8xbf16>, vector<16x8xf32> -> vector<16x8xf32>
    %c0_33 = arith.constant 0 : index
    %c8 = arith.constant 8 : index
    %84 = vector.load %arg26[%c0_33, %c8] : memref<32x32xf32, #tpu.memory_space<vmem>>, vector<16x8xf32>
    tpu.vector_store %arg26[%c0_33, %c8], %83 {strides = array<i32>} : memref<32x32xf32, #tpu.memory_space<vmem>>, vector<16x8xf32>,
    %85 = vector.extract_strided_slice %37 {offsets = [0, 16], sizes = [16, 8], strides = [1, 1]} : vector<32x96xf32> to vector<16x8xf32>
    %cst_34 = arith.constant 0.353553385 : f32
    %86 = vector.broadcast %cst_34 : f32 to vector<16x8xf32>
    %87 = arith.mulf %85, %86 : vector<16x8xf32>
    %88 = arith.truncf %87 : vector<16x8xf32> to vector<16x8xbf16>
    %89 = vector.extract_strided_slice %37 {offsets = [0, 48], sizes = [16, 8], strides = [1, 1]} : vector<32x96xf32> to vector<16x8xf32>
    %90 = arith.truncf %89 : vector<16x8xf32> to vector<16x8xbf16>
    %91 = vector.extract_strided_slice %37 {offsets = [0, 80], sizes = [16, 8], strides = [1, 1]} : vector<32x96xf32> to vector<16x8xf32>
    %92 = arith.truncf %91 : vector<16x8xf32> to vector<16x8xbf16>
    %cst_35 = arith.constant dense<0.000000e+00> : vector<16x16xf32>
    %93 = tpu.matmul %88, %90, %cst_35 {dimension_numbers = #tpu.dot_dimension_numbers<[1], [1], [0], [0], [0, 0, 1, 0], [], []>} : vector<16x8xbf16>, vector<16x8xbf16>, vector<16x16xf32> -> vector<16x16xf32>
    %94 = arith.addf %93, %38 : vector<16x16xf32>
    %cst_36 = arith.constant dense<0xFF800000> : vector<16xf32>
    %95 = vector.multi_reduction <maximumf>, %94, %cst_36 [1] : vector<16x16xf32> to vector<16xf32>
    %96 = vector.shape_cast %95 : vector<16xf32> to vector<16x1xf32>
    %97 = vector.broadcast %96 : vector<16x1xf32> to vector<16x16xf32>
    %98 = arith.subf %94, %97 : vector<16x16xf32>
    %99 = math.exp %98 : vector<16x16xf32>
    %cst_37 = arith.constant dense<0.000000e+00> : vector<16xf32>
    %100 = vector.multi_reduction <add>, %99, %cst_37 [1] : vector<16x16xf32> to vector<16xf32>
    %101 = vector.shape_cast %100 : vector<16xf32> to vector<16x1xf32>
    %102 = tpu.reciprocal %101 {approx = true} : vector<16x1xf32> -> vector<16x1xf32>
    %103 = vector.broadcast %102 : vector<16x1xf32> to vector<16x16xf32>
    %104 = arith.mulf %99, %103 : vector<16x16xf32>
    %105 = arith.truncf %104 : vector<16x16xf32> to vector<16x16xbf16>
    %cst_38 = arith.constant dense<0.000000e+00> : vector<16x8xf32>
    %106 = tpu.matmul %105, %92, %cst_38 {dimension_numbers = #tpu.dot_dimension_numbers<[1], [0], [0], [1], [0, 0, 1, 1], [], []>} : vector<16x16xbf16>, vector<16x8xbf16>, vector<16x8xf32> -> vector<16x8xf32>
    %c0_39 = arith.constant 0 : index
    %c16 = arith.constant 16 : index
    %107 = vector.load %arg26[%c0_39, %c16] : memref<32x32xf32, #tpu.memory_space<vmem>>, vector<16x8xf32>
    tpu.vector_store %arg26[%c0_39, %c16], %106 {strides = array<i32>} : memref<32x32xf32, #tpu.memory_space<vmem>>, vector<16x8xf32>,
    %108 = vector.extract_strided_slice %37 {offsets = [0, 24], sizes = [16, 8], strides = [1, 1]} : vector<32x96xf32> to vector<16x8xf32>
    %cst_40 = arith.constant 0.353553385 : f32
    %109 = vector.broadcast %cst_40 : f32 to vector<16x8xf32>
    %110 = arith.mulf %108, %109 : vector<16x8xf32>
    %111 = arith.truncf %110 : vector<16x8xf32> to vector<16x8xbf16>
    %112 = vector.extract_strided_slice %37 {offsets = [0, 56], sizes = [16, 8], strides = [1, 1]} : vector<32x96xf32> to vector<16x8xf32>
    %113 = arith.truncf %112 : vector<16x8xf32> to vector<16x8xbf16>
    %114 = vector.extract_strided_slice %37 {offsets = [0, 88], sizes = [16, 8], strides = [1, 1]} : vector<32x96xf32> to vector<16x8xf32>
    %115 = arith.truncf %114 : vector<16x8xf32> to vector<16x8xbf16>
    %cst_41 = arith.constant dense<0.000000e+00> : vector<16x16xf32>
    %116 = tpu.matmul %111, %113, %cst_41 {dimension_numbers = #tpu.dot_dimension_numbers<[1], [1], [0], [0], [0, 0, 1, 0], [], []>} : vector<16x8xbf16>, vector<16x8xbf16>, vector<16x16xf32> -> vector<16x16xf32>
    %117 = arith.addf %116, %38 : vector<16x16xf32>
    %cst_42 = arith.constant dense<0xFF800000> : vector<16xf32>
    %118 = vector.multi_reduction <maximumf>, %117, %cst_42 [1] : vector<16x16xf32> to vector<16xf32>
    %119 = vector.shape_cast %118 : vector<16xf32> to vector<16x1xf32>
    %120 = vector.broadcast %119 : vector<16x1xf32> to vector<16x16xf32>
    %121 = arith.subf %117, %120 : vector<16x16xf32>
    %122 = math.exp %121 : vector<16x16xf32>
    %cst_43 = arith.constant dense<0.000000e+00> : vector<16xf32>
    %123 = vector.multi_reduction <add>, %122, %cst_43 [1] : vector<16x16xf32> to vector<16xf32>
    %124 = vector.shape_cast %123 : vector<16xf32> to vector<16x1xf32>
    %125 = tpu.reciprocal %124 {approx = true} : vector<16x1xf32> -> vector<16x1xf32>
    %126 = vector.broadcast %125 : vector<16x1xf32> to vector<16x16xf32>
    %127 = arith.mulf %122, %126 : vector<16x16xf32>
    %128 = arith.truncf %127 : vector<16x16xf32> to vector<16x16xbf16>
    %cst_44 = arith.constant dense<0.000000e+00> : vector<16x8xf32>
    %129 = tpu.matmul %128, %115, %cst_44 {dimension_numbers = #tpu.dot_dimension_numbers<[1], [0], [0], [1], [0, 0, 1, 1], [], []>} : vector<16x16xbf16>, vector<16x8xbf16>, vector<16x8xf32> -> vector<16x8xf32>
    %c0_45 = arith.constant 0 : index
    %c24 = arith.constant 24 : index
    %130 = vector.load %arg26[%c0_45, %c24] : memref<32x32xf32, #tpu.memory_space<vmem>>, vector<16x8xf32>
    tpu.vector_store %arg26[%c0_45, %c24], %129 {strides = array<i32>} : memref<32x32xf32, #tpu.memory_space<vmem>>, vector<16x8xf32>,
    %131 = vector.extract_strided_slice %37 {offsets = [16, 0], sizes = [16, 8], strides = [1, 1]} : vector<32x96xf32> to vector<16x8xf32>
    %cst_46 = arith.constant 0.353553385 : f32
    %132 = vector.broadcast %cst_46 : f32 to vector<16x8xf32>
    %133 = arith.mulf %131, %132 : vector<16x8xf32>
    %134 = arith.truncf %133 : vector<16x8xf32> to vector<16x8xbf16>
    %135 = vector.extract_strided_slice %37 {offsets = [16, 32], sizes = [16, 8], strides = [1, 1]} : vector<32x96xf32> to vector<16x8xf32>
    %136 = arith.truncf %135 : vector<16x8xf32> to vector<16x8xbf16>
    %137 = vector.extract_strided_slice %37 {offsets = [16, 64], sizes = [16, 8], strides = [1, 1]} : vector<32x96xf32> to vector<16x8xf32>
    %138 = arith.truncf %137 : vector<16x8xf32> to vector<16x8xbf16>
    %cst_47 = arith.constant dense<0.000000e+00> : vector<16x16xf32>
    %139 = tpu.matmul %134, %136, %cst_47 {dimension_numbers = #tpu.dot_dimension_numbers<[1], [1], [0], [0], [0, 0, 1, 0], [], []>} : vector<16x8xbf16>, vector<16x8xbf16>, vector<16x16xf32> -> vector<16x16xf32>
    %140 = arith.addf %139, %38 : vector<16x16xf32>
    %cst_48 = arith.constant dense<0xFF800000> : vector<16xf32>
    %141 = vector.multi_reduction <maximumf>, %140, %cst_48 [1] : vector<16x16xf32> to vector<16xf32>
    %142 = vector.shape_cast %141 : vector<16xf32> to vector<16x1xf32>
    %143 = vector.broadcast %142 : vector<16x1xf32> to vector<16x16xf32>
    %144 = arith.subf %140, %143 : vector<16x16xf32>
    %145 = math.exp %144 : vector<16x16xf32>
    %cst_49 = arith.constant dense<0.000000e+00> : vector<16xf32>
    %146 = vector.multi_reduction <add>, %145, %cst_49 [1] : vector<16x16xf32> to vector<16xf32>
    %147 = vector.shape_cast %146 : vector<16xf32> to vector<16x1xf32>
    %148 = tpu.reciprocal %147 {approx = true} : vector<16x1xf32> -> vector<16x1xf32>
    %149 = vector.broadcast %148 : vector<16x1xf32> to vector<16x16xf32>
    %150 = arith.mulf %145, %149 : vector<16x16xf32>
    %151 = arith.truncf %150 : vector<16x16xf32> to vector<16x16xbf16>
    %cst_50 = arith.constant dense<0.000000e+00> : vector<16x8xf32>
    %152 = tpu.matmul %151, %138, %cst_50 {dimension_numbers = #tpu.dot_dimension_numbers<[1], [0], [0], [1], [0, 0, 1, 1], [], []>} : vector<16x16xbf16>, vector<16x8xbf16>, vector<16x8xf32> -> vector<16x8xf32>
    %c16_51 = arith.constant 16 : index
    %c0_52 = arith.constant 0 : index
    %153 = vector.load %arg26[%c16_51, %c0_52] : memref<32x32xf32, #tpu.memory_space<vmem>>, vector<16x8xf32>
    tpu.vector_store %arg26[%c16_51, %c0_52], %152 {strides = array<i32>} : memref<32x32xf32, #tpu.memory_space<vmem>>, vector<16x8xf32>,
    %154 = vector.extract_strided_slice %37 {offsets = [16, 8], sizes = [16, 8], strides = [1, 1]} : vector<32x96xf32> to vector<16x8xf32>
    %cst_53 = arith.constant 0.353553385 : f32
    %155 = vector.broadcast %cst_53 : f32 to vector<16x8xf32>
    %156 = arith.mulf %154, %155 : vector<16x8xf32>
    %157 = arith.truncf %156 : vector<16x8xf32> to vector<16x8xbf16>
    %158 = vector.extract_strided_slice %37 {offsets = [16, 40], sizes = [16, 8], strides = [1, 1]} : vector<32x96xf32> to vector<16x8xf32>
    %159 = arith.truncf %158 : vector<16x8xf32> to vector<16x8xbf16>
    %160 = vector.extract_strided_slice %37 {offsets = [16, 72], sizes = [16, 8], strides = [1, 1]} : vector<32x96xf32> to vector<16x8xf32>
    %161 = arith.truncf %160 : vector<16x8xf32> to vector<16x8xbf16>
    %cst_54 = arith.constant dense<0.000000e+00> : vector<16x16xf32>
    %162 = tpu.matmul %157, %159, %cst_54 {dimension_numbers = #tpu.dot_dimension_numbers<[1], [1], [0], [0], [0, 0, 1, 0], [], []>} : vector<16x8xbf16>, vector<16x8xbf16>, vector<16x16xf32> -> vector<16x16xf32>
    %163 = arith.addf %162, %38 : vector<16x16xf32>
    %cst_55 = arith.constant dense<0xFF800000> : vector<16xf32>
    %164 = vector.multi_reduction <maximumf>, %163, %cst_55 [1] : vector<16x16xf32> to vector<16xf32>
    %165 = vector.shape_cast %164 : vector<16xf32> to vector<16x1xf32>
    %166 = vector.broadcast %165 : vector<16x1xf32> to vector<16x16xf32>
    %167 = arith.subf %163, %166 : vector<16x16xf32>
    %168 = math.exp %167 : vector<16x16xf32>
    %cst_56 = arith.constant dense<0.000000e+00> : vector<16xf32>
    %169 = vector.multi_reduction <add>, %168, %cst_56 [1] : vector<16x16xf32> to vector<16xf32>
    %170 = vector.shape_cast %169 : vector<16xf32> to vector<16x1xf32>
    %171 = tpu.reciprocal %170 {approx = true} : vector<16x1xf32> -> vector<16x1xf32>
    %172 = vector.broadcast %171 : vector<16x1xf32> to vector<16x16xf32>
    %173 = arith.mulf %168, %172 : vector<16x16xf32>
    %174 = arith.truncf %173 : vector<16x16xf32> to vector<16x16xbf16>
    %cst_57 = arith.constant dense<0.000000e+00> : vector<16x8xf32>
    %175 = tpu.matmul %174, %161, %cst_57 {dimension_numbers = #tpu.dot_dimension_numbers<[1], [0], [0], [1], [0, 0, 1, 1], [], []>} : vector<16x16xbf16>, vector<16x8xbf16>, vector<16x8xf32> -> vector<16x8xf32>
    %c16_58 = arith.constant 16 : index
    %c8_59 = arith.constant 8 : index
    %176 = vector.load %arg26[%c16_58, %c8_59] : memref<32x32xf32, #tpu.memory_space<vmem>>, vector<16x8xf32>
    tpu.vector_store %arg26[%c16_58, %c8_59], %175 {strides = array<i32>} : memref<32x32xf32, #tpu.memory_space<vmem>>, vector<16x8xf32>,
    %177 = vector.extract_strided_slice %37 {offsets = [16, 16], sizes = [16, 8], strides = [1, 1]} : vector<32x96xf32> to vector<16x8xf32>
    %cst_60 = arith.constant 0.353553385 : f32
    %178 = vector.broadcast %cst_60 : f32 to vector<16x8xf32>
    %179 = arith.mulf %177, %178 : vector<16x8xf32>
    %180 = arith.truncf %179 : vector<16x8xf32> to vector<16x8xbf16>
    %181 = vector.extract_strided_slice %37 {offsets = [16, 48], sizes = [16, 8], strides = [1, 1]} : vector<32x96xf32> to vector<16x8xf32>
    %182 = arith.truncf %181 : vector<16x8xf32> to vector<16x8xbf16>
    %183 = vector.extract_strided_slice %37 {offsets = [16, 80], sizes = [16, 8], strides = [1, 1]} : vector<32x96xf32> to vector<16x8xf32>
    %184 = arith.truncf %183 : vector<16x8xf32> to vector<16x8xbf16>
    %cst_61 = arith.constant dense<0.000000e+00> : vector<16x16xf32>
    %185 = tpu.matmul %180, %182, %cst_61 {dimension_numbers = #tpu.dot_dimension_numbers<[1], [1], [0], [0], [0, 0, 1, 0], [], []>} : vector<16x8xbf16>, vector<16x8xbf16>, vector<16x16xf32> -> vector<16x16xf32>
    %186 = arith.addf %185, %38 : vector<16x16xf32>
    %cst_62 = arith.constant dense<0xFF800000> : vector<16xf32>
    %187 = vector.multi_reduction <maximumf>, %186, %cst_62 [1] : vector<16x16xf32> to vector<16xf32>
    %188 = vector.shape_cast %187 : vector<16xf32> to vector<16x1xf32>
    %189 = vector.broadcast %188 : vector<16x1xf32> to vector<16x16xf32>
    %190 = arith.subf %186, %189 : vector<16x16xf32>
    %191 = math.exp %190 : vector<16x16xf32>
    %cst_63 = arith.constant dense<0.000000e+00> : vector<16xf32>
    %192 = vector.multi_reduction <add>, %191, %cst_63 [1] : vector<16x16xf32> to vector<16xf32>
    %193 = vector.shape_cast %192 : vector<16xf32> to vector<16x1xf32>
    %194 = tpu.reciprocal %193 {approx = true} : vector<16x1xf32> -> vector<16x1xf32>
    %195 = vector.broadcast %194 : vector<16x1xf32> to vector<16x16xf32>
    %196 = arith.mulf %191, %195 : vector<16x16xf32>
    %197 = arith.truncf %196 : vector<16x16xf32> to vector<16x16xbf16>
    %cst_64 = arith.constant dense<0.000000e+00> : vector<16x8xf32>
    %198 = tpu.matmul %197, %184, %cst_64 {dimension_numbers = #tpu.dot_dimension_numbers<[1], [0], [0], [1], [0, 0, 1, 1], [], []>} : vector<16x16xbf16>, vector<16x8xbf16>, vector<16x8xf32> -> vector<16x8xf32>
    %c16_65 = arith.constant 16 : index
    %c16_66 = arith.constant 16 : index
    %199 = vector.load %arg26[%c16_65, %c16_66] : memref<32x32xf32, #tpu.memory_space<vmem>>, vector<16x8xf32>
    tpu.vector_store %arg26[%c16_65, %c16_66], %198 {strides = array<i32>} : memref<32x32xf32, #tpu.memory_space<vmem>>, vector<16x8xf32>,
    %200 = vector.extract_strided_slice %37 {offsets = [16, 24], sizes = [16, 8], strides = [1, 1]} : vector<32x96xf32> to vector<16x8xf32>
    %cst_67 = arith.constant 0.353553385 : f32
    %201 = vector.broadcast %cst_67 : f32 to vector<16x8xf32>
    %202 = arith.mulf %200, %201 : vector<16x8xf32>
    %203 = arith.truncf %202 : vector<16x8xf32> to vector<16x8xbf16>
    %204 = vector.extract_strided_slice %37 {offsets = [16, 56], sizes = [16, 8], strides = [1, 1]} : vector<32x96xf32> to vector<16x8xf32>
    %205 = arith.truncf %204 : vector<16x8xf32> to vector<16x8xbf16>
    %206 = vector.extract_strided_slice %37 {offsets = [16, 88], sizes = [16, 8], strides = [1, 1]} : vector<32x96xf32> to vector<16x8xf32>
    %207 = arith.truncf %206 : vector<16x8xf32> to vector<16x8xbf16>
    %cst_68 = arith.constant dense<0.000000e+00> : vector<16x16xf32>
    %208 = tpu.matmul %203, %205, %cst_68 {dimension_numbers = #tpu.dot_dimension_numbers<[1], [1], [0], [0], [0, 0, 1, 0], [], []>} : vector<16x8xbf16>, vector<16x8xbf16>, vector<16x16xf32> -> vector<16x16xf32>
    %209 = arith.addf %208, %38 : vector<16x16xf32>
    %cst_69 = arith.constant dense<0xFF800000> : vector<16xf32>
    %210 = vector.multi_reduction <maximumf>, %209, %cst_69 [1] : vector<16x16xf32> to vector<16xf32>
    %211 = vector.shape_cast %210 : vector<16xf32> to vector<16x1xf32>
    %212 = vector.broadcast %211 : vector<16x1xf32> to vector<16x16xf32>
    %213 = arith.subf %209, %212 : vector<16x16xf32>
    %214 = math.exp %213 : vector<16x16xf32>
    %cst_70 = arith.constant dense<0.000000e+00> : vector<16xf32>
    %215 = vector.multi_reduction <add>, %214, %cst_70 [1] : vector<16x16xf32> to vector<16xf32>
    %216 = vector.shape_cast %215 : vector<16xf32> to vector<16x1xf32>
    %217 = tpu.reciprocal %216 {approx = true} : vector<16x1xf32> -> vector<16x1xf32>
    %218 = vector.broadcast %217 : vector<16x1xf32> to vector<16x16xf32>
    %219 = arith.mulf %214, %218 : vector<16x16xf32>
    %220 = arith.truncf %219 : vector<16x16xf32> to vector<16x16xbf16>
    %cst_71 = arith.constant dense<0.000000e+00> : vector<16x8xf32>
    %221 = tpu.matmul %220, %207, %cst_71 {dimension_numbers = #tpu.dot_dimension_numbers<[1], [0], [0], [1], [0, 0, 1, 1], [], []>} : vector<16x16xbf16>, vector<16x8xbf16>, vector<16x8xf32> -> vector<16x8xf32>
    %c16_72 = arith.constant 16 : index
    %c24_73 = arith.constant 24 : index
    %222 = vector.load %arg26[%c16_72, %c24_73] : memref<32x32xf32, #tpu.memory_space<vmem>>, vector<16x8xf32>
    tpu.vector_store %arg26[%c16_72, %c24_73], %221 {strides = array<i32>} : memref<32x32xf32, #tpu.memory_space<vmem>>, vector<16x8xf32>,
    %c0_74 = arith.constant 0 : index
    %c0_75 = arith.constant 0 : index
    %223 = vector.load %arg26[%c0_74, %c0_75] : memref<32x32xf32, #tpu.memory_space<vmem>>, vector<32x32xf32>
    %224 = arith.truncf %223 : vector<32x32xf32> to vector<32x32xbf16>
    %c0_76 = arith.constant 0 : index
    %c0_77 = arith.constant 0 : index
    %c0_78 = arith.constant 0 : index
    %225 = vector.load %arg14[%c0_76, %c0_77, %c0_78] : memref<1x32x32xf32, #tpu.memory_space<vmem>>, vector<1x32x32xf32>
    %226 = vector.shape_cast %225 : vector<1x32x32xf32> to vector<32x32xf32>
    %cst_79 = arith.constant dense<0.000000e+00> : vector<32x32xf32>
    %227 = tpu.matmul %224, %226, %cst_79 {dimension_numbers = #tpu.dot_dimension_numbers<[1], [0], [0], [1], [0, 0, 1, 1], [], []>} : vector<32x32xbf16>, vector<32x32xf32>, vector<32x32xf32> -> vector<32x32xf32>
    %c0_80 = arith.constant 0 : index
    %c0_81 = arith.constant 0 : index
    %c0_82 = arith.constant 0 : index
    %228 = vector.load %arg15[%c0_80, %c0_81, %c0_82] : memref<1x1x32xf32, #tpu.memory_space<vmem>>, vector<1x1x32xf32>
    %229 = vector.shape_cast %228 : vector<1x1x32xf32> to vector<1x32xf32>
    %230 = vector.broadcast %229 : vector<1x32xf32> to vector<32x32xf32>
    %231 = arith.addf %227, %230 : vector<32x32xf32>
    %232 = arith.addf %3, %231 : vector<32x32xf32>
    %c0_83 = arith.constant 0 : index
    %c0_84 = arith.constant 0 : index
    %c0_85 = arith.constant 0 : index
    %233 = vector.load %arg16[%c0_83, %c0_84, %c0_85] : memref<1x1x32xf32, #tpu.memory_space<vmem>>, vector<1x1x32xf32>
    %234 = vector.shape_cast %233 : vector<1x1x32xf32> to vector<1x32xf32>
    %c0_86 = arith.constant 0 : index
    %c0_87 = arith.constant 0 : index
    %c0_88 = arith.constant 0 : index
    %235 = vector.load %arg17[%c0_86, %c0_87, %c0_88] : memref<1x1x32xf32, #tpu.memory_space<vmem>>, vector<1x1x32xf32>
    %236 = vector.shape_cast %235 : vector<1x1x32xf32> to vector<1x32xf32>
    %cst_89 = arith.constant dense<0.000000e+00> : vector<32xf32>
    %237 = vector.multi_reduction <add>, %232, %cst_89 [1] : vector<32x32xf32> to vector<32xf32>
    %238 = vector.shape_cast %237 : vector<32xf32> to vector<32x1xf32>
    %cst_90 = arith.constant 3.200000e+01 : f32
    %239 = vector.broadcast %cst_90 : f32 to vector<32x1xf32>
    %240 = arith.divf %238, %239 : vector<32x1xf32>
    %241 = vector.broadcast %240 : vector<32x1xf32> to vector<32x32xf32>
    %242 = arith.subf %232, %241 : vector<32x32xf32>
    %243 = arith.mulf %242, %242 : vector<32x32xf32>
    %cst_91 = arith.constant dense<0.000000e+00> : vector<32xf32>
    %244 = vector.multi_reduction <add>, %243, %cst_91 [1] : vector<32x32xf32> to vector<32xf32>
    %245 = vector.shape_cast %244 : vector<32xf32> to vector<32x1xf32>
    %cst_92 = arith.constant 3.200000e+01 : f32
    %246 = vector.broadcast %cst_92 : f32 to vector<32x1xf32>
    %247 = arith.divf %245, %246 : vector<32x1xf32>
    %248 = vector.broadcast %240 : vector<32x1xf32> to vector<32x32xf32>
    %249 = arith.subf %232, %248 : vector<32x32xf32>
    %cst_93 = arith.constant 9.99999974E-6 : f32
    %250 = vector.broadcast %cst_93 : f32 to vector<32x1xf32>
    %251 = arith.addf %247, %250 : vector<32x1xf32>
    %252 = math.rsqrt %251 : vector<32x1xf32>
    %253 = vector.broadcast %252 : vector<32x1xf32> to vector<32x32xf32>
    %254 = arith.mulf %249, %253 : vector<32x32xf32>
    %255 = vector.broadcast %234 : vector<1x32xf32> to vector<32x32xf32>
    %256 = arith.mulf %254, %255 : vector<32x32xf32>
    %257 = vector.broadcast %236 : vector<1x32xf32> to vector<32x32xf32>
    %258 = arith.addf %256, %257 : vector<32x32xf32>
    %259 = arith.truncf %258 : vector<32x32xf32> to vector<32x32xbf16>
    %c0_94 = arith.constant 0 : index
    %c0_95 = arith.constant 0 : index
    %c0_96 = arith.constant 0 : index
    %260 = vector.load %arg18[%c0_94, %c0_95, %c0_96] : memref<1x32x128xbf16, #tpu.memory_space<vmem>>, vector<1x32x128xbf16>
    %261 = vector.shape_cast %260 : vector<1x32x128xbf16> to vector<32x128xbf16>
    %cst_97 = arith.constant dense<0.000000e+00> : vector<32x128xf32>
    %262 = tpu.matmul %259, %261, %cst_97 {dimension_numbers = #tpu.dot_dimension_numbers<[1], [0], [0], [1], [0, 0, 1, 1], [], []>} : vector<32x32xbf16>, vector<32x128xbf16>, vector<32x128xf32> -> vector<32x128xf32>
    %c0_98 = arith.constant 0 : index
    %c0_99 = arith.constant 0 : index
    %c0_100 = arith.constant 0 : index
    %263 = vector.load %arg19[%c0_98, %c0_99, %c0_100] : memref<1x1x128xf32, #tpu.memory_space<vmem>>, vector<1x1x128xf32>
    %264 = vector.shape_cast %263 : vector<1x1x128xf32> to vector<1x128xf32>
    %265 = vector.broadcast %264 : vector<1x128xf32> to vector<32x128xf32>
    %266 = arith.addf %262, %265 : vector<32x128xf32>
    %cst_101 = arith.constant 5.000000e-01 : f32
    %267 = vector.broadcast %cst_101 : f32 to vector<32x128xf32>
    %268 = arith.mulf %267, %266 : vector<32x128xf32>
    %cst_102 = arith.constant 0.707106769 : f32
    %269 = vector.broadcast %cst_102 : f32 to vector<32x128xf32>
    %270 = arith.mulf %266, %269 : vector<32x128xf32>
    %271 = math.erf %270 : vector<32x128xf32>
    %cst_103 = arith.constant 1.000000e+00 : f32
    %272 = vector.broadcast %cst_103 : f32 to vector<32x128xf32>
    %273 = arith.addf %272, %271 : vector<32x128xf32>
    %274 = arith.mulf %268, %273 : vector<32x128xf32>
    %275 = arith.truncf %274 : vector<32x128xf32> to vector<32x128xbf16>
    %c0_104 = arith.constant 0 : index
    %c0_105 = arith.constant 0 : index
    %c0_106 = arith.constant 0 : index
    %276 = vector.load %arg20[%c0_104, %c0_105, %c0_106] : memref<1x128x32xbf16, #tpu.memory_space<vmem>>, vector<1x128x32xbf16>
    %277 = vector.shape_cast %276 : vector<1x128x32xbf16> to vector<128x32xbf16>
    %cst_107 = arith.constant dense<0.000000e+00> : vector<32x32xf32>
    %278 = tpu.matmul %275, %277, %cst_107 {dimension_numbers = #tpu.dot_dimension_numbers<[1], [0], [0], [1], [0, 0, 1, 1], [], []>} : vector<32x128xbf16>, vector<128x32xbf16>, vector<32x32xf32> -> vector<32x32xf32>
    %c0_108 = arith.constant 0 : index
    %c0_109 = arith.constant 0 : index
    %c0_110 = arith.constant 0 : index
    %279 = vector.load %arg21[%c0_108, %c0_109, %c0_110] : memref<1x1x32xf32, #tpu.memory_space<vmem>>, vector<1x1x32xf32>
    %280 = vector.shape_cast %279 : vector<1x1x32xf32> to vector<1x32xf32>
    %281 = vector.broadcast %280 : vector<1x32xf32> to vector<32x32xf32>
    %282 = arith.addf %278, %281 : vector<32x32xf32>
    %283 = arith.addf %232, %282 : vector<32x32xf32>
    %c0_111 = arith.constant 0 : index
    %c0_112 = arith.constant 0 : index
    %284 = vector.load %arg25[%c0_111, %c0_112] : memref<32x32xf32, #tpu.memory_space<vmem>>, vector<32x32xf32>
    tpu.vector_store %arg25[%c0_111, %c0_112], %283 {strides = array<i32>} : memref<32x32xf32, #tpu.memory_space<vmem>>, vector<32x32xf32>,
    %c1_i32 = arith.constant 1 : i32
    %285 = arith.cmpi eq, %arg1, %c1_i32 : i32
    %286 = arith.extui %285 : i1 to i32
    %c0_i32_113 = arith.constant 0 : i32
    %287 = arith.cmpi ne, %286, %c0_i32_113 : i32
    scf.if %287 {
      %c0_114 = arith.constant 0 : index
      %c0_115 = arith.constant 0 : index
      %288 = vector.load %arg22[%c0_114, %c0_115] : memref<1x32xf32, #tpu.memory_space<vmem>>, vector<1x32xf32>
      %c0_116 = arith.constant 0 : index
      %c0_117 = arith.constant 0 : index
      %289 = vector.load %arg23[%c0_116, %c0_117] : memref<1x32xf32, #tpu.memory_space<vmem>>, vector<1x32xf32>
      %cst_118 = arith.constant dense<0.000000e+00> : vector<32xf32>
      %290 = vector.multi_reduction <add>, %283, %cst_118 [1] : vector<32x32xf32> to vector<32xf32>
      %291 = vector.shape_cast %290 : vector<32xf32> to vector<32x1xf32>
      %cst_119 = arith.constant 3.200000e+01 : f32
      %292 = vector.broadcast %cst_119 : f32 to vector<32x1xf32>
      %293 = arith.divf %291, %292 : vector<32x1xf32>
      %294 = vector.broadcast %293 : vector<32x1xf32> to vector<32x32xf32>
      %295 = arith.subf %283, %294 : vector<32x32xf32>
      %296 = arith.mulf %295, %295 : vector<32x32xf32>
      %cst_120 = arith.constant dense<0.000000e+00> : vector<32xf32>
      %297 = vector.multi_reduction <add>, %296, %cst_120 [1] : vector<32x32xf32> to vector<32xf32>
      %298 = vector.shape_cast %297 : vector<32xf32> to vector<32x1xf32>
      %cst_121 = arith.constant 3.200000e+01 : f32
      %299 = vector.broadcast %cst_121 : f32 to vector<32x1xf32>
      %300 = arith.divf %298, %299 : vector<32x1xf32>
      %301 = vector.broadcast %293 : vector<32x1xf32> to vector<32x32xf32>
      %302 = arith.subf %283, %301 : vector<32x32xf32>
      %cst_122 = arith.constant 9.99999974E-6 : f32
      %303 = vector.broadcast %cst_122 : f32 to vector<32x1xf32>
      %304 = arith.addf %300, %303 : vector<32x1xf32>
      %305 = math.rsqrt %304 : vector<32x1xf32>
      %306 = vector.broadcast %305 : vector<32x1xf32> to vector<32x32xf32>
      %307 = arith.mulf %302, %306 : vector<32x32xf32>
      %308 = vector.broadcast %288 : vector<1x32xf32> to vector<32x32xf32>
      %309 = arith.mulf %307, %308 : vector<32x32xf32>
      %310 = vector.broadcast %289 : vector<1x32xf32> to vector<32x32xf32>
      %311 = arith.addf %309, %310 : vector<32x32xf32>
      %312 = vector.extract_strided_slice %311 {offsets = [0, 0], sizes = [16, 32], strides = [1, 1]} : vector<32x32xf32> to vector<16x32xf32>
      %c0_123 = arith.constant 0 : index
      %c0_124 = arith.constant 0 : index
      %c0_125 = arith.constant 0 : index
      %313 = vector.load %arg24[%c0_123, %c0_124, %c0_125] : memref<2x16x32xf32, #tpu.memory_space<vmem>>, vector<1x16x32xf32>
      %314 = vector.shape_cast %313 : vector<1x16x32xf32> to vector<16x32xf32>
      %315 = vector.shape_cast %312 : vector<16x32xf32> to vector<1x16x32xf32>
      tpu.vector_store %arg24[%c0_123, %c0_124, %c0_125], %315 {strides = array<i32>} : memref<2x16x32xf32, #tpu.memory_space<vmem>>, vector<1x16x32xf32>,
      %316 = vector.extract_strided_slice %311 {offsets = [16, 0], sizes = [16, 32], strides = [1, 1]} : vector<32x32xf32> to vector<16x32xf32>
      %c1 = arith.constant 1 : index
      %c0_126 = arith.constant 0 : index
      %c0_127 = arith.constant 0 : index
      %317 = vector.load %arg24[%c1, %c0_126, %c0_127] : memref<2x16x32xf32, #tpu.memory_space<vmem>>, vector<1x16x32xf32>
      %318 = vector.shape_cast %317 : vector<1x16x32xf32> to vector<16x32xf32>
      %319 = vector.shape_cast %316 : vector<16x32xf32> to vector<1x16x32xf32>
      tpu.vector_store %arg24[%c1, %c0_126, %c0_127], %319 {strides = array<i32>} : memref<2x16x32xf32, #tpu.memory_space<vmem>>, vector<1x16x32xf32>,
    } else {
    }
    return
  }
  func.func @transform_0(%arg0: i32, %arg1: i32) -> (i32, i32, i32) {
    %c0_i32 = arith.constant 0 : i32
    %c0_i32_0 = arith.constant 0 : i32
    %c0_i32_1 = arith.constant 0 : i32
    return %arg0, %c0_i32, %c0_i32_0 : i32, i32, i32
  }
  func.func @transform_1(%arg0: i32, %arg1: i32) -> (i32, i32, i32) {
    %c0_i32 = arith.constant 0 : i32
    %c0_i32_0 = arith.constant 0 : i32
    %c0_i32_1 = arith.constant 0 : i32
    return %arg0, %c0_i32, %c0_i32_0 : i32, i32, i32
  }
  func.func @transform_2(%arg0: i32, %arg1: i32) -> (i32, i32) {
    %c0_i32 = arith.constant 0 : i32
    %c0_i32_0 = arith.constant 0 : i32
    %c0_i32_1 = arith.constant 0 : i32
    return %c0_i32, %c0_i32_0 : i32, i32
  }
  func.func @transform_3(%arg0: i32, %arg1: i32) -> (i32, i32) {
    %c0_i32 = arith.constant 0 : i32
    %c0_i32_0 = arith.constant 0 : i32
    %c0_i32_1 = arith.constant 0 : i32
    return %c0_i32, %c0_i32_0 : i32, i32
  }
  func.func @transform_4(%arg0: i32, %arg1: i32) -> (i32, i32) {
    %c0_i32 = arith.constant 0 : i32
    %c0_i32_0 = arith.constant 0 : i32
    %c0_i32_1 = arith.constant 0 : i32
    return %c0_i32, %c0_i32_0 : i32, i32
  }
  func.func @transform_5(%arg0: i32, %arg1: i32) -> (i32, i32) {
    %c0_i32 = arith.constant 0 : i32
    %c0_i32_0 = arith.constant 0 : i32
    %c0_i32_1 = arith.constant 0 : i32
    return %c0_i32, %c0_i32_0 : i32, i32
  }
  func.func @transform_6(%arg0: i32, %arg1: i32) -> (i32, i32) {
    %c0_i32 = arith.constant 0 : i32
    %c0_i32_0 = arith.constant 0 : i32
    %c0_i32_1 = arith.constant 0 : i32
    return %c0_i32, %c0_i32_0 : i32, i32
  }
  func.func @transform_7(%arg0: i32, %arg1: i32) -> (i32, i32) {
    %c0_i32 = arith.constant 0 : i32
    %c0_i32_0 = arith.constant 0 : i32
    %c0_i32_1 = arith.constant 0 : i32
    return %c0_i32, %c0_i32_0 : i32, i32
  }
  func.func @transform_8(%arg0: i32, %arg1: i32) -> (i32, i32, i32) {
    %c0_i32 = arith.constant 0 : i32
    %c0_i32_0 = arith.constant 0 : i32
    %c0_i32_1 = arith.constant 0 : i32
    return %arg1, %c0_i32, %c0_i32_0 : i32, i32, i32
  }
  func.func @transform_9(%arg0: i32, %arg1: i32) -> (i32, i32, i32) {
    %c0_i32 = arith.constant 0 : i32
    %c0_i32_0 = arith.constant 0 : i32
    %c0_i32_1 = arith.constant 0 : i32
    return %arg1, %c0_i32, %c0_i32_0 : i32, i32, i32
  }
  func.func @transform_10(%arg0: i32, %arg1: i32) -> (i32, i32, i32) {
    %c0_i32 = arith.constant 0 : i32
    %c0_i32_0 = arith.constant 0 : i32
    %c0_i32_1 = arith.constant 0 : i32
    return %arg1, %c0_i32, %c0_i32_0 : i32, i32, i32
  }
  func.func @transform_11(%arg0: i32, %arg1: i32) -> (i32, i32, i32) {
    %c0_i32 = arith.constant 0 : i32
    %c0_i32_0 = arith.constant 0 : i32
    %c0_i32_1 = arith.constant 0 : i32
    return %arg1, %c0_i32, %c0_i32_0 : i32, i32, i32
  }
  func.func @transform_12(%arg0: i32, %arg1: i32) -> (i32, i32, i32) {
    %c0_i32 = arith.constant 0 : i32
    %c0_i32_0 = arith.constant 0 : i32
    %c0_i32_1 = arith.constant 0 : i32
    return %arg1, %c0_i32, %c0_i32_0 : i32, i32, i32
  }
  func.func @transform_13(%arg0: i32, %arg1: i32) -> (i32, i32, i32) {
    %c0_i32 = arith.constant 0 : i32
    %c0_i32_0 = arith.constant 0 : i32
    %c0_i32_1 = arith.constant 0 : i32
    return %arg1, %c0_i32, %c0_i32_0 : i32, i32, i32
  }
  func.func @transform_14(%arg0: i32, %arg1: i32) -> (i32, i32, i32) {
    %c0_i32 = arith.constant 0 : i32
    %c0_i32_0 = arith.constant 0 : i32
    %c0_i32_1 = arith.constant 0 : i32
    return %arg1, %c0_i32, %c0_i32_0 : i32, i32, i32
  }
  func.func @transform_15(%arg0: i32, %arg1: i32) -> (i32, i32, i32) {
    %c0_i32 = arith.constant 0 : i32
    %c0_i32_0 = arith.constant 0 : i32
    %c0_i32_1 = arith.constant 0 : i32
    return %arg1, %c0_i32, %c0_i32_0 : i32, i32, i32
  }
  func.func @transform_16(%arg0: i32, %arg1: i32) -> (i32, i32, i32) {
    %c0_i32 = arith.constant 0 : i32
    %c0_i32_0 = arith.constant 0 : i32
    %c0_i32_1 = arith.constant 0 : i32
    return %arg1, %c0_i32, %c0_i32_0 : i32, i32, i32
  }
  func.func @transform_17(%arg0: i32, %arg1: i32) -> (i32, i32, i32) {
    %c0_i32 = arith.constant 0 : i32
    %c0_i32_0 = arith.constant 0 : i32
    %c0_i32_1 = arith.constant 0 : i32
    return %arg1, %c0_i32, %c0_i32_0 : i32, i32, i32
  }
  func.func @transform_18(%arg0: i32, %arg1: i32) -> (i32, i32, i32) {
    %c0_i32 = arith.constant 0 : i32
    %c0_i32_0 = arith.constant 0 : i32
    %c0_i32_1 = arith.constant 0 : i32
    return %arg1, %c0_i32, %c0_i32_0 : i32, i32, i32
  }
  func.func @transform_19(%arg0: i32, %arg1: i32) -> (i32, i32, i32) {
    %c0_i32 = arith.constant 0 : i32
    %c0_i32_0 = arith.constant 0 : i32
    %c0_i32_1 = arith.constant 0 : i32
    return %arg1, %c0_i32, %c0_i32_0 : i32, i32, i32
  }
  func.func @transform_20(%arg0: i32, %arg1: i32) -> (i32, i32) {
    %c0_i32 = arith.constant 0 : i32
    %c0_i32_0 = arith.constant 0 : i32
    %c0_i32_1 = arith.constant 0 : i32
    return %c0_i32, %c0_i32_0 : i32, i32
  }
  func.func @transform_21(%arg0: i32, %arg1: i32) -> (i32, i32) {
    %c0_i32 = arith.constant 0 : i32
    %c0_i32_0 = arith.constant 0 : i32
    %c0_i32_1 = arith.constant 0 : i32
    return %c0_i32, %c0_i32_0 : i32, i32
  }
  func.func @transform_22(%arg0: i32, %arg1: i32) -> (i32, i32, i32) {
    %c0_i32 = arith.constant 0 : i32
    %c0_i32_0 = arith.constant 0 : i32
    %c0_i32_1 = arith.constant 0 : i32
    return %arg0, %c0_i32, %c0_i32_0 : i32, i32, i32
  }
}

</mosaic_0001>

<llo_original>
// kernel: tpu_custom_call.1
$region0: #{tpu_custom_call.1}
  #allocation0 [shape = 'u32[]', space=smem, size = 0x4, offset = 0x4, fixed_abs, tag = 'smem constant byte address 0x4 - core index']
  #allocation1 [shape = 'u32[72,128]{1,0:T(1,128)}', space=vmem, size = 0x9000, scoped, tag = 'internal scratch']
  #allocation2 [shape = 'f32[32,32]{1,0:T(8,128)}', space=vmem, size = 0x4000, scoped, tag = 'scratch operand']
  #allocation3 [shape = 'f32[32,32]{1,0:T(8,128)}', space=vmem, size = 0x4000, scoped, tag = 'scratch operand']
  %s0 = inlined_call_operand.vmem [shape: f32[4,8,32], index: 0, kind: input, shape index: {}]
  %s1 = inlined_call_operand.vmem [shape: f32[4,8,8], index: 1, kind: input, shape index: {}]
  %s2 = inlined_call_operand.vmem [shape: f32[8,32], index: 2, kind: input, shape index: {}]
  %s3 = inlined_call_operand.vmem [shape: f32[16,8], index: 3, kind: input, shape index: {}]
  %s4 = inlined_call_operand.vmem [shape: f32[16,8], index: 4, kind: input, shape index: {}]
  %s5 = inlined_call_operand.vmem [shape: f32[16,16], index: 5, kind: input, shape index: {}]
  %s6 = inlined_call_operand.hbm [shape: bf16[8,32], index: 6, kind: input, shape index: {}]
  %s7 = inlined_call_operand.hbm [shape: f32[1,32], index: 7, kind: input, shape index: {}]
  %s8 = inlined_call_operand.hbm [shape: f32[2,1,32], index: 8, kind: input, shape index: {}]
  %s9 = inlined_call_operand.hbm [shape: f32[2,1,32], index: 9, kind: input, shape index: {}]
  %s10 = inlined_call_operand.vmem [shape: bf16[2,32,96], index: 10, kind: input, shape index: {}]
  %s11 = inlined_call_operand.hbm [shape: f32[2,1,96], index: 11, kind: input, shape index: {}]
  %s12 = inlined_call_operand.vmem [shape: f32[2,32,32], index: 12, kind: input, shape index: {}]
  %s13 = inlined_call_operand.hbm [shape: f32[2,1,32], index: 13, kind: input, shape index: {}]
  %s14 = inlined_call_operand.hbm [shape: f32[2,1,32], index: 14, kind: input, shape index: {}]
  %s15 = inlined_call_operand.hbm [shape: f32[2,1,32], index: 15, kind: input, shape index: {}]
  %s16 = inlined_call_operand.hbm [shape: bf16[2,32,128], index: 16, kind: input, shape index: {}]
  %s17 = inlined_call_operand.hbm [shape: f32[2,1,128], index: 17, kind: input, shape index: {}]
  %s18 = inlined_call_operand.vmem [shape: bf16[2,128,32], index: 18, kind: input, shape index: {}]
  %s19 = inlined_call_operand.hbm [shape: f32[2,1,32], index: 19, kind: input, shape index: {}]
  %s20 = inlined_call_operand.vmem [shape: f32[1,32], index: 20, kind: input, shape index: {}]
  %s21 = inlined_call_operand.vmem [shape: f32[1,32], index: 21, kind: input, shape index: {}]
  %s22 = inlined_call_operand.hbm [shape: f32[4,16,32], index: 22, kind: output, shape index: {}]
  %s23 = sld [smem:[#allocation0]]
  $region173: #{tpu_custom_call.1} parent=0
    _
  %s25 = ssub.s32 1, %s23
  %s26 = scalar_select 0, %s25, %s23
  $region1: #{tpu_custom_call.1} parent=0
    #allocation4 [shape = 'u8[2048]{0}', space=vmem, size = 0x800, scoped, tag = 'input window, operand 6, single buffered']
    #allocation5 [shape = 's32[2]{0}', space=sflag, size = 0x8, scoped, tag = 'scoped memory for tpu_custom_call.1']
    #allocation6 [shape = 's32[2]{0}', space=sflag, size = 0x8, scoped, tag = 'scoped memory for tpu_custom_call.1']
    #allocation7 [shape = 'u8[512]{0}', space=vmem, size = 0x400, scoped, tag = 'input window, operand 7, single buffered']
    #allocation8 [shape = 's32[1]{0}', space=sflag, size = 0x4, scoped, tag = 'scoped memory for tpu_custom_call.1']
    #allocation9 [shape = 'u8[1024]{0}', space=vmem, size = 0x400, scoped, tag = 'input window, operand 8']
    #allocation10 [shape = 'u8[1024]{0}', space=vmem, size = 0x400, scoped, tag = 'input window, operand 9']
    #allocation11 [shape = 'u8[1024]{0}', space=vmem, size = 0x400, scoped, tag = 'input window, operand 11']
    #allocation12 [shape = 'u8[1024]{0}', space=vmem, size = 0x400, scoped, tag = 'input window, operand 13']
    #allocation13 [shape = 'u8[1024]{0}', space=vmem, size = 0x400, scoped, tag = 'input window, operand 14']
    #allocation14 [shape = 'u8[1024]{0}', space=vmem, size = 0x400, scoped, tag = 'input window, operand 15']
    #allocation15 [shape = 'u8[16384]{0}', space=vmem, size = 0x4000, scoped, tag = 'input window, operand 16']
    #allocation16 [shape = 'u8[1024]{0}', space=vmem, size = 0x400, scoped, tag = 'input window, operand 17']
    #allocation17 [shape = 'u8[1024]{0}', space=vmem, size = 0x400, scoped, tag = 'input window, operand 19']
    #allocation18 [shape = 'u8[32768]{0}', space=vmem, size = 0x8000, scoped, tag = 'output window, operand 0']
    %27 = vsyncpa [#allocation5], 0
    %28 = vsyncpa [#allocation8], 0
    %29 = vsyncpa [#allocation6], 0
    %s30 = scalar_lea.sflag [#allocation6], 1
    %31 = vsyncpa %s30, 0
    loop: start=0, step=1, limit=6
    $region2: #{tpu_custom_call.1} parent=1 // loop_pre_header
      _
    $region3: #{tpu_custom_call.1} parent=1 // loop_header
      %s33 = sphi 0, %s37
      %p34 = scmp.ge.s32.totalorder %s33, 6
      %s40 = sphi 0, %s52
      %s41 = sphi 0, %s48
      %s42 = sphi 0, %s40
      %s43 = sphi 0, %s41
      %s44 = sphi 0, %s42
      %s45 = sphi 0, %s43
      %s55 = sphi 0, %s57
      %s58 = sphi 0, %s55
      %s59 = sphi 0, %s58
      %s75 = sphi 0, %s59
      %s81 = sphi 0, %s83
      %s84 = sphi 0, %s81
      %s85 = sphi 0, %s84
      %s101 = sphi 0, %s85
      %s105 = sphi 0, %s105
      %s107 = sphi 0, %s105
      %s108 = sphi 0, %s107
      %s122 = sphi 0, %s108
      %s126 = sphi 0, %s126
      %s128 = sphi 0, %s126
      %s129 = sphi 0, %s128
      %s143 = sphi 0, %s129
      %s147 = sphi 0, %s147
      %s149 = sphi 0, %s147
      %s150 = sphi 0, %s149
      %s164 = sphi 0, %s150
      %s168 = sphi 0, %s168
      %s170 = sphi 0, %s168
      %s171 = sphi 0, %s170
      %s185 = sphi 0, %s171
      %s189 = sphi 0, %s189
      %s191 = sphi 0, %s189
      %s192 = sphi 0, %s191
      %s206 = sphi 0, %s192
      %s210 = sphi 0, %s210
      %s212 = sphi 0, %s210
      %s213 = sphi 0, %s212
      %s227 = sphi 0, %s213
      %s233 = sphi 0, %s235
      %s236 = sphi 0, %s233
      %s237 = sphi 0, %s236
      %s253 = sphi 0, %s237
      %s259 = sphi 0, %s261
      %s262 = sphi 0, %s259
      %s263 = sphi 0, %s262
      %s279 = sphi 0, %s263
      %s285 = sphi 0, %s287
      %s288 = sphi 0, %s285
      %s289 = sphi 0, %s288
      %s305 = sphi 0, %s289
      %s311 = sphi 0, %s313
      %s314 = sphi 0, %s311
      %s315 = sphi 0, %s314
      %s331 = sphi 0, %s315
      %s337 = sphi 0, %s339
      %s340 = sphi 0, %s337
      %s341 = sphi 0, %s340
      %s357 = sphi 0, %s341
      %s363 = sphi 0, %s365
      %s366 = sphi 0, %s363
      %s367 = sphi 0, %s366
      %s383 = sphi 0, %s367
      %s389 = sphi 0, %s391
      %s392 = sphi 0, %s389
      %s393 = sphi 0, %s392
      %s409 = sphi 0, %s393
      %s415 = sphi 0, %s417
      %s418 = sphi 0, %s415
      %s419 = sphi 0, %s418
      %s435 = sphi 0, %s419
      %s441 = sphi 0, %s443
      %s444 = sphi 0, %s441
      %s445 = sphi 0, %s444
      %s461 = sphi 0, %s445
      %s467 = sphi 0, %s469
      %s470 = sphi 0, %s467
      %s471 = sphi 0, %s470
      %s487 = sphi 0, %s471
      %s493 = sphi 0, %s495
      %s496 = sphi 0, %s493
      %s497 = sphi 0, %s496
      %s513 = sphi 0, %s497
      %s519 = sphi 0, %s521
      %s522 = sphi 0, %s519
      %s523 = sphi 0, %s522
      %s539 = sphi 0, %s523
      %s543 = sphi 0, %s543
      %s545 = sphi 0, %s543
      %s546 = sphi 0, %s545
      %s560 = sphi 0, %s546
      %s564 = sphi 0, %s564
      %s566 = sphi 0, %s564
      %s567 = sphi 0, %s566
      %s581 = sphi 0, %s567
      %s587 = sphi 0, %s589
      %s590 = sphi 0, %s587
      %s591 = sphi 0, %s590
      %s607 = sphi 0, %s591
    $region4: #{tpu_custom_call.1} parent=1 // loop_header_branch
      %36 = sbr.rel (%p34) target = $region8
    $region5: #{tpu_custom_call.1} parent=1 // loop_body
      %s38 = ssub.s32 %s33, 1
      %s39 = ssub.s32 %s33, 2
      %s46 = sadd.s32 1, %s41
      %p47 = scmp.ge.s32.totalorder %s46, 2
      %s48 = scalar_select %p47, 0, %s46
      %s49 = sadd.s32 1, %s40
      %s50 = scalar_select %p47, %s49, %s40
      %p51 = scmp.ge.s32.totalorder %s50, 2
      %s52 = scalar_select %p51, 0, %s50
      %s53 = ssub.s32 %s40, %s52
      %p54 = scmp.eq.s32.totalorder %s53, 0
      %s56 = sadd.s32 %s55, 1
      %s57 = scalar_select %p54, %s55, %s56
      %p60 = pneg %p54
      %p61 = scmp.eq.s32.totalorder %s33, 3
      %p62 = por %p60, %p61
      %p63 = scmp.ne.s32.totalorder %s55, %s58
      %p64 = scmp.eq.s32.totalorder %s33, 0
      %p65 = por %p63, %p64
      %p66 = scmp.ne.s32.totalorder %s55, %s58
      %p67 = scmp.eq.s32.totalorder %s38, 3
      %p68 = por %p66, %p67
      %p69 = scmp.ne.s32.totalorder %s58, %s59
      %p70 = scmp.eq.s32.totalorder %s38, 0
      %p71 = por %p69, %p70
      %p72 = scmp.ne.s32.totalorder %s58, %s59
      %p73 = scmp.eq.s32.totalorder %s39, 3
      %p74 = por %p72, %p73
      %p76 = scmp.ne.s32.totalorder %s59, %s75
      %p77 = scmp.eq.s32.totalorder %s39, 0
      %p78 = por %p76, %p77
      %s79 = ssub.s32 %s40, %s52
      %p80 = scmp.eq.s32.totalorder %s79, 0
      %s82 = sadd.s32 %s81, 1
      %s83 = scalar_select %p80, %s81, %s82
      %p86 = pneg %p80
      %p87 = scmp.eq.s32.totalorder %s33, 3
      %p88 = por %p86, %p87
      %p89 = scmp.ne.s32.totalorder %s81, %s84
      %p90 = scmp.eq.s32.totalorder %s33, 0
      %p91 = por %p89, %p90
      %p92 = scmp.ne.s32.totalorder %s81, %s84
      %p93 = scmp.eq.s32.totalorder %s38, 3
      %p94 = por %p92, %p93
      %p95 = scmp.ne.s32.totalorder %s84, %s85
      %p96 = scmp.eq.s32.totalorder %s38, 0
      %p97 = por %p95, %p96
      %p98 = scmp.ne.s32.totalorder %s84, %s85
      %p99 = scmp.eq.s32.totalorder %s39, 3
      %p100 = por %p98, %p99
      %p102 = scmp.ne.s32.totalorder %s85, %s101
      %p103 = scmp.eq.s32.totalorder %s39, 0
      %p104 = por %p102, %p103
      %s106 = sadd.s32 %s105, 1
      %p109 = scmp.eq.s32.totalorder %s33, 3
      %p110 = scmp.ne.s32.totalorder %s105, %s107
      %p111 = scmp.eq.s32.totalorder %s33, 0
      %p112 = por %p110, %p111
      %p113 = scmp.ne.s32.totalorder %s105, %s107
      %p114 = scmp.eq.s32.totalorder %s38, 3
      %p115 = por %p113, %p114
      %p116 = scmp.ne.s32.totalorder %s107, %s108
      %p117 = scmp.eq.s32.totalorder %s38, 0
      %p118 = por %p116, %p117
      %p119 = scmp.ne.s32.totalorder %s107, %s108
      %p120 = scmp.eq.s32.totalorder %s39, 3
      %p121 = por %p119, %p120
      %p123 = scmp.ne.s32.totalorder %s108, %s122
      %p124 = scmp.eq.s32.totalorder %s39, 0
      %p125 = por %p123, %p124
      %s127 = sadd.s32 %s126, 1
      %p130 = scmp.eq.s32.totalorder %s33, 3
      %p131 = scmp.ne.s32.totalorder %s126, %s128
      %p132 = scmp.eq.s32.totalorder %s33, 0
      %p133 = por %p131, %p132
      %p134 = scmp.ne.s32.totalorder %s126, %s128
      %p135 = scmp.eq.s32.totalorder %s38, 3
      %p136 = por %p134, %p135
      %p137 = scmp.ne.s32.totalorder %s128, %s129
      %p138 = scmp.eq.s32.totalorder %s38, 0
      %p139 = por %p137, %p138
      %p140 = scmp.ne.s32.totalorder %s128, %s129
      %p141 = scmp.eq.s32.totalorder %s39, 3
      %p142 = por %p140, %p141
      %p144 = scmp.ne.s32.totalorder %s129, %s143
      %p145 = scmp.eq.s32.totalorder %s39, 0
      %p146 = por %p144, %p145
      %s148 = sadd.s32 %s147, 1
      %p151 = scmp.eq.s32.totalorder %s33, 3
      %p152 = scmp.ne.s32.totalorder %s147, %s149
      %p153 = scmp.eq.s32.totalorder %s33, 0
      %p154 = por %p152, %p153
      %p155 = scmp.ne.s32.totalorder %s147, %s149
      %p156 = scmp.eq.s32.totalorder %s38, 3
      %p157 = por %p155, %p156
      %p158 = scmp.ne.s32.totalorder %s149, %s150
      %p159 = scmp.eq.s32.totalorder %s38, 0
      %p160 = por %p158, %p159
      %p161 = scmp.ne.s32.totalorder %s149, %s150
      %p162 = scmp.eq.s32.totalorder %s39, 3
      %p163 = por %p161, %p162
      %p165 = scmp.ne.s32.totalorder %s150, %s164
      %p166 = scmp.eq.s32.totalorder %s39, 0
      %p167 = por %p165, %p166
      %s169 = sadd.s32 %s168, 1
      %p172 = scmp.eq.s32.totalorder %s33, 3
      %p173 = scmp.ne.s32.totalorder %s168, %s170
      %p174 = scmp.eq.s32.totalorder %s33, 0
      %p175 = por %p173, %p174
      %p176 = scmp.ne.s32.totalorder %s168, %s170
      %p177 = scmp.eq.s32.totalorder %s38, 3
      %p178 = por %p176, %p177
      %p179 = scmp.ne.s32.totalorder %s170, %s171
      %p180 = scmp.eq.s32.totalorder %s38, 0
      %p181 = por %p179, %p180
      %p182 = scmp.ne.s32.totalorder %s170, %s171
      %p183 = scmp.eq.s32.totalorder %s39, 3
      %p184 = por %p182, %p183
      %p186 = scmp.ne.s32.totalorder %s171, %s185
      %p187 = scmp.eq.s32.totalorder %s39, 0
      %p188 = por %p186, %p187
      %s190 = sadd.s32 %s189, 1
      %p193 = scmp.eq.s32.totalorder %s33, 3
      %p194 = scmp.ne.s32.totalorder %s189, %s191
      %p195 = scmp.eq.s32.totalorder %s33, 0
      %p196 = por %p194, %p195
      %p197 = scmp.ne.s32.totalorder %s189, %s191
      %p198 = scmp.eq.s32.totalorder %s38, 3
      %p199 = por %p197, %p198
      %p200 = scmp.ne.s32.totalorder %s191, %s192
      %p201 = scmp.eq.s32.totalorder %s38, 0
      %p202 = por %p200, %p201
      %p203 = scmp.ne.s32.totalorder %s191, %s192
      %p204 = scmp.eq.s32.totalorder %s39, 3
      %p205 = por %p203, %p204
      %p207 = scmp.ne.s32.totalorder %s192, %s206
      %p208 = scmp.eq.s32.totalorder %s39, 0
      %p209 = por %p207, %p208
      %s211 = sadd.s32 %s210, 1
      %p214 = scmp.eq.s32.totalorder %s33, 3
      %p215 = scmp.ne.s32.totalorder %s210, %s212
      %p216 = scmp.eq.s32.totalorder %s33, 0
      %p217 = por %p215, %p216
      %p218 = scmp.ne.s32.totalorder %s210, %s212
      %p219 = scmp.eq.s32.totalorder %s38, 3
      %p220 = por %p218, %p219
      %p221 = scmp.ne.s32.totalorder %s212, %s213
      %p222 = scmp.eq.s32.totalorder %s38, 0
      %p223 = por %p221, %p222
      %p224 = scmp.ne.s32.totalorder %s212, %s213
      %p225 = scmp.eq.s32.totalorder %s39, 3
      %p226 = por %p224, %p225
      %p228 = scmp.ne.s32.totalorder %s213, %s227
      %p229 = scmp.eq.s32.totalorder %s39, 0
      %p230 = por %p228, %p229
      %s231 = ssub.s32 %s41, %s48
      %p232 = scmp.eq.s32.totalorder %s231, 0
      %s234 = sadd.s32 %s233, 1
      %s235 = scalar_select %p232, %s233, %s234
      %p238 = pneg %p232
      %p239 = scmp.eq.s32.totalorder %s33, 3
      %p240 = por %p238, %p239
      %p241 = scmp.ne.s32.totalorder %s233, %s236
      %p242 = scmp.eq.s32.totalorder %s33, 0
      %p243 = por %p241, %p242
      %p244 = scmp.ne.s32.totalorder %s233, %s236
      %p245 = scmp.eq.s32.totalorder %s38, 3
      %p246 = por %p244, %p245
      %p247 = scmp.ne.s32.totalorder %s236, %s237
      %p248 = scmp.eq.s32.totalorder %s38, 0
      %p249 = por %p247, %p248
      %p250 = scmp.ne.s32.totalorder %s236, %s237
      %p251 = scmp.eq.s32.totalorder %s39, 3
      %p252 = por %p250, %p251
      %p254 = scmp.ne.s32.totalorder %s237, %s253
      %p255 = scmp.eq.s32.totalorder %s39, 0
      %p256 = por %p254, %p255
      %s257 = ssub.s32 %s41, %s48
      %p258 = scmp.eq.s32.totalorder %s257, 0
      %s260 = sadd.s32 %s259, 1
      %s261 = scalar_select %p258, %s259, %s260
      %p264 = pneg %p258
      %p265 = scmp.eq.s32.totalorder %s33, 3
      %p266 = por %p264, %p265
      %p267 = scmp.ne.s32.totalorder %s259, %s262
      %p268 = scmp.eq.s32.totalorder %s33, 0
      %p269 = por %p267, %p268
      %p270 = scmp.ne.s32.totalorder %s259, %s262
      %p271 = scmp.eq.s32.totalorder %s38, 3
      %p272 = por %p270, %p271
      %p273 = scmp.ne.s32.totalorder %s262, %s263
      %p274 = scmp.eq.s32.totalorder %s38, 0
      %p275 = por %p273, %p274
      %p276 = scmp.ne.s32.totalorder %s262, %s263
      %p277 = scmp.eq.s32.totalorder %s39, 3
      %p278 = por %p276, %p277
      %p280 = scmp.ne.s32.totalorder %s263, %s279
      %p281 = scmp.eq.s32.totalorder %s39, 0
      %p282 = por %p280, %p281
      %s283 = ssub.s32 %s41, %s48
      %p284 = scmp.eq.s32.totalorder %s283, 0
      %s286 = sadd.s32 %s285, 1
      %s287 = scalar_select %p284, %s285, %s286
      %p290 = pneg %p284
      %p291 = scmp.eq.s32.totalorder %s33, 3
      %p292 = por %p290, %p291
      %p293 = scmp.ne.s32.totalorder %s285, %s288
      %p294 = scmp.eq.s32.totalorder %s33, 0
      %p295 = por %p293, %p294
      %p296 = scmp.ne.s32.totalorder %s285, %s288
      %p297 = scmp.eq.s32.totalorder %s38, 3
      %p298 = por %p296, %p297
      %p299 = scmp.ne.s32.totalorder %s288, %s289
      %p300 = scmp.eq.s32.totalorder %s38, 0
      %p301 = por %p299, %p300
      %p302 = scmp.ne.s32.totalorder %s288, %s289
      %p303 = scmp.eq.s32.totalorder %s39, 3
      %p304 = por %p302, %p303
      %p306 = scmp.ne.s32.totalorder %s289, %s305
      %p307 = scmp.eq.s32.totalorder %s39, 0
      %p308 = por %p306, %p307
      %s309 = ssub.s32 %s41, %s48
      %p310 = scmp.eq.s32.totalorder %s309, 0
      %s312 = sadd.s32 %s311, 1
      %s313 = scalar_select %p310, %s311, %s312
      %p316 = pneg %p310
      %p317 = scmp.eq.s32.totalorder %s33, 3
      %p318 = por %p316, %p317
      %p319 = scmp.ne.s32.totalorder %s311, %s314
      %p320 = scmp.eq.s32.totalorder %s33, 0
      %p321 = por %p319, %p320
      %p322 = scmp.ne.s32.totalorder %s311, %s314
      %p323 = scmp.eq.s32.totalorder %s38, 3
      %p324 = por %p322, %p323
      %p325 = scmp.ne.s32.totalorder %s314, %s315
      %p326 = scmp.eq.s32.totalorder %s38, 0
      %p327 = por %p325, %p326
      %p328 = scmp.ne.s32.totalorder %s314, %s315
      %p329 = scmp.eq.s32.totalorder %s39, 3
      %p330 = por %p328, %p329
      %p332 = scmp.ne.s32.totalorder %s315, %s331
      %p333 = scmp.eq.s32.totalorder %s39, 0
      %p334 = por %p332, %p333
      %s335 = ssub.s32 %s41, %s48
      %p336 = scmp.eq.s32.totalorder %s335, 0
      %s338 = sadd.s32 %s337, 1
      %s339 = scalar_select %p336, %s337, %s338
      %p342 = pneg %p336
      %p343 = scmp.eq.s32.totalorder %s33, 3
      %p344 = por %p342, %p343
      %p345 = scmp.ne.s32.totalorder %s337, %s340
      %p346 = scmp.eq.s32.totalorder %s33, 0
      %p347 = por %p345, %p346
      %p348 = scmp.ne.s32.totalorder %s337, %s340
      %p349 = scmp.eq.s32.totalorder %s38, 3
      %p350 = por %p348, %p349
      %p351 = scmp.ne.s32.totalorder %s340, %s341
      %p352 = scmp.eq.s32.totalorder %s38, 0
      %p353 = por %p351, %p352
      %p354 = scmp.ne.s32.totalorder %s340, %s341
      %p355 = scmp.eq.s32.totalorder %s39, 3
      %p356 = por %p354, %p355
      %p358 = scmp.ne.s32.totalorder %s341, %s357
      %p359 = scmp.eq.s32.totalorder %s39, 0
      %p360 = por %p358, %p359
      %s361 = ssub.s32 %s41, %s48
      %p362 = scmp.eq.s32.totalorder %s361, 0
      %s364 = sadd.s32 %s363, 1
      %s365 = scalar_select %p362, %s363, %s364
      %p368 = pneg %p362
      %p369 = scmp.eq.s32.totalorder %s33, 3
      %p370 = por %p368, %p369
      %p371 = scmp.ne.s32.totalorder %s363, %s366
      %p372 = scmp.eq.s32.totalorder %s33, 0
      %p373 = por %p371, %p372
      %p374 = scmp.ne.s32.totalorder %s363, %s366
      %p375 = scmp.eq.s32.totalorder %s38, 3
      %p376 = por %p374, %p375
      %p377 = scmp.ne.s32.totalorder %s366, %s367
      %p378 = scmp.eq.s32.totalorder %s38, 0
      %p379 = por %p377, %p378
      %p380 = scmp.ne.s32.totalorder %s366, %s367
      %p381 = scmp.eq.s32.totalorder %s39, 3
      %p382 = por %p380, %p381
      %p384 = scmp.ne.s32.totalorder %s367, %s383
      %p385 = scmp.eq.s32.totalorder %s39, 0
      %p386 = por %p384, %p385
      %s387 = ssub.s32 %s41, %s48
      %p388 = scmp.eq.s32.totalorder %s387, 0
      %s390 = sadd.s32 %s389, 1
      %s391 = scalar_select %p388, %s389, %s390
      %p394 = pneg %p388
      %p395 = scmp.eq.s32.totalorder %s33, 3
      %p396 = por %p394, %p395
      %p397 = scmp.ne.s32.totalorder %s389, %s392
      %p398 = scmp.eq.s32.totalorder %s33, 0
      %p399 = por %p397, %p398
      %p400 = scmp.ne.s32.totalorder %s389, %s392
      %p401 = scmp.eq.s32.totalorder %s38, 3
      %p402 = por %p400, %p401
      %p403 = scmp.ne.s32.totalorder %s392, %s393
      %p404 = scmp.eq.s32.totalorder %s38, 0
      %p405 = por %p403, %p404
      %p406 = scmp.ne.s32.totalorder %s392, %s393
      %p407 = scmp.eq.s32.totalorder %s39, 3
      %p408 = por %p406, %p407
      %p410 = scmp.ne.s32.totalorder %s393, %s409
      %p411 = scmp.eq.s32.totalorder %s39, 0
      %p412 = por %p410, %p411
      %s413 = ssub.s32 %s41, %s48
      %p414 = scmp.eq.s32.totalorder %s413, 0
      %s416 = sadd.s32 %s415, 1
      %s417 = scalar_select %p414, %s415, %s416
      %p420 = pneg %p414
      %p421 = scmp.eq.s32.totalorder %s33, 3
      %p422 = por %p420, %p421
      %p423 = scmp.ne.s32.totalorder %s415, %s418
      %p424 = scmp.eq.s32.totalorder %s33, 0
      %p425 = por %p423, %p424
      %p426 = scmp.ne.s32.totalorder %s415, %s418
      %p427 = scmp.eq.s32.totalorder %s38, 3
      %p428 = por %p426, %p427
      %p429 = scmp.ne.s32.totalorder %s418, %s419
      %p430 = scmp.eq.s32.totalorder %s38, 0
      %p431 = por %p429, %p430
      %p432 = scmp.ne.s32.totalorder %s418, %s419
      %p433 = scmp.eq.s32.totalorder %s39, 3
      %p434 = por %p432, %p433
      %p436 = scmp.ne.s32.totalorder %s419, %s435
      %p437 = scmp.eq.s32.totalorder %s39, 0
      %p438 = por %p436, %p437
      %s439 = ssub.s32 %s41, %s48
      %p440 = scmp.eq.s32.totalorder %s439, 0
      %s442 = sadd.s32 %s441, 1
      %s443 = scalar_select %p440, %s441, %s442
      %p446 = pneg %p440
      %p447 = scmp.eq.s32.totalorder %s33, 3
      %p448 = por %p446, %p447
      %p449 = scmp.ne.s32.totalorder %s441, %s444
      %p450 = scmp.eq.s32.totalorder %s33, 0
      %p451 = por %p449, %p450
      %p452 = scmp.ne.s32.totalorder %s441, %s444
      %p453 = scmp.eq.s32.totalorder %s38, 3
      %p454 = por %p452, %p453
      %p455 = scmp.ne.s32.totalorder %s444, %s445
      %p456 = scmp.eq.s32.totalorder %s38, 0
      %p457 = por %p455, %p456
      %p458 = scmp.ne.s32.totalorder %s444, %s445
      %p459 = scmp.eq.s32.totalorder %s39, 3
      %p460 = por %p458, %p459
      %p462 = scmp.ne.s32.totalorder %s445, %s461
      %p463 = scmp.eq.s32.totalorder %s39, 0
      %p464 = por %p462, %p463
      %s465 = ssub.s32 %s41, %s48
      %p466 = scmp.eq.s32.totalorder %s465, 0
      %s468 = sadd.s32 %s467, 1
      %s469 = scalar_select %p466, %s467, %s468
      %p472 = pneg %p466
      %p473 = scmp.eq.s32.totalorder %s33, 3
      %p474 = por %p472, %p473
      %p475 = scmp.ne.s32.totalorder %s467, %s470
      %p476 = scmp.eq.s32.totalorder %s33, 0
      %p477 = por %p475, %p476
      %p478 = scmp.ne.s32.totalorder %s467, %s470
      %p479 = scmp.eq.s32.totalorder %s38, 3
      %p480 = por %p478, %p479
      %p481 = scmp.ne.s32.totalorder %s470, %s471
      %p482 = scmp.eq.s32.totalorder %s38, 0
      %p483 = por %p481, %p482
      %p484 = scmp.ne.s32.totalorder %s470, %s471
      %p485 = scmp.eq.s32.totalorder %s39, 3
      %p486 = por %p484, %p485
      %p488 = scmp.ne.s32.totalorder %s471, %s487
      %p489 = scmp.eq.s32.totalorder %s39, 0
      %p490 = por %p488, %p489
      %s491 = ssub.s32 %s41, %s48
      %p492 = scmp.eq.s32.totalorder %s491, 0
      %s494 = sadd.s32 %s493, 1
      %s495 = scalar_select %p492, %s493, %s494
      %p498 = pneg %p492
      %p499 = scmp.eq.s32.totalorder %s33, 3
      %p500 = por %p498, %p499
      %p501 = scmp.ne.s32.totalorder %s493, %s496
      %p502 = scmp.eq.s32.totalorder %s33, 0
      %p503 = por %p501, %p502
      %p504 = scmp.ne.s32.totalorder %s493, %s496
      %p505 = scmp.eq.s32.totalorder %s38, 3
      %p506 = por %p504, %p505
      %p507 = scmp.ne.s32.totalorder %s496, %s497
      %p508 = scmp.eq.s32.totalorder %s38, 0
      %p509 = por %p507, %p508
      %p510 = scmp.ne.s32.totalorder %s496, %s497
      %p511 = scmp.eq.s32.totalorder %s39, 3
      %p512 = por %p510, %p511
      %p514 = scmp.ne.s32.totalorder %s497, %s513
      %p515 = scmp.eq.s32.totalorder %s39, 0
      %p516 = por %p514, %p515
      %s517 = ssub.s32 %s41, %s48
      %p518 = scmp.eq.s32.totalorder %s517, 0
      %s520 = sadd.s32 %s519, 1
      %s521 = scalar_select %p518, %s519, %s520
      %p524 = pneg %p518
      %p525 = scmp.eq.s32.totalorder %s33, 3
      %p526 = por %p524, %p525
      %p527 = scmp.ne.s32.totalorder %s519, %s522
      %p528 = scmp.eq.s32.totalorder %s33, 0
      %p529 = por %p527, %p528
      %p530 = scmp.ne.s32.totalorder %s519, %s522
      %p531 = scmp.eq.s32.totalorder %s38, 3
      %p532 = por %p530, %p531
      %p533 = scmp.ne.s32.totalorder %s522, %s523
      %p534 = scmp.eq.s32.totalorder %s38, 0
      %p535 = por %p533, %p534
      %p536 = scmp.ne.s32.totalorder %s522, %s523
      %p537 = scmp.eq.s32.totalorder %s39, 3
      %p538 = por %p536, %p537
      %p540 = scmp.ne.s32.totalorder %s523, %s539
      %p541 = scmp.eq.s32.totalorder %s39, 0
      %p542 = por %p540, %p541
      %s544 = sadd.s32 %s543, 1
      %p547 = scmp.eq.s32.totalorder %s33, 3
      %p548 = scmp.ne.s32.totalorder %s543, %s545
      %p549 = scmp.eq.s32.totalorder %s33, 0
      %p550 = por %p548, %p549
      %p551 = scmp.ne.s32.totalorder %s543, %s545
      %p552 = scmp.eq.s32.totalorder %s38, 3
      %p553 = por %p551, %p552
      %p554 = scmp.ne.s32.totalorder %s545, %s546
      %p555 = scmp.eq.s32.totalorder %s38, 0
      %p556 = por %p554, %p555
      %p557 = scmp.ne.s32.totalorder %s545, %s546
      %p558 = scmp.eq.s32.totalorder %s39, 3
      %p559 = por %p557, %p558
      %p561 = scmp.ne.s32.totalorder %s546, %s560
      %p562 = scmp.eq.s32.totalorder %s39, 0
      %p563 = por %p561, %p562
      %s565 = sadd.s32 %s564, 1
      %p568 = scmp.eq.s32.totalorder %s33, 3
      %p569 = scmp.ne.s32.totalorder %s564, %s566
      %p570 = scmp.eq.s32.totalorder %s33, 0
      %p571 = por %p569, %p570
      %p572 = scmp.ne.s32.totalorder %s564, %s566
      %p573 = scmp.eq.s32.totalorder %s38, 3
      %p574 = por %p572, %p573
      %p575 = scmp.ne.s32.totalorder %s566, %s567
      %p576 = scmp.eq.s32.totalorder %s38, 0
      %p577 = por %p575, %p576
      %p578 = scmp.ne.s32.totalorder %s566, %s567
      %p579 = scmp.eq.s32.totalorder %s39, 3
      %p580 = por %p578, %p579
      %p582 = scmp.ne.s32.totalorder %s567, %s581
      %p583 = scmp.eq.s32.totalorder %s39, 0
      %p584 = por %p582, %p583
      %s585 = ssub.s32 %s40, %s52
      %p586 = scmp.eq.s32.totalorder %s585, 0
      %s588 = sadd.s32 %s587, 1
      %s589 = scalar_select %p586, %s587, %s588
      %p592 = pneg %p586
      %p593 = scmp.eq.s32.totalorder %s33, 3
      %p594 = por %p592, %p593
      %p595 = scmp.ne.s32.totalorder %s587, %s590
      %p596 = scmp.eq.s32.totalorder %s33, 0
      %p597 = por %p595, %p596
      %p598 = scmp.ne.s32.totalorder %s587, %s590
      %p599 = scmp.eq.s32.totalorder %s38, 3
      %p600 = por %p598, %p599
      %p601 = scmp.ne.s32.totalorder %s590, %s591
      %p602 = scmp.eq.s32.totalorder %s38, 0
      %p603 = por %p601, %p602
      %p604 = scmp.ne.s32.totalorder %s590, %s591
      %p605 = scmp.eq.s32.totalorder %s39, 3
      %p606 = por %p604, %p605
      %p608 = scmp.ne.s32.totalorder %s591, %s607
      %p609 = scmp.eq.s32.totalorder %s39, 0
      %p610 = por %p608, %p609
      %p611 = scmp.le.s32.totalorder 1, %s33
      %p612 = scmp.lt.s32.totalorder %s33, 5
      %p613 = pnand %p611, %p612
      %p614 = pneg %p613
      // Predicated region
      $region9: #{tpu_custom_call.1} parent=5 // pred_check
        _
      $region10: #{tpu_custom_call.1} parent=5 // pred_check_branch
        %616 = sbr.rel (%p613) target = $region12
      $region11: #{tpu_custom_call.1} parent=5 // pred_region
        %s617 = ssub.s32 %s33, 1
        // Predicated region
        $region13: #{tpu_custom_call.1} parent=11 // pred_check
          %p618 = pneg %p118
        $region14: #{tpu_custom_call.1} parent=11 // pred_check_branch
          %620 = sbr.rel (%p618) target = $region16
        $region15: #{tpu_custom_call.1} parent=11 // pred_region
          _
        $region16: #{tpu_custom_call.1} parent=11 // pred_fallthru
          _
        // Predicated region
        $region17: #{tpu_custom_call.1} parent=11 // pred_check
          %p621 = pneg %p139
        $region18: #{tpu_custom_call.1} parent=11 // pred_check_branch
          %623 = sbr.rel (%p621) target = $region20
        $region19: #{tpu_custom_call.1} parent=11 // pred_region
          _
        $region20: #{tpu_custom_call.1} parent=11 // pred_fallthru
          _
        // Predicated region
        $region21: #{tpu_custom_call.1} parent=11 // pred_check
          %p624 = pneg %p160
        $region22: #{tpu_custom_call.1} parent=11 // pred_check_branch
          %626 = sbr.rel (%p624) target = $region24
        $region23: #{tpu_custom_call.1} parent=11 // pred_region
          _
        $region24: #{tpu_custom_call.1} parent=11 // pred_fallthru
          _
        // Predicated region
        $region25: #{tpu_custom_call.1} parent=11 // pred_check
          %p627 = pneg %p181
        $region26: #{tpu_custom_call.1} parent=11 // pred_check_branch
          %629 = sbr.rel (%p627) target = $region28
        $region27: #{tpu_custom_call.1} parent=11 // pred_region
          _
        $region28: #{tpu_custom_call.1} parent=11 // pred_fallthru
          _
        // Predicated region
        $region29: #{tpu_custom_call.1} parent=11 // pred_check
          %p630 = pneg %p202
        $region30: #{tpu_custom_call.1} parent=11 // pred_check_branch
          %632 = sbr.rel (%p630) target = $region32
        $region31: #{tpu_custom_call.1} parent=11 // pred_region
          %634 = vsyncadd [#allocation5], 0
          %s636 = sshll.u32 %s6, 4
          %s637 = int_to_ptr.hbm [resolvable:$true] %s636
          %s638 = sshll.u32 [#allocation4], 4
          %s639 = int_to_ptr.vmem [resolvable:$true] %s638
          %641 = dma.hbm_to_vmem [thread:$0]  %s637, 64, %s639, [#allocation5]
        $region32: #{tpu_custom_call.1} parent=11 // pred_fallthru
          _
        // Predicated region
        $region33: #{tpu_custom_call.1} parent=11 // pred_check
          %p642 = pneg %p223
        $region34: #{tpu_custom_call.1} parent=11 // pred_check_branch
          %644 = sbr.rel (%p642) target = $region36
        $region35: #{tpu_custom_call.1} parent=11 // pred_region
          %646 = vsyncadd [#allocation8], 0
          %s648 = sshll.u32 %s7, 4
          %s649 = int_to_ptr.hbm [resolvable:$true] %s648
          %s650 = sshll.u32 [#allocation7], 4
          %s651 = int_to_ptr.vmem [resolvable:$true] %s650
          %653 = dma.hbm_to_vmem [thread:$0]  %s649, 16, %s651, [#allocation8]
        $region36: #{tpu_custom_call.1} parent=11 // pred_fallthru
          _
        // Predicated region
        $region37: #{tpu_custom_call.1} parent=11 // pred_check
          %p654 = pneg %p556
        $region38: #{tpu_custom_call.1} parent=11 // pred_check_branch
          %656 = sbr.rel (%p654) target = $region40
        $region39: #{tpu_custom_call.1} parent=11 // pred_region
          _
        $region40: #{tpu_custom_call.1} parent=11 // pred_fallthru
          _
        // Predicated region
        $region41: #{tpu_custom_call.1} parent=11 // pred_check
          %p657 = pneg %p577
        $region42: #{tpu_custom_call.1} parent=11 // pred_check_branch
          %659 = sbr.rel (%p657) target = $region44
        $region43: #{tpu_custom_call.1} parent=11 // pred_region
          _
        $region44: #{tpu_custom_call.1} parent=11 // pred_fallthru
          _
      $region12: #{tpu_custom_call.1} parent=5 // pred_fallthru
        _
      %p660 = scmp.lt.s32.totalorder %s33, 4
      // Predicated region
      $region45: #{tpu_custom_call.1} parent=5 // pred_check
        %p661 = pneg %p660
      $region46: #{tpu_custom_call.1} parent=5 // pred_check_branch
        %663 = sbr.rel (%p661) target = $region48
      $region47: #{tpu_custom_call.1} parent=5 // pred_region
        // Predicated region
        $region49: #{tpu_custom_call.1} parent=47 // pred_check
          %p664 = pneg %p65
        $region50: #{tpu_custom_call.1} parent=47 // pred_check_branch
          %666 = sbr.rel (%p664) target = $region52
        $region51: #{tpu_custom_call.1} parent=47 // pred_region
          %s667 = smul.u32 2, %s40
          %p668 = scmp.lt.s32.totalorder %s667, 3
          %s669 = scalar_select %p668, %s667, 3
          %s670 = smul.addr %s669, 8
          %s671 = scalar_lea.vmem %s0, %s670
          %s672 = smul.u32 2, %s40
        $region52: #{tpu_custom_call.1} parent=47 // pred_fallthru
          _
        // Predicated region
        $region53: #{tpu_custom_call.1} parent=47 // pred_check
          %p673 = pneg %p91
        $region54: #{tpu_custom_call.1} parent=47 // pred_check_branch
          %675 = sbr.rel (%p673) target = $region56
        $region55: #{tpu_custom_call.1} parent=47 // pred_region
          %s676 = smul.u32 2, %s40
          %p677 = scmp.lt.s32.totalorder %s676, 3
          %s678 = scalar_select %p677, %s676, 3
          %s679 = smul.addr %s678, 8
          %s680 = scalar_lea.vmem %s1, %s679
          %s681 = smul.u32 2, %s40
        $region56: #{tpu_custom_call.1} parent=47 // pred_fallthru
          _
        // Predicated region
        $region57: #{tpu_custom_call.1} parent=47 // pred_check
          %p682 = pneg %p243
        $region58: #{tpu_custom_call.1} parent=47 // pred_check_branch
          %684 = sbr.rel (%p682) target = $region60
        $region59: #{tpu_custom_call.1} parent=47 // pred_region
          %s685 = sand.u32 %s33, 1
          %s686 = scalar_lea.sflag [#allocation5], %s685
          %s687 = sand.u32 %s233, 1
          %s688 = scalar_lea.vmem [#allocation9], %s687
          %690 = vsyncadd %s686, 0
          %s691 = scalar_lea.hbm %s8, %s41
          %s693 = sshll.u32 %s691, 4
          %s694 = int_to_ptr.hbm [resolvable:$true] %s693
          %s695 = sshll.u32 %s688, 4
          %s696 = int_to_ptr.vmem [resolvable:$true] %s695
          %698 = dma.hbm_to_vmem [thread:$0]  %s694, 16, %s696, %s686
        $region60: #{tpu_custom_call.1} parent=47 // pred_fallthru
          _
        // Predicated region
        $region61: #{tpu_custom_call.1} parent=47 // pred_check
          %p699 = pneg %p269
        $region62: #{tpu_custom_call.1} parent=47 // pred_check_branch
          %701 = sbr.rel (%p699) target = $region64
        $region63: #{tpu_custom_call.1} parent=47 // pred_region
          %s702 = sand.u32 %s33, 1
          %s703 = scalar_lea.sflag [#allocation5], %s702
          %s704 = sand.u32 %s259, 1
          %s705 = scalar_lea.vmem [#allocation10], %s704
          %707 = vsyncadd %s703, 0
          %s708 = scalar_lea.hbm %s9, %s41
          %s710 = sshll.u32 %s708, 4
          %s711 = int_to_ptr.hbm [resolvable:$true] %s710
          %s712 = sshll.u32 %s705, 4
          %s713 = int_to_ptr.vmem [resolvable:$true] %s712
          %715 = dma.hbm_to_vmem [thread:$0]  %s711, 16, %s713, %s703
        $region64: #{tpu_custom_call.1} parent=47 // pred_fallthru
          _
        // Predicated region
        $region65: #{tpu_custom_call.1} parent=47 // pred_check
          %p716 = pneg %p295
        $region66: #{tpu_custom_call.1} parent=47 // pred_check_branch
          %718 = sbr.rel (%p716) target = $region68
        $region67: #{tpu_custom_call.1} parent=47 // pred_region
          %p719 = scmp.lt.s32.totalorder %s41, 1
          %s720 = scalar_select %p719, %s41, 1
          %s721 = smul.addr %s720, 4
          %s722 = smul.addr %s721, 4
          %s723 = scalar_lea.vmem %s10, %s722
        $region68: #{tpu_custom_call.1} parent=47 // pred_fallthru
          _
        // Predicated region
        $region69: #{tpu_custom_call.1} parent=47 // pred_check
          %p724 = pneg %p321
        $region70: #{tpu_custom_call.1} parent=47 // pred_check_branch
          %726 = sbr.rel (%p724) target = $region72
        $region71: #{tpu_custom_call.1} parent=47 // pred_region
          %s727 = sand.u32 %s33, 1
          %s728 = scalar_lea.sflag [#allocation5], %s727
          %s729 = sand.u32 %s311, 1
          %s730 = scalar_lea.vmem [#allocation11], %s729
          %732 = vsyncadd %s728, 0
          %s733 = scalar_lea.hbm %s11, %s41
          %s735 = sshll.u32 %s733, 4
          %s736 = int_to_ptr.hbm [resolvable:$true] %s735
          %s737 = sshll.u32 %s730, 4
          %s738 = int_to_ptr.vmem [resolvable:$true] %s737
          %740 = dma.hbm_to_vmem [thread:$0]  %s736, 16, %s738, %s728
        $region72: #{tpu_custom_call.1} parent=47 // pred_fallthru
          _
        // Predicated region
        $region73: #{tpu_custom_call.1} parent=47 // pred_check
          %p741 = pneg %p347
        $region74: #{tpu_custom_call.1} parent=47 // pred_check_branch
          %743 = sbr.rel (%p741) target = $region76
        $region75: #{tpu_custom_call.1} parent=47 // pred_region
          %p744 = scmp.lt.s32.totalorder %s41, 1
          %s745 = scalar_select %p744, %s41, 1
          %s746 = smul.addr %s745, 4
          %s747 = smul.addr %s746, 8
          %s748 = scalar_lea.vmem %s12, %s747
        $region76: #{tpu_custom_call.1} parent=47 // pred_fallthru
          _
        // Predicated region
        $region77: #{tpu_custom_call.1} parent=47 // pred_check
          %p749 = pneg %p373
        $region78: #{tpu_custom_call.1} parent=47 // pred_check_branch
          %751 = sbr.rel (%p749) target = $region80
        $region79: #{tpu_custom_call.1} parent=47 // pred_region
          %s752 = sand.u32 %s33, 1
          %s753 = scalar_lea.sflag [#allocation5], %s752
          %s754 = sand.u32 %s363, 1
          %s755 = scalar_lea.vmem [#allocation12], %s754
          %757 = vsyncadd %s753, 0
          %s758 = scalar_lea.hbm %s13, %s41
          %s760 = sshll.u32 %s758, 4
          %s761 = int_to_ptr.hbm [resolvable:$true] %s760
          %s762 = sshll.u32 %s755, 4
          %s763 = int_to_ptr.vmem [resolvable:$true] %s762
          %765 = dma.hbm_to_vmem [thread:$0]  %s761, 16, %s763, %s753
        $region80: #{tpu_custom_call.1} parent=47 // pred_fallthru
          _
        // Predicated region
        $region81: #{tpu_custom_call.1} parent=47 // pred_check
          %p766 = pneg %p399
        $region82: #{tpu_custom_call.1} parent=47 // pred_check_branch
          %768 = sbr.rel (%p766) target = $region84
        $region83: #{tpu_custom_call.1} parent=47 // pred_region
          %s769 = sand.u32 %s33, 1
          %s770 = scalar_lea.sflag [#allocation5], %s769
          %s771 = sand.u32 %s389, 1
          %s772 = scalar_lea.vmem [#allocation13], %s771
          %774 = vsyncadd %s770, 0
          %s775 = scalar_lea.hbm %s14, %s41
          %s777 = sshll.u32 %s775, 4
          %s778 = int_to_ptr.hbm [resolvable:$true] %s777
          %s779 = sshll.u32 %s772, 4
          %s780 = int_to_ptr.vmem [resolvable:$true] %s779
          %782 = dma.hbm_to_vmem [thread:$0]  %s778, 16, %s780, %s770
        $region84: #{tpu_custom_call.1} parent=47 // pred_fallthru
          _
        // Predicated region
        $region85: #{tpu_custom_call.1} parent=47 // pred_check
          %p783 = pneg %p425
        $region86: #{tpu_custom_call.1} parent=47 // pred_check_branch
          %785 = sbr.rel (%p783) target = $region88
        $region87: #{tpu_custom_call.1} parent=47 // pred_region
          %s786 = sand.u32 %s33, 1
          %s787 = scalar_lea.sflag [#allocation5], %s786
          %s788 = sand.u32 %s415, 1
          %s789 = scalar_lea.vmem [#allocation14], %s788
          %791 = vsyncadd %s787, 0
          %s792 = scalar_lea.hbm %s15, %s41
          %s794 = sshll.u32 %s792, 4
          %s795 = int_to_ptr.hbm [resolvable:$true] %s794
          %s796 = sshll.u32 %s789, 4
          %s797 = int_to_ptr.vmem [resolvable:$true] %s796
          %799 = dma.hbm_to_vmem [thread:$0]  %s795, 16, %s797, %s787
        $region88: #{tpu_custom_call.1} parent=47 // pred_fallthru
          _
        // Predicated region
        $region89: #{tpu_custom_call.1} parent=47 // pred_check
          %p800 = pneg %p451
        $region90: #{tpu_custom_call.1} parent=47 // pred_check_branch
          %802 = sbr.rel (%p800) target = $region92
        $region91: #{tpu_custom_call.1} parent=47 // pred_region
          %s803 = sand.u32 %s33, 1
          %s804 = scalar_lea.sflag [#allocation5], %s803
          %s805 = sand.u32 %s441, 1
          %s806 = smul.addr %s805, 16
          %s807 = scalar_lea.vmem [#allocation15], %s806
          %809 = vsyncadd %s804, 0
          %s810 = smul.addr %s41, 4
          %s811 = smul.addr %s810, 4
          %s812 = scalar_lea.hbm %s16, %s811
          %s813 = sshll.u32 %s812, 4
          %s814 = int_to_ptr.hbm [resolvable:$true] %s813
          %s815 = sshll.u32 %s807, 4
          %s816 = int_to_ptr.vmem [resolvable:$true] %s815
          %821 = dma.hbm_to_vmem [thread:$0]  %s814, 256, %s816, %s804, 64, 64, 4
        $region92: #{tpu_custom_call.1} parent=47 // pred_fallthru
          _
        // Predicated region
        $region93: #{tpu_custom_call.1} parent=47 // pred_check
          %p822 = pneg %p477
        $region94: #{tpu_custom_call.1} parent=47 // pred_check_branch
          %824 = sbr.rel (%p822) target = $region96
        $region95: #{tpu_custom_call.1} parent=47 // pred_region
          %s825 = sand.u32 %s33, 1
          %s826 = scalar_lea.sflag [#allocation5], %s825
          %s827 = sand.u32 %s467, 1
          %s828 = scalar_lea.vmem [#allocation16], %s827
          %830 = vsyncadd %s826, 0
          %s831 = scalar_lea.hbm %s17, %s41
          %s833 = sshll.u32 %s831, 4
          %s834 = int_to_ptr.hbm [resolvable:$true] %s833
          %s835 = sshll.u32 %s828, 4
          %s836 = int_to_ptr.vmem [resolvable:$true] %s835
          %838 = dma.hbm_to_vmem [thread:$0]  %s834, 16, %s836, %s826
        $region96: #{tpu_custom_call.1} parent=47 // pred_fallthru
          _
        // Predicated region
        $region97: #{tpu_custom_call.1} parent=47 // pred_check
          %p839 = pneg %p503
        $region98: #{tpu_custom_call.1} parent=47 // pred_check_branch
          %841 = sbr.rel (%p839) target = $region100
        $region99: #{tpu_custom_call.1} parent=47 // pred_region
          %p842 = scmp.lt.s32.totalorder %s41, 1
          %s843 = scalar_select %p842, %s41, 1
          %s844 = smul.addr %s843, 16
          %s845 = smul.addr %s844, 4
          %s846 = scalar_lea.vmem %s18, %s845
        $region100: #{tpu_custom_call.1} parent=47 // pred_fallthru
          _
        // Predicated region
        $region101: #{tpu_custom_call.1} parent=47 // pred_check
          %p847 = pneg %p529
        $region102: #{tpu_custom_call.1} parent=47 // pred_check_branch
          %849 = sbr.rel (%p847) target = $region104
        $region103: #{tpu_custom_call.1} parent=47 // pred_region
          %s850 = sand.u32 %s33, 1
          %s851 = scalar_lea.sflag [#allocation5], %s850
          %s852 = sand.u32 %s519, 1
          %s853 = scalar_lea.vmem [#allocation17], %s852
          %855 = vsyncadd %s851, 0
          %s856 = scalar_lea.hbm %s19, %s41
          %s858 = sshll.u32 %s856, 4
          %s859 = int_to_ptr.hbm [resolvable:$true] %s858
          %s860 = sshll.u32 %s853, 4
          %s861 = int_to_ptr.vmem [resolvable:$true] %s860
          %863 = dma.hbm_to_vmem [thread:$0]  %s859, 16, %s861, %s851
        $region104: #{tpu_custom_call.1} parent=47 // pred_fallthru
          _
      $region48: #{tpu_custom_call.1} parent=5 // pred_fallthru
        _
      %p864 = scmp.le.s32.totalorder 1, %s33
      %p865 = scmp.lt.s32.totalorder %s33, 5
      %p866 = pnand %p864, %p865
      %p867 = pneg %p866
      // Predicated region
      $region105: #{tpu_custom_call.1} parent=5 // pred_check
        _
      $region106: #{tpu_custom_call.1} parent=5 // pred_check_branch
        %869 = sbr.rel (%p866) target = $region108
      $region107: #{tpu_custom_call.1} parent=5 // pred_region
        %s870 = ssub.s32 %s33, 1
        // Predicated region
        $region109: #{tpu_custom_call.1} parent=107 // pred_check
          %p871 = pneg %p202
        $region110: #{tpu_custom_call.1} parent=107 // pred_check_branch
          %873 = sbr.rel (%p871) target = $region112
        $region111: #{tpu_custom_call.1} parent=107 // pred_region
          %875 = dma.done [#allocation5], 64
        $region112: #{tpu_custom_call.1} parent=107 // pred_fallthru
          _
        // Predicated region
        $region113: #{tpu_custom_call.1} parent=107 // pred_check
          %p876 = pneg %p223
        $region114: #{tpu_custom_call.1} parent=107 // pred_check_branch
          %878 = sbr.rel (%p876) target = $region116
        $region115: #{tpu_custom_call.1} parent=107 // pred_region
          %880 = dma.done [#allocation8], 16
        $region116: #{tpu_custom_call.1} parent=107 // pred_fallthru
          _
        %s881 = sand.u32 %s38, 1
        %s882 = scalar_lea.sflag [#allocation5], %s881
        %s883 = sand.u32 %s236, 1
        %s884 = scalar_lea.vmem [#allocation9], %s883
        // Predicated region
        $region117: #{tpu_custom_call.1} parent=107 // pred_check
          %p885 = pneg %p249
        $region118: #{tpu_custom_call.1} parent=107 // pred_check_branch
          %887 = sbr.rel (%p885) target = $region120
        $region119: #{tpu_custom_call.1} parent=107 // pred_region
          %889 = dma.done %s882, 16
        $region120: #{tpu_custom_call.1} parent=107 // pred_fallthru
          _
        %s890 = sand.u32 %s38, 1
        %s891 = scalar_lea.sflag [#allocation5], %s890
        %s892 = sand.u32 %s262, 1
        %s893 = scalar_lea.vmem [#allocation10], %s892
        // Predicated region
        $region121: #{tpu_custom_call.1} parent=107 // pred_check
          %p894 = pneg %p275
        $region122: #{tpu_custom_call.1} parent=107 // pred_check_branch
          %896 = sbr.rel (%p894) target = $region124
        $region123: #{tpu_custom_call.1} parent=107 // pred_region
          %898 = dma.done %s891, 16
        $region124: #{tpu_custom_call.1} parent=107 // pred_fallthru
          _
        %s899 = sand.u32 %s38, 1
        %s900 = scalar_lea.sflag [#allocation5], %s899
        %s901 = sand.u32 %s314, 1
        %s902 = scalar_lea.vmem [#allocation11], %s901
        // Predicated region
        $region125: #{tpu_custom_call.1} parent=107 // pred_check
          %p903 = pneg %p327
        $region126: #{tpu_custom_call.1} parent=107 // pred_check_branch
          %905 = sbr.rel (%p903) target = $region128
        $region127: #{tpu_custom_call.1} parent=107 // pred_region
          %907 = dma.done %s900, 16
        $region128: #{tpu_custom_call.1} parent=107 // pred_fallthru
          _
        %s908 = sand.u32 %s38, 1
        %s909 = scalar_lea.sflag [#allocation5], %s908
        %s910 = sand.u32 %s366, 1
        %s911 = scalar_lea.vmem [#allocation12], %s910
        // Predicated region
        $region129: #{tpu_custom_call.1} parent=107 // pred_check
          %p912 = pneg %p379
        $region130: #{tpu_custom_call.1} parent=107 // pred_check_branch
          %914 = sbr.rel (%p912) target = $region132
        $region131: #{tpu_custom_call.1} parent=107 // pred_region
          %916 = dma.done %s909, 16
        $region132: #{tpu_custom_call.1} parent=107 // pred_fallthru
          _
        %s917 = sand.u32 %s38, 1
        %s918 = scalar_lea.sflag [#allocation5], %s917
        %s919 = sand.u32 %s392, 1
        %s920 = scalar_lea.vmem [#allocation13], %s919
        // Predicated region
        $region133: #{tpu_custom_call.1} parent=107 // pred_check
          %p921 = pneg %p405
        $region134: #{tpu_custom_call.1} parent=107 // pred_check_branch
          %923 = sbr.rel (%p921) target = $region136
        $region135: #{tpu_custom_call.1} parent=107 // pred_region
          %925 = dma.done %s918, 16
        $region136: #{tpu_custom_call.1} parent=107 // pred_fallthru
          _
        %s926 = sand.u32 %s38, 1
        %s927 = scalar_lea.sflag [#allocation5], %s926
        %s928 = sand.u32 %s418, 1
        %s929 = scalar_lea.vmem [#allocation14], %s928
        // Predicated region
        $region137: #{tpu_custom_call.1} parent=107 // pred_check
          %p930 = pneg %p431
        $region138: #{tpu_custom_call.1} parent=107 // pred_check_branch
          %932 = sbr.rel (%p930) target = $region140
        $region139: #{tpu_custom_call.1} parent=107 // pred_region
          %934 = dma.done %s927, 16
        $region140: #{tpu_custom_call.1} parent=107 // pred_fallthru
          _
        %s935 = sand.u32 %s38, 1
        %s936 = scalar_lea.sflag [#allocation5], %s935
        %s937 = sand.u32 %s444, 1
        %s938 = smul.addr %s937, 16
        %s939 = scalar_lea.vmem [#allocation15], %s938
        // Predicated region
        $region141: #{tpu_custom_call.1} parent=107 // pred_check
          %p940 = pneg %p457
        $region142: #{tpu_custom_call.1} parent=107 // pred_check_branch
          %942 = sbr.rel (%p940) target = $region144
        $region143: #{tpu_custom_call.1} parent=107 // pred_region
          %944 = dma.done %s936, 256
        $region144: #{tpu_custom_call.1} parent=107 // pred_fallthru
          _
        %s945 = sand.u32 %s38, 1
        %s946 = scalar_lea.sflag [#allocation5], %s945
        %s947 = sand.u32 %s470, 1
        %s948 = scalar_lea.vmem [#allocation16], %s947
        // Predicated region
        $region145: #{tpu_custom_call.1} parent=107 // pred_check
          %p949 = pneg %p483
        $region146: #{tpu_custom_call.1} parent=107 // pred_check_branch
          %951 = sbr.rel (%p949) target = $region148
        $region147: #{tpu_custom_call.1} parent=107 // pred_region
          %953 = dma.done %s946, 16
        $region148: #{tpu_custom_call.1} parent=107 // pred_fallthru
          _
        %s954 = sand.u32 %s38, 1
        %s955 = scalar_lea.sflag [#allocation5], %s954
        %s956 = sand.u32 %s522, 1
        %s957 = scalar_lea.vmem [#allocation17], %s956
        // Predicated region
        $region149: #{tpu_custom_call.1} parent=107 // pred_check
          %p958 = pneg %p535
        $region150: #{tpu_custom_call.1} parent=107 // pred_check_branch
          %960 = sbr.rel (%p958) target = $region152
        $region151: #{tpu_custom_call.1} parent=107 // pred_region
          %962 = dma.done %s955, 16
        $region152: #{tpu_custom_call.1} parent=107 // pred_fallthru
          _
        %s963 = smul.u32 2, %s42
        %p964 = scmp.lt.s32.totalorder %s963, 3
        %s965 = scalar_select %p964, %s963, 3
        %s966 = smul.addr %s965, 8
        %s967 = scalar_lea.vmem %s0, %s966
        %p968 = pneg %p71
        %p969 = pneg %p68
        %s970 = smul.u32 2, %s42
        %p971 = scmp.lt.s32.totalorder %s970, 3
        %s972 = scalar_select %p971, %s970, 3
        %s973 = smul.addr %s972, 8
        %s974 = scalar_lea.vmem %s1, %s973
        %p975 = pneg %p97
        %p976 = pneg %p94
        %p977 = pneg %p118
        %p978 = pneg %p115
        %p979 = pneg %p139
        %p980 = pneg %p136
        %p981 = pneg %p160
        %p982 = pneg %p157
        %p983 = pneg %p181
        %p984 = pneg %p178
        %p985 = pneg %p202
        %p986 = pneg %p199
        %p987 = pneg %p223
        %p988 = pneg %p220
        %s989 = sand.u32 %s38, 1
        %s990 = scalar_lea.sflag [#allocation5], %s989
        %s991 = sand.u32 %s236, 1
        %s992 = scalar_lea.vmem [#allocation9], %s991
        %p993 = pneg %p249
        %p994 = pneg %p246
        %s995 = sand.u32 %s38, 1
        %s996 = scalar_lea.sflag [#allocation5], %s995
        %s997 = sand.u32 %s262, 1
        %s998 = scalar_lea.vmem [#allocation10], %s997
        %p999 = pneg %p275
        %p1000 = pneg %p272
        %p1001 = scmp.lt.s32.totalorder %s43, 1
        %s1002 = scalar_select %p1001, %s43, 1
        %s1003 = smul.addr %s1002, 4
        %s1004 = smul.addr %s1003, 4
        %s1005 = scalar_lea.vmem %s10, %s1004
        %p1006 = pneg %p301
        %p1007 = pneg %p298
        %s1008 = sand.u32 %s38, 1
        %s1009 = scalar_lea.sflag [#allocation5], %s1008
        %s1010 = sand.u32 %s314, 1
        %s1011 = scalar_lea.vmem [#allocation11], %s1010
        %p1012 = pneg %p327
        %p1013 = pneg %p324
        %p1014 = scmp.lt.s32.totalorder %s43, 1
        %s1015 = scalar_select %p1014, %s43, 1
        %s1016 = smul.addr %s1015, 4
        %s1017 = smul.addr %s1016, 8
        %s1018 = scalar_lea.vmem %s12, %s1017
        %p1019 = pneg %p353
        %p1020 = pneg %p350
        %s1021 = sand.u32 %s38, 1
        %s1022 = scalar_lea.sflag [#allocation5], %s1021
        %s1023 = sand.u32 %s366, 1
        %s1024 = scalar_lea.vmem [#allocation12], %s1023
        %p1025 = pneg %p379
        %p1026 = pneg %p376
        %s1027 = sand.u32 %s38, 1
        %s1028 = scalar_lea.sflag [#allocation5], %s1027
        %s1029 = sand.u32 %s392, 1
        %s1030 = scalar_lea.vmem [#allocation13], %s1029
        %p1031 = pneg %p405
        %p1032 = pneg %p402
        %s1033 = sand.u32 %s38, 1
        %s1034 = scalar_lea.sflag [#allocation5], %s1033
        %s1035 = sand.u32 %s418, 1
        %s1036 = scalar_lea.vmem [#allocation14], %s1035
        %p1037 = pneg %p431
        %p1038 = pneg %p428
        %s1039 = sand.u32 %s38, 1
        %s1040 = scalar_lea.sflag [#allocation5], %s1039
        %s1041 = sand.u32 %s444, 1
        %s1042 = smul.addr %s1041, 16
        %s1043 = scalar_lea.vmem [#allocation15], %s1042
        %p1044 = pneg %p457
        %p1045 = pneg %p454
        %s1046 = sand.u32 %s38, 1
        %s1047 = scalar_lea.sflag [#allocation5], %s1046
        %s1048 = sand.u32 %s470, 1
        %s1049 = scalar_lea.vmem [#allocation16], %s1048
        %p1050 = pneg %p483
        %p1051 = pneg %p480
        %p1052 = scmp.lt.s32.totalorder %s43, 1
        %s1053 = scalar_select %p1052, %s43, 1
        %s1054 = smul.addr %s1053, 16
        %s1055 = smul.addr %s1054, 4
        %s1056 = scalar_lea.vmem %s18, %s1055
        %p1057 = pneg %p509
        %p1058 = pneg %p506
        %s1059 = sand.u32 %s38, 1
        %s1060 = scalar_lea.sflag [#allocation5], %s1059
        %s1061 = sand.u32 %s522, 1
        %s1062 = scalar_lea.vmem [#allocation17], %s1061
        %p1063 = pneg %p535
        %p1064 = pneg %p532
        %p1065 = pneg %p556
        %p1066 = pneg %p553
        %p1067 = pneg %p577
        %p1068 = pneg %p574
        %p1069 = pneg %p603
        %p1070 = pneg %p600
        %s1071 = sand.u32 %s590, 1
        %s1072 = scalar_lea.sflag [#allocation6], %s1071
        %s1073 = sand.u32 %s590, 1
        %s1074 = smul.addr %s1073, 32
        %s1075 = scalar_lea.vmem [#allocation18], %s1074
        %s1076 = smul.u32 2, %s42
        %p1077 = scmp.lt.s32.totalorder %s1076, 3
        %s1078 = scalar_select %p1077, %s1076, 3
        %s1079 = smul.addr %s1078, 8
        %s1080 = scalar_lea.vmem %s0, %s1079
        %s1081 = smul.u32 2, %s42
        %s1082 = smul.u32 2, %s42
        %p1083 = scmp.lt.s32.totalorder %s1082, 3
        %s1084 = scalar_select %p1083, %s1082, 3
        %s1085 = smul.addr %s1084, 8
        %s1086 = scalar_lea.vmem %s1, %s1085
        %s1087 = smul.u32 2, %s42
        %p1088 = scmp.lt.s32.totalorder %s43, 1
        %s1089 = scalar_select %p1088, %s43, 1
        %s1090 = smul.addr %s1089, 4
        %s1091 = smul.addr %s1090, 4
        %s1092 = scalar_lea.vmem %s10, %s1091
        %p1093 = scmp.lt.s32.totalorder %s43, 1
        %s1094 = scalar_select %p1093, %s43, 1
        %s1095 = smul.addr %s1094, 4
        %s1096 = smul.addr %s1095, 8
        %s1097 = scalar_lea.vmem %s12, %s1096
        %p1098 = scmp.lt.s32.totalorder %s43, 1
        %s1099 = scalar_select %p1098, %s43, 1
        %s1100 = smul.addr %s1099, 16
        %s1101 = smul.addr %s1100, 4
        %s1102 = scalar_lea.vmem %s18, %s1101
        %s1103 = smul.u32 2, %s42
        %p1105 = scmp.eq.s32.totalorder %s43, 0
        // Predicated region
        $region153: #{tpu_custom_call.1} parent=107 // pred_check
          %p1106 = pneg %p1105
        $region154: #{tpu_custom_call.1} parent=107 // pred_check_branch
          %1108 = sbr.rel (%p1106) target = $region156
        $region155: #{tpu_custom_call.1} parent=107 // pred_region
          %v1109 = vld [vmem:[%s2] sm:$0xff]
          %v1110 = vld [vmem:[%s3] sm:$0xff]
          %v1111 = vld [vmem:[%s3 + $0x8] sm:$0xff]
          %v1112 = vld [vmem:[%s4] sm:$0xff]
          %v1113 = vld [vmem:[%s4 + $0x8] sm:$0xff]
          %v1114 = vld [vmem:[%s1080] sm:$0xff]
          %v1115 = vadd.f32 %v1114, %v1109
          %v1116 = vld [vmem:[%s1086] sm:$0xff]
          %v1117 = vpack.c.bf16 %v1116, %v1116
          %v1118 = vld [vmem:[#allocation4] sm:$0xf]
          %v1119 = vld [vmem:[#allocation7] sm:$0x1]
          %v1121 = vperm.slane %v1119, 0
          %vm1123 = vcmask 64512
          %v1125 = vsel %vm1123, %v1117, 0
          %vm1127 = vcmask 1043456
          %v1129 = vsel %vm1127, %v1118, 0
          %1131 = vmatpush.bf16.msra.mxu0 0
          %1132 = vmatpush.bf16.msra.mxu0 0
          %1133 = vmatpush.bf16.msra.mxu0 0
          %1134 = vmatpush.bf16.msra.mxu0 0
          %1135 = vmatpush.bf16.msra.mxu0 0
          %1136 = vmatpush.bf16.msra.mxu0 0
          %1137 = vmatpush.bf16.msra.mxu0 0
          %1138 = vmatpush.bf16.msra.mxu0 %v1129
          %1139 = vmatmul.bf16.gmra.mxu0 %v1125
          %v1140 = vpop.f32.mrf.mxu0
          %v1141 = vadd.f32 %v1121, %v1140
          %v1142 = vpop.f32.mrf.mxu0
          %1143 = vdwg.mxu0
          %v1144 = vadd.f32 %v1141, %v1109
          %v1146 = vsel %vm1123, %v1112, 0
          %v1149 = vsel %vm1123, %v1113, 0
          %1151 = vmatpush.msra.mxu0 0.0
          %1152 = vmatpush.msra.mxu0 0.0
          %1153 = vmatpush.msra.mxu0 0.0
          %1154 = vmatpush.msra.mxu0 0.0
          %1155 = vmatpush.msra.mxu0 0.0
          %1156 = vmatpush.msra.mxu0 0.0
          %1157 = vmatpush.msra.mxu0 0.0
          %1158 = vmatpush.msra.mxu0 0.0
          %1159 = vmatpush.msra.mxu0 0.0
          %1160 = vmatpush.msra.mxu0 0.0
          %1161 = vmatpush.msra.mxu0 0.0
          %1162 = vmatpush.msra.mxu0 0.0
          %1163 = vmatpush.msra.mxu0 0.0
          %1164 = vmatpush.msra.mxu0 0.0
          %1165 = vmatpush.msra.mxu0 0.0
          %1166 = vmatpush.msra.mxu0 %v1144
          %1167 = vmatmul.f32.gmra.mxu0 %v1146
          %v1168 = vpop.f32.mrf.mxu0
          %v1169 = vadd.f32 0.0, %v1168
          %1170 = vmatmul.f32.gmra.mxu0 %v1149
          %v1171 = vpop.f32.mrf.mxu0
          %v1172 = vadd.f32 0.0, %v1171
          %1173 = vdwg.mxu0
          %v1175 = vsel %vm1123, %v1110, 0
          %v1178 = vsel %vm1123, %v1111, 0
          %1180 = vmatpush.msra.mxu0 0.0
          %1181 = vmatpush.msra.mxu0 0.0
          %1182 = vmatpush.msra.mxu0 0.0
          %1183 = vmatpush.msra.mxu0 0.0
          %1184 = vmatpush.msra.mxu0 0.0
          %1185 = vmatpush.msra.mxu0 0.0
          %1186 = vmatpush.msra.mxu0 0.0
          %1187 = vmatpush.msra.mxu0 0.0
          %1188 = vmatpush.msra.mxu0 0.0
          %1189 = vmatpush.msra.mxu0 0.0
          %1190 = vmatpush.msra.mxu0 0.0
          %1191 = vmatpush.msra.mxu0 0.0
          %1192 = vmatpush.msra.mxu0 0.0
          %1193 = vmatpush.msra.mxu0 0.0
          %1194 = vmatpush.msra.mxu0 0.0
          %1195 = vmatpush.msra.mxu0 %v1115
          %1196 = vmatmul.f32.gmra.mxu0 %v1175
          %v1197 = vpop.f32.mrf.mxu0
          %v1198 = vadd.f32 %v1169, %v1197
          %1199 = vmatmul.f32.gmra.mxu0 %v1178
          %v1200 = vpop.f32.mrf.mxu0
          %v1201 = vadd.f32 %v1172, %v1200
          %1202 = vdwg.mxu0
          %vm1203 = vcmask 261120
          %1204 = vst.msk [vmem:[#allocation2] sm:$0xff] %vm1203, %v1198
          %1205 = vst.msk [vmem:[#allocation2 + $0x8] sm:$0xff] %vm1203, %v1201
          %s1206 = scalar_lea.vmem %s1080, 8
          %v1207 = vld [vmem:[%s1206] sm:$0xff]
          %v1208 = vadd.f32 %v1207, %v1109
          %s1209 = scalar_lea.vmem %s1086, 8
          %v1210 = vld [vmem:[%s1209] sm:$0xff]
          %v1211 = vpack.c.bf16 %v1210, %v1210
          %v1212 = vld [vmem:[#allocation4] sm:$0xf]
          %v1213 = vld [vmem:[#allocation7] sm:$0x1]
          %v1215 = vperm.slane %v1213, 0
          %v1218 = vsel %vm1123, %v1211, 0
          %v1221 = vsel %vm1127, %v1212, 0
          %1223 = vmatpush.bf16.msra.mxu0 0
          %1224 = vmatpush.bf16.msra.mxu0 0
          %1225 = vmatpush.bf16.msra.mxu0 0
          %1226 = vmatpush.bf16.msra.mxu0 0
          %1227 = vmatpush.bf16.msra.mxu0 0
          %1228 = vmatpush.bf16.msra.mxu0 0
          %1229 = vmatpush.bf16.msra.mxu0 0
          %1230 = vmatpush.bf16.msra.mxu0 %v1221
          %1231 = vmatmul.bf16.gmra.mxu0 %v1218
          %v1232 = vpop.f32.mrf.mxu0
          %v1233 = vadd.f32 %v1215, %v1232
          %v1234 = vpop.f32.mrf.mxu0
          %1235 = vdwg.mxu0
          %v1236 = vadd.f32 %v1233, %v1109
          %1237 = vmatpush.msra.mxu0 0.0
          %1238 = vmatpush.msra.mxu0 0.0
          %1239 = vmatpush.msra.mxu0 0.0
          %1240 = vmatpush.msra.mxu0 0.0
          %1241 = vmatpush.msra.mxu0 0.0
          %1242 = vmatpush.msra.mxu0 0.0
          %1243 = vmatpush.msra.mxu0 0.0
          %1244 = vmatpush.msra.mxu0 0.0
          %1245 = vmatpush.msra.mxu0 0.0
          %1246 = vmatpush.msra.mxu0 0.0
          %1247 = vmatpush.msra.mxu0 0.0
          %1248 = vmatpush.msra.mxu0 0.0
          %1249 = vmatpush.msra.mxu0 0.0
          %1250 = vmatpush.msra.mxu0 0.0
          %1251 = vmatpush.msra.mxu0 0.0
          %1252 = vmatpush.msra.mxu0 %v1236
          %1253 = vmatmul.f32.gmra.mxu0 %v1146
          %v1254 = vpop.f32.mrf.mxu0
          %v1255 = vadd.f32 0.0, %v1254
          %1256 = vmatmul.f32.gmra.mxu0 %v1149
          %v1257 = vpop.f32.mrf.mxu0
          %v1258 = vadd.f32 0.0, %v1257
          %1259 = vdwg.mxu0
          %1260 = vmatpush.msra.mxu0 0.0
          %1261 = vmatpush.msra.mxu0 0.0
          %1262 = vmatpush.msra.mxu0 0.0
          %1263 = vmatpush.msra.mxu0 0.0
          %1264 = vmatpush.msra.mxu0 0.0
          %1265 = vmatpush.msra.mxu0 0.0
          %1266 = vmatpush.msra.mxu0 0.0
          %1267 = vmatpush.msra.mxu0 0.0
          %1268 = vmatpush.msra.mxu0 0.0
          %1269 = vmatpush.msra.mxu0 0.0
          %1270 = vmatpush.msra.mxu0 0.0
          %1271 = vmatpush.msra.mxu0 0.0
          %1272 = vmatpush.msra.mxu0 0.0
          %1273 = vmatpush.msra.mxu0 0.0
          %1274 = vmatpush.msra.mxu0 0.0
          %1275 = vmatpush.msra.mxu0 %v1208
          %1276 = vmatmul.f32.gmra.mxu0 %v1175
          %v1277 = vpop.f32.mrf.mxu0
          %v1278 = vadd.f32 %v1255, %v1277
          %1279 = vmatmul.f32.gmra.mxu0 %v1178
          %v1280 = vpop.f32.mrf.mxu0
          %v1281 = vadd.f32 %v1258, %v1280
          %1282 = vdwg.mxu0
          %1283 = vst.msk [vmem:[#allocation2 + $0x10] sm:$0xff] %vm1203, %v1278
          %1284 = vst.msk [vmem:[#allocation2 + $0x18] sm:$0xff] %vm1203, %v1281
        $region156: #{tpu_custom_call.1} parent=107 // pred_fallthru
          _
        %v1285 = vld [vmem:[#allocation2] sm:$0xff]
        %v1286 = vld [vmem:[#allocation2 + $0x8] sm:$0xff]
        %v1287 = vld [vmem:[#allocation2 + $0x10] sm:$0xff]
        %v1288 = vld [vmem:[#allocation2 + $0x18] sm:$0xff]
        %v1289 = vld [vmem:[%s884] sm:$0x1]
        %v1290 = vld [vmem:[%s893] sm:$0x1]
        %vm1291 = vcmask 261120
        %v1292 = vsel %vm1291, %v1285, 0.0
        %1293 = vadd.xlane.f32.xlu0 %v1292
        %v1294 = vpop.xlane.xlu0 %1293
        %v1295 = vsel %vm1291, %v1286, 0.0
        %1296 = vadd.xlane.f32.xlu0 %v1295
        %v1297 = vpop.xlane.xlu0 %1296
        %v1298 = vsel %vm1291, %v1287, 0.0
        %1299 = vadd.xlane.f32.xlu0 %v1298
        %v1300 = vpop.xlane.xlu0 %1299
        %v1301 = vsel %vm1291, %v1288, 0.0
        %1302 = vadd.xlane.f32.xlu0 %v1301
        %v1303 = vpop.xlane.xlu0 %1302
        %v1304 = vrcp.pop 32.0
        %v1305 = vmul.f32 32.0, %v1304
        %v1306 = vsub.f32 1.0, %v1305
        %v1307 = vmul.f32 %v1304, %v1306
        %v1308 = vadd.f32 %v1304, %v1307
        %vm1309 = vweird.f32 %v1304
        %v1310 = vsel %vm1309, %v1304, %v1308
        %v1311 = vmul.f32 %v1294, %v1310
        %v1312 = vmul.f32 %v1297, %v1310
        %v1313 = vmul.f32 %v1300, %v1310
        %v1314 = vmul.f32 %v1303, %v1310
        %v1315 = vsub.f32 %v1285, %v1311
        %v1316 = vsub.f32 %v1286, %v1312
        %v1317 = vsub.f32 %v1287, %v1313
        %v1318 = vsub.f32 %v1288, %v1314
        %v1319 = vmul.f32 %v1315, %v1315
        %v1320 = vmul.f32 %v1316, %v1316
        %v1321 = vmul.f32 %v1317, %v1317
        %v1322 = vmul.f32 %v1318, %v1318
        %v1323 = vsel %vm1291, %v1319, 0.0
        %1324 = vadd.xlane.f32.xlu0 %v1323
        %v1325 = vpop.xlane.xlu0 %1324
        %v1326 = vsel %vm1291, %v1320, 0.0
        %1327 = vadd.xlane.f32.xlu0 %v1326
        %v1328 = vpop.xlane.xlu0 %1327
        %v1329 = vsel %vm1291, %v1321, 0.0
        %1330 = vadd.xlane.f32.xlu0 %v1329
        %v1331 = vpop.xlane.xlu0 %1330
        %v1332 = vsel %vm1291, %v1322, 0.0
        %1333 = vadd.xlane.f32.xlu0 %v1332
        %v1334 = vpop.xlane.xlu0 %1333
        %v1335 = vmul.f32 %v1325, %v1310
        %v1336 = vmul.f32 %v1328, %v1310
        %v1337 = vmul.f32 %v1331, %v1310
        %v1338 = vmul.f32 %v1334, %v1310
        %v1339 = vadd.f32 %v1335, 1e-05
        %v1340 = vadd.f32 %v1336, 1e-05
        %v1341 = vadd.f32 %v1337, 1e-05
        %v1342 = vadd.f32 %v1338, 1e-05
        %v1343 = vrsqrt.pop %v1339
        %v1344 = vmul.f32 %v1343, %v1339
        %v1345 = vmul.f32 %v1344, %v1343
        %v1346 = vmul.f32 0.5, %v1345
        %v1347 = vsub.f32 1.5, %v1346
        %v1348 = vmul.f32 %v1343, %v1347
        %vm1349 = vweird.f32 %v1339
        %vm1350 = vweird.f32 %v1343
        %vm1351 = vmor %vm1349, %vm1350
        %v1352 = vsel %vm1351, %v1343, %v1348
        %v1353 = vrsqrt.pop %v1340
        %v1354 = vmul.f32 %v1353, %v1340
        %v1355 = vmul.f32 %v1354, %v1353
        %v1356 = vmul.f32 0.5, %v1355
        %v1357 = vsub.f32 1.5, %v1356
        %v1358 = vmul.f32 %v1353, %v1357
        %vm1359 = vweird.f32 %v1340
        %vm1360 = vweird.f32 %v1353
        %vm1361 = vmor %vm1359, %vm1360
        %v1362 = vsel %vm1361, %v1353, %v1358
        %v1363 = vrsqrt.pop %v1341
        %v1364 = vmul.f32 %v1363, %v1341
        %v1365 = vmul.f32 %v1364, %v1363
        %v1366 = vmul.f32 0.5, %v1365
        %v1367 = vsub.f32 1.5, %v1366
        %v1368 = vmul.f32 %v1363, %v1367
        %vm1369 = vweird.f32 %v1341
        %vm1370 = vweird.f32 %v1363
        %vm1371 = vmor %vm1369, %vm1370
        %v1372 = vsel %vm1371, %v1363, %v1368
        %v1373 = vrsqrt.pop %v1342
        %v1374 = vmul.f32 %v1373, %v1342
        %v1375 = vmul.f32 %v1374, %v1373
        %v1376 = vmul.f32 0.5, %v1375
        %v1377 = vsub.f32 1.5, %v1376
        %v1378 = vmul.f32 %v1373, %v1377
        %vm1379 = vweird.f32 %v1342
        %vm1380 = vweird.f32 %v1373
        %vm1381 = vmor %vm1379, %vm1380
        %v1382 = vsel %vm1381, %v1373, %v1378
        %v1383 = vmul.f32 %v1315, %v1352
        %v1384 = vmul.f32 %v1316, %v1362
        %v1385 = vmul.f32 %v1317, %v1372
        %v1386 = vmul.f32 %v1318, %v1382
        %v1388 = vperm.slane %v1289, 0
        %v1390 = vmul.f32 %v1383, %v1388
        %v1391 = vmul.f32 %v1384, %v1388
        %v1392 = vmul.f32 %v1385, %v1388
        %v1393 = vmul.f32 %v1386, %v1388
        %v1395 = vperm.slane %v1290, 0
        %v1397 = vadd.f32 %v1390, %v1395
        %v1398 = vadd.f32 %v1391, %v1395
        %v1399 = vadd.f32 %v1392, %v1395
        %v1400 = vadd.f32 %v1393, %v1395
        %v1401 = vpack.c.bf16 %v1398, %v1397
        %v1402 = vpack.c.bf16 %v1400, %v1399
        %v1403 = vld [vmem:[%s1092] sm:$0xf]
        %v1404 = vld [vmem:[%s1092 + $0x4] sm:$0xf]
        %v1405 = vld [vmem:[%s1092 + $0x8] sm:$0xf]
        %v1406 = vld [vmem:[%s1092 + $0xc] sm:$0xf]
        %v1407 = vld [vmem:[%s902] sm:$0x1]
        %v1409 = vperm.slane %v1407, 0
        %v1415 = vunpack.c.l.b16 %v1403
        %v1416 = vunpack.c.l.b16 %v1404
        %v1417 = vunpack.c.l.b16 %v1405
        %v1418 = vunpack.c.l.b16 %v1406
        %v1419 = vpack.c.b16 %v1416, %v1415
        %v1420 = vpack.c.b16 %v1418, %v1417
        %v1424 = vsel %vm1291, %v1401, 0
        %v1427 = vsel %vm1291, %v1402, 0
        %1429 = vmatpush.bf16.msra.mxu0 0
        %1430 = vmatpush.bf16.msra.mxu0 0
        %1431 = vmatpush.bf16.msra.mxu0 0
        %1432 = vmatpush.bf16.msra.mxu0 0
        %1433 = vmatpush.bf16.msra.mxu0 0
        %1434 = vmatpush.bf16.msra.mxu0 0
        %1435 = vmatpush.bf16.msra.mxu0 %v1420
        %1436 = vmatpush.bf16.msra.mxu0 %v1419
        %1437 = vmatmul.bf16.gmra.mxu0 %v1424
        %v1438 = vpop.f32.mrf.mxu0
        %v1439 = vadd.f32 %v1409, %v1438
        %v1440 = vpop.f32.mrf.mxu0
        %v1441 = vadd.f32 %v1409, %v1440
        %1442 = vmatmul.bf16.gmra.mxu0 %v1427
        %v1443 = vpop.f32.mrf.mxu0
        %v1444 = vadd.f32 %v1409, %v1443
        %v1445 = vpop.f32.mrf.mxu0
        %v1446 = vadd.f32 %v1409, %v1445
        %1447 = vdwg.mxu0
        %v1448 = vld [vmem:[%s5] sm:$0xff]
        %v1449 = vld [vmem:[%s5 + $0x8] sm:$0xff]
        %v1450 = vmul.f32 %v1439, 0.35355338
        %v1451 = vmul.f32 %v1441, 0.35355338
        %v1452 = vpack.c.bf16 %v1451, %v1450
        %v1453 = vpack.c.bf16 %v1441, %v1439
        %1455 = vrot.lane.b32.xlu0 %v1453, 96
        %v1456 = vpop.permute.xlu0 %1455
        %vm1457 = vcmask 64512
        %v1459 = vsel %vm1457, %v1452, 0
        %v1462 = vsel %vm1457, %v1456, 0
        %1464 = vmatpush.bf16.xpose.msra.mxu0 0
        %1465 = vmatpush.bf16.xpose.msra.mxu0 0
        %1466 = vmatpush.bf16.xpose.msra.mxu0 0
        %1467 = vmatpush.bf16.xpose.msra.mxu0 0
        %1468 = vmatpush.bf16.xpose.msra.mxu0 0
        %1469 = vmatpush.bf16.xpose.msra.mxu0 0
        %1470 = vmatpush.bf16.xpose.msra.mxu0 0
        %1471 = vmatpush.bf16.xpose.msra.mxu0 %v1462
        %1472 = vmatmul.bf16.gmra.mxu0 %v1459
        %v1473 = vpop.f32.mrf.mxu0
        %v1474 = vadd.f32 %v1448, %v1473
        %v1475 = vpop.f32.mrf.mxu0
        %v1476 = vadd.f32 %v1449, %v1475
        %1477 = vdwg.mxu0
        %vm1478 = vcmask 130048
        %v1479 = vsel %vm1478, %v1474, -inf
        %1480 = vmax.xlane.f32.xlu0 %v1479
        %v1481 = vpop.xlane.xlu0 %1480
        %v1482 = vsel %vm1478, %v1476, -inf
        %1483 = vmax.xlane.f32.xlu0 %v1482
        %v1484 = vpop.xlane.xlu0 %1483
        %v1485 = vsub.f32 %v1474, %v1481
        %v1486 = vsub.f32 %v1476, %v1484
        %v1487 = vmul.f32 %v1485, 1.442695
        %v1488 = vpow.pop %v1487
        %v1489 = vmul.f32 %v1486, 1.442695
        %v1490 = vpow.pop %v1489
        %v1491 = vsel %vm1478, %v1488, 0.0
        %1492 = vadd.xlane.f32.xlu0 %v1491
        %v1493 = vpop.xlane.xlu0 %1492
        %v1494 = vsel %vm1478, %v1490, 0.0
        %1495 = vadd.xlane.f32.xlu0 %v1494
        %v1496 = vpop.xlane.xlu0 %1495
        %v1497 = vrcp.pop %v1493
        %v1498 = vrcp.pop %v1496
        %v1499 = vmul.f32 %v1488, %v1497
        %v1500 = vmul.f32 %v1490, %v1498
        %v1501 = vpack.c.bf16 %v1500, %v1499
        %1502 = vrot.lane.b32.xlu0 %v1453, 64
        %v1503 = vpop.permute.xlu0 %1502
        %v1506 = vsel %vm1478, %v1501, 0
        %1508 = vmatpush.bf16.msra.mxu0 0
        %1509 = vmatpush.bf16.msra.mxu0 0
        %1510 = vmatpush.bf16.msra.mxu0 0
        %1511 = vmatpush.bf16.msra.mxu0 0
        %1512 = vmatpush.bf16.msra.mxu0 0
        %1513 = vmatpush.bf16.msra.mxu0 0
        %1514 = vmatpush.bf16.msra.mxu0 0
        %1515 = vmatpush.bf16.msra.mxu0 %v1503
        %1516 = vmatmul.bf16.gmra.mxu0 %v1506
        %v1517 = vpop.f32.mrf.mxu0
        %v1518 = vadd.f32 0.0, %v1517
        %v1519 = vpop.f32.mrf.mxu0
        %v1520 = vadd.f32 0.0, %v1519
        %1521 = vdwg.mxu0
        %1522 = vst.msk [vmem:[#allocation3] sm:$0xff] %vm1457, %v1518
        %1523 = vst.msk [vmem:[#allocation3 + $0x8] sm:$0xff] %vm1457, %v1520
        %1525 = vrot.lane.b32.xlu0 %v1452, 120
        %v1526 = vpop.permute.xlu0 %1525
        %1527 = vrot.lane.b32.xlu0 %v1453, 88
        %v1528 = vpop.permute.xlu0 %1527
        %v1530 = vsel %vm1457, %v1526, 0
        %v1533 = vsel %vm1457, %v1528, 0
        %1535 = vmatpush.bf16.xpose.msra.mxu0 0
        %1536 = vmatpush.bf16.xpose.msra.mxu0 0
        %1537 = vmatpush.bf16.xpose.msra.mxu0 0
        %1538 = vmatpush.bf16.xpose.msra.mxu0 0
        %1539 = vmatpush.bf16.xpose.msra.mxu0 0
        %1540 = vmatpush.bf16.xpose.msra.mxu0 0
        %1541 = vmatpush.bf16.xpose.msra.mxu0 0
        %1542 = vmatpush.bf16.xpose.msra.mxu0 %v1533
        %1543 = vmatmul.bf16.gmra.mxu0 %v1530
        %v1544 = vpop.f32.mrf.mxu0
        %v1545 = vadd.f32 %v1448, %v1544
        %v1546 = vpop.f32.mrf.mxu0
        %v1547 = vadd.f32 %v1449, %v1546
        %1548 = vdwg.mxu0
        %v1549 = vsel %vm1478, %v1545, -inf
        %1550 = vmax.xlane.f32.xlu0 %v1549
        %v1551 = vpop.xlane.xlu0 %1550
        %v1552 = vsel %vm1478, %v1547, -inf
        %1553 = vmax.xlane.f32.xlu0 %v1552
        %v1554 = vpop.xlane.xlu0 %1553
        %v1555 = vsub.f32 %v1545, %v1551
        %v1556 = vsub.f32 %v1547, %v1554
        %v1557 = vmul.f32 %v1555, 1.442695
        %v1558 = vpow.pop %v1557
        %v1559 = vmul.f32 %v1556, 1.442695
        %v1560 = vpow.pop %v1559
        %v1561 = vsel %vm1478, %v1558, 0.0
        %1562 = vadd.xlane.f32.xlu0 %v1561
        %v1563 = vpop.xlane.xlu0 %1562
        %v1564 = vsel %vm1478, %v1560, 0.0
        %1565 = vadd.xlane.f32.xlu0 %v1564
        %v1566 = vpop.xlane.xlu0 %1565
        %v1567 = vrcp.pop %v1563
        %v1568 = vrcp.pop %v1566
        %v1569 = vmul.f32 %v1558, %v1567
        %v1570 = vmul.f32 %v1560, %v1568
        %v1571 = vpack.c.bf16 %v1570, %v1569
        %1572 = vrot.lane.b32.xlu0 %v1453, 56
        %v1573 = vpop.permute.xlu0 %1572
        %v1576 = vsel %vm1478, %v1571, 0
        %1578 = vmatpush.bf16.msra.mxu0 0
        %1579 = vmatpush.bf16.msra.mxu0 0
        %1580 = vmatpush.bf16.msra.mxu0 0
        %1581 = vmatpush.bf16.msra.mxu0 0
        %1582 = vmatpush.bf16.msra.mxu0 0
        %1583 = vmatpush.bf16.msra.mxu0 0
        %1584 = vmatpush.bf16.msra.mxu0 0
        %1585 = vmatpush.bf16.msra.mxu0 %v1573
        %1586 = vmatmul.bf16.gmra.mxu0 %v1576
        %v1587 = vpop.f32.mrf.mxu0
        %v1588 = vadd.f32 0.0, %v1587
        %v1589 = vpop.f32.mrf.mxu0
        %v1590 = vadd.f32 0.0, %v1589
        %1591 = vdwg.mxu0
        %1594 = vrot.lane.b32.xlu0 %v1588, 8
        %v1595 = vpop.permute.xlu0 %1594
        %1596 = vrot.lane.b32.xlu0 %v1590, 8
        %v1597 = vpop.permute.xlu0 %1596
        %vm1600 = vcmask 130112
        %1601 = vst.msk [vmem:[#allocation3] sm:$0xff] %vm1600, %v1595
        %1602 = vst.msk [vmem:[#allocation3 + $0x8] sm:$0xff] %vm1600, %v1597
        %1603 = vrot.lane.b32.xlu0 %v1452, 112
        %v1604 = vpop.permute.xlu0 %1603
        %1605 = vrot.lane.b32.xlu0 %v1453, 80
        %v1606 = vpop.permute.xlu0 %1605
        %v1608 = vsel %vm1457, %v1604, 0
        %v1611 = vsel %vm1457, %v1606, 0
        %1613 = vmatpush.bf16.xpose.msra.mxu0 0
        %1614 = vmatpush.bf16.xpose.msra.mxu0 0
        %1615 = vmatpush.bf16.xpose.msra.mxu0 0
        %1616 = vmatpush.bf16.xpose.msra.mxu0 0
        %1617 = vmatpush.bf16.xpose.msra.mxu0 0
        %1618 = vmatpush.bf16.xpose.msra.mxu0 0
        %1619 = vmatpush.bf16.xpose.msra.mxu0 0
        %1620 = vmatpush.bf16.xpose.msra.mxu0 %v1611
        %1621 = vmatmul.bf16.gmra.mxu0 %v1608
        %v1622 = vpop.f32.mrf.mxu0
        %v1623 = vadd.f32 %v1448, %v1622
        %v1624 = vpop.f32.mrf.mxu0
        %v1625 = vadd.f32 %v1449, %v1624
        %1626 = vdwg.mxu0
        %v1627 = vsel %vm1478, %v1623, -inf
        %1628 = vmax.xlane.f32.xlu0 %v1627
        %v1629 = vpop.xlane.xlu0 %1628
        %v1630 = vsel %vm1478, %v1625, -inf
        %1631 = vmax.xlane.f32.xlu0 %v1630
        %v1632 = vpop.xlane.xlu0 %1631
        %v1633 = vsub.f32 %v1623, %v1629
        %v1634 = vsub.f32 %v1625, %v1632
        %v1635 = vmul.f32 %v1633, 1.442695
        %v1636 = vpow.pop %v1635
        %v1637 = vmul.f32 %v1634, 1.442695
        %v1638 = vpow.pop %v1637
        %v1639 = vsel %vm1478, %v1636, 0.0
        %1640 = vadd.xlane.f32.xlu0 %v1639
        %v1641 = vpop.xlane.xlu0 %1640
        %v1642 = vsel %vm1478, %v1638, 0.0
        %1643 = vadd.xlane.f32.xlu0 %v1642
        %v1644 = vpop.xlane.xlu0 %1643
        %v1645 = vrcp.pop %v1641
        %v1646 = vrcp.pop %v1644
        %v1647 = vmul.f32 %v1636, %v1645
        %v1648 = vmul.f32 %v1638, %v1646
        %v1649 = vpack.c.bf16 %v1648, %v1647
        %1650 = vrot.lane.b32.xlu0 %v1453, 48
        %v1651 = vpop.permute.xlu0 %1650
        %v1654 = vsel %vm1478, %v1649, 0
        %1656 = vmatpush.bf16.msra.mxu0 0
        %1657 = vmatpush.bf16.msra.mxu0 0
        %1658 = vmatpush.bf16.msra.mxu0 0
        %1659 = vmatpush.bf16.msra.mxu0 0
        %1660 = vmatpush.bf16.msra.mxu0 0
        %1661 = vmatpush.bf16.msra.mxu0 0
        %1662 = vmatpush.bf16.msra.mxu0 0
        %1663 = vmatpush.bf16.msra.mxu0 %v1651
        %1664 = vmatmul.bf16.gmra.mxu0 %v1654
        %v1665 = vpop.f32.mrf.mxu0
        %v1666 = vadd.f32 0.0, %v1665
        %v1667 = vpop.f32.mrf.mxu0
        %v1668 = vadd.f32 0.0, %v1667
        %1669 = vdwg.mxu0
        %1672 = vrot.lane.b32.xlu0 %v1666, 16
        %v1673 = vpop.permute.xlu0 %1672
        %1674 = vrot.lane.b32.xlu0 %v1668, 16
        %v1675 = vpop.permute.xlu0 %1674
        %vm1678 = vcmask 195712
        %1679 = vst.msk [vmem:[#allocation3] sm:$0xff] %vm1678, %v1673
        %1680 = vst.msk [vmem:[#allocation3 + $0x8] sm:$0xff] %vm1678, %v1675
        %1681 = vrot.lane.b32.xlu0 %v1452, 104
        %v1682 = vpop.permute.xlu0 %1681
        %1683 = vrot.lane.b32.xlu0 %v1453, 72
        %v1684 = vpop.permute.xlu0 %1683
        %v1686 = vsel %vm1457, %v1682, 0
        %v1689 = vsel %vm1457, %v1684, 0
        %1691 = vmatpush.bf16.xpose.msra.mxu0 0
        %1692 = vmatpush.bf16.xpose.msra.mxu0 0
        %1693 = vmatpush.bf16.xpose.msra.mxu0 0
        %1694 = vmatpush.bf16.xpose.msra.mxu0 0
        %1695 = vmatpush.bf16.xpose.msra.mxu0 0
        %1696 = vmatpush.bf16.xpose.msra.mxu0 0
        %1697 = vmatpush.bf16.xpose.msra.mxu0 0
        %1698 = vmatpush.bf16.xpose.msra.mxu0 %v1689
        %1699 = vmatmul.bf16.gmra.mxu0 %v1686
        %v1700 = vpop.f32.mrf.mxu0
        %v1701 = vadd.f32 %v1448, %v1700
        %v1702 = vpop.f32.mrf.mxu0
        %v1703 = vadd.f32 %v1449, %v1702
        %1704 = vdwg.mxu0
        %v1705 = vsel %vm1478, %v1701, -inf
        %1706 = vmax.xlane.f32.xlu0 %v1705
        %v1707 = vpop.xlane.xlu0 %1706
        %v1708 = vsel %vm1478, %v1703, -inf
        %1709 = vmax.xlane.f32.xlu0 %v1708
        %v1710 = vpop.xlane.xlu0 %1709
        %v1711 = vsub.f32 %v1701, %v1707
        %v1712 = vsub.f32 %v1703, %v1710
        %v1713 = vmul.f32 %v1711, 1.442695
        %v1714 = vpow.pop %v1713
        %v1715 = vmul.f32 %v1712, 1.442695
        %v1716 = vpow.pop %v1715
        %v1717 = vsel %vm1478, %v1714, 0.0
        %1718 = vadd.xlane.f32.xlu0 %v1717
        %v1719 = vpop.xlane.xlu0 %1718
        %v1720 = vsel %vm1478, %v1716, 0.0
        %1721 = vadd.xlane.f32.xlu0 %v1720
        %v1722 = vpop.xlane.xlu0 %1721
        %v1723 = vrcp.pop %v1719
        %v1724 = vrcp.pop %v1722
        %v1725 = vmul.f32 %v1714, %v1723
        %v1726 = vmul.f32 %v1716, %v1724
        %v1727 = vpack.c.bf16 %v1726, %v1725
        %1728 = vrot.lane.b32.xlu0 %v1453, 40
        %v1729 = vpop.permute.xlu0 %1728
        %v1732 = vsel %vm1478, %v1727, 0
        %1734 = vmatpush.bf16.msra.mxu0 0
        %1735 = vmatpush.bf16.msra.mxu0 0
        %1736 = vmatpush.bf16.msra.mxu0 0
        %1737 = vmatpush.bf16.msra.mxu0 0
        %1738 = vmatpush.bf16.msra.mxu0 0
        %1739 = vmatpush.bf16.msra.mxu0 0
        %1740 = vmatpush.bf16.msra.mxu0 0
        %1741 = vmatpush.bf16.msra.mxu0 %v1729
        %1742 = vmatmul.bf16.gmra.mxu0 %v1732
        %v1743 = vpop.f32.mrf.mxu0
        %v1744 = vadd.f32 0.0, %v1743
        %v1745 = vpop.f32.mrf.mxu0
        %v1746 = vadd.f32 0.0, %v1745
        %1747 = vdwg.mxu0
        %1750 = vrot.lane.b32.xlu0 %v1744, 24
        %v1751 = vpop.permute.xlu0 %1750
        %1752 = vrot.lane.b32.xlu0 %v1746, 24
        %v1753 = vpop.permute.xlu0 %1752
        %vm1756 = vcmask 261312
        %1757 = vst.msk [vmem:[#allocation3] sm:$0xff] %vm1756, %v1751
        %1758 = vst.msk [vmem:[#allocation3 + $0x8] sm:$0xff] %vm1756, %v1753
        %v1759 = vmul.f32 %v1444, 0.35355338
        %v1760 = vmul.f32 %v1446, 0.35355338
        %v1761 = vpack.c.bf16 %v1760, %v1759
        %v1762 = vpack.c.bf16 %v1446, %v1444
        %1764 = vrot.lane.b32.xlu0 %v1762, 96
        %v1765 = vpop.permute.xlu0 %1764
        %v1767 = vsel %vm1457, %v1761, 0
        %v1770 = vsel %vm1457, %v1765, 0
        %1772 = vmatpush.bf16.xpose.msra.mxu0 0
        %1773 = vmatpush.bf16.xpose.msra.mxu0 0
        %1774 = vmatpush.bf16.xpose.msra.mxu0 0
        %1775 = vmatpush.bf16.xpose.msra.mxu0 0
        %1776 = vmatpush.bf16.xpose.msra.mxu0 0
        %1777 = vmatpush.bf16.xpose.msra.mxu0 0
        %1778 = vmatpush.bf16.xpose.msra.mxu0 0
        %1779 = vmatpush.bf16.xpose.msra.mxu0 %v1770
        %1780 = vmatmul.bf16.gmra.mxu0 %v1767
        %v1781 = vpop.f32.mrf.mxu0
        %v1782 = vadd.f32 %v1448, %v1781
        %v1783 = vpop.f32.mrf.mxu0
        %v1784 = vadd.f32 %v1449, %v1783
        %1785 = vdwg.mxu0
        %v1786 = vsel %vm1478, %v1782, -inf
        %1787 = vmax.xlane.f32.xlu0 %v1786
        %v1788 = vpop.xlane.xlu0 %1787
        %v1789 = vsel %vm1478, %v1784, -inf
        %1790 = vmax.xlane.f32.xlu0 %v1789
        %v1791 = vpop.xlane.xlu0 %1790
        %v1792 = vsub.f32 %v1782, %v1788
        %v1793 = vsub.f32 %v1784, %v1791
        %v1794 = vmul.f32 %v1792, 1.442695
        %v1795 = vpow.pop %v1794
        %v1796 = vmul.f32 %v1793, 1.442695
        %v1797 = vpow.pop %v1796
        %v1798 = vsel %vm1478, %v1795, 0.0
        %1799 = vadd.xlane.f32.xlu0 %v1798
        %v1800 = vpop.xlane.xlu0 %1799
        %v1801 = vsel %vm1478, %v1797, 0.0
        %1802 = vadd.xlane.f32.xlu0 %v1801
        %v1803 = vpop.xlane.xlu0 %1802
        %v1804 = vrcp.pop %v1800
        %v1805 = vrcp.pop %v1803
        %v1806 = vmul.f32 %v1795, %v1804
        %v1807 = vmul.f32 %v1797, %v1805
        %v1808 = vpack.c.bf16 %v1807, %v1806
        %1809 = vrot.lane.b32.xlu0 %v1762, 64
        %v1810 = vpop.permute.xlu0 %1809
        %v1813 = vsel %vm1478, %v1808, 0
        %1815 = vmatpush.bf16.msra.mxu0 0
        %1816 = vmatpush.bf16.msra.mxu0 0
        %1817 = vmatpush.bf16.msra.mxu0 0
        %1818 = vmatpush.bf16.msra.mxu0 0
        %1819 = vmatpush.bf16.msra.mxu0 0
        %1820 = vmatpush.bf16.msra.mxu0 0
        %1821 = vmatpush.bf16.msra.mxu0 0
        %1822 = vmatpush.bf16.msra.mxu0 %v1810
        %1823 = vmatmul.bf16.gmra.mxu0 %v1813
        %v1824 = vpop.f32.mrf.mxu0
        %v1825 = vadd.f32 0.0, %v1824
        %v1826 = vpop.f32.mrf.mxu0
        %v1827 = vadd.f32 0.0, %v1826
        %1828 = vdwg.mxu0
        %1829 = vst.msk [vmem:[#allocation3 + $0x10] sm:$0xff] %vm1457, %v1825
        %1830 = vst.msk [vmem:[#allocation3 + $0x18] sm:$0xff] %vm1457, %v1827
        %1832 = vrot.lane.b32.xlu0 %v1761, 120
        %v1833 = vpop.permute.xlu0 %1832
        %1834 = vrot.lane.b32.xlu0 %v1762, 88
        %v1835 = vpop.permute.xlu0 %1834
        %v1837 = vsel %vm1457, %v1833, 0
        %v1840 = vsel %vm1457, %v1835, 0
        %1842 = vmatpush.bf16.xpose.msra.mxu0 0
        %1843 = vmatpush.bf16.xpose.msra.mxu0 0
        %1844 = vmatpush.bf16.xpose.msra.mxu0 0
        %1845 = vmatpush.bf16.xpose.msra.mxu0 0
        %1846 = vmatpush.bf16.xpose.msra.mxu0 0
        %1847 = vmatpush.bf16.xpose.msra.mxu0 0
        %1848 = vmatpush.bf16.xpose.msra.mxu0 0
        %1849 = vmatpush.bf16.xpose.msra.mxu0 %v1840
        %1850 = vmatmul.bf16.gmra.mxu0 %v1837
        %v1851 = vpop.f32.mrf.mxu0
        %v1852 = vadd.f32 %v1448, %v1851
        %v1853 = vpop.f32.mrf.mxu0
        %v1854 = vadd.f32 %v1449, %v1853
        %1855 = vdwg.mxu0
        %v1856 = vsel %vm1478, %v1852, -inf
        %1857 = vmax.xlane.f32.xlu0 %v1856
        %v1858 = vpop.xlane.xlu0 %1857
        %v1859 = vsel %vm1478, %v1854, -inf
        %1860 = vmax.xlane.f32.xlu0 %v1859
        %v1861 = vpop.xlane.xlu0 %1860
        %v1862 = vsub.f32 %v1852, %v1858
        %v1863 = vsub.f32 %v1854, %v1861
        %v1864 = vmul.f32 %v1862, 1.442695
        %v1865 = vpow.pop %v1864
        %v1866 = vmul.f32 %v1863, 1.442695
        %v1867 = vpow.pop %v1866
        %v1868 = vsel %vm1478, %v1865, 0.0
        %1869 = vadd.xlane.f32.xlu0 %v1868
        %v1870 = vpop.xlane.xlu0 %1869
        %v1871 = vsel %vm1478, %v1867, 0.0
        %1872 = vadd.xlane.f32.xlu0 %v1871
        %v1873 = vpop.xlane.xlu0 %1872
        %v1874 = vrcp.pop %v1870
        %v1875 = vrcp.pop %v1873
        %v1876 = vmul.f32 %v1865, %v1874
        %v1877 = vmul.f32 %v1867, %v1875
        %v1878 = vpack.c.bf16 %v1877, %v1876
        %1879 = vrot.lane.b32.xlu0 %v1762, 56
        %v1880 = vpop.permute.xlu0 %1879
        %v1883 = vsel %vm1478, %v1878, 0
        %1885 = vmatpush.bf16.msra.mxu0 0
        %1886 = vmatpush.bf16.msra.mxu0 0
        %1887 = vmatpush.bf16.msra.mxu0 0
        %1888 = vmatpush.bf16.msra.mxu0 0
        %1889 = vmatpush.bf16.msra.mxu0 0
        %1890 = vmatpush.bf16.msra.mxu0 0
        %1891 = vmatpush.bf16.msra.mxu0 0
        %1892 = vmatpush.bf16.msra.mxu0 %v1880
        %1893 = vmatmul.bf16.gmra.mxu0 %v1883
        %v1894 = vpop.f32.mrf.mxu0
        %v1895 = vadd.f32 0.0, %v1894
        %v1896 = vpop.f32.mrf.mxu0
        %v1897 = vadd.f32 0.0, %v1896
        %1898 = vdwg.mxu0
        %1901 = vrot.lane.b32.xlu0 %v1895, 8
        %v1902 = vpop.permute.xlu0 %1901
        %1903 = vrot.lane.b32.xlu0 %v1897, 8
        %v1904 = vpop.permute.xlu0 %1903
        %1907 = vst.msk [vmem:[#allocation3 + $0x10] sm:$0xff] %vm1600, %v1902
        %1908 = vst.msk [vmem:[#allocation3 + $0x18] sm:$0xff] %vm1600, %v1904
        %1909 = vrot.lane.b32.xlu0 %v1761, 112
        %v1910 = vpop.permute.xlu0 %1909
        %1911 = vrot.lane.b32.xlu0 %v1762, 80
        %v1912 = vpop.permute.xlu0 %1911
        %v1914 = vsel %vm1457, %v1910, 0
        %v1917 = vsel %vm1457, %v1912, 0
        %1919 = vmatpush.bf16.xpose.msra.mxu0 0
        %1920 = vmatpush.bf16.xpose.msra.mxu0 0
        %1921 = vmatpush.bf16.xpose.msra.mxu0 0
        %1922 = vmatpush.bf16.xpose.msra.mxu0 0
        %1923 = vmatpush.bf16.xpose.msra.mxu0 0
        %1924 = vmatpush.bf16.xpose.msra.mxu0 0
        %1925 = vmatpush.bf16.xpose.msra.mxu0 0
        %1926 = vmatpush.bf16.xpose.msra.mxu0 %v1917
        %1927 = vmatmul.bf16.gmra.mxu0 %v1914
        %v1928 = vpop.f32.mrf.mxu0
        %v1929 = vadd.f32 %v1448, %v1928
        %v1930 = vpop.f32.mrf.mxu0
        %v1931 = vadd.f32 %v1449, %v1930
        %1932 = vdwg.mxu0
        %v1933 = vsel %vm1478, %v1929, -inf
        %1934 = vmax.xlane.f32.xlu0 %v1933
        %v1935 = vpop.xlane.xlu0 %1934
        %v1936 = vsel %vm1478, %v1931, -inf
        %1937 = vmax.xlane.f32.xlu0 %v1936
        %v1938 = vpop.xlane.xlu0 %1937
        %v1939 = vsub.f32 %v1929, %v1935
        %v1940 = vsub.f32 %v1931, %v1938
        %v1941 = vmul.f32 %v1939, 1.442695
        %v1942 = vpow.pop %v1941
        %v1943 = vmul.f32 %v1940, 1.442695
        %v1944 = vpow.pop %v1943
        %v1945 = vsel %vm1478, %v1942, 0.0
        %1946 = vadd.xlane.f32.xlu0 %v1945
        %v1947 = vpop.xlane.xlu0 %1946
        %v1948 = vsel %vm1478, %v1944, 0.0
        %1949 = vadd.xlane.f32.xlu0 %v1948
        %v1950 = vpop.xlane.xlu0 %1949
        %v1951 = vrcp.pop %v1947
        %v1952 = vrcp.pop %v1950
        %v1953 = vmul.f32 %v1942, %v1951
        %v1954 = vmul.f32 %v1944, %v1952
        %v1955 = vpack.c.bf16 %v1954, %v1953
        %1956 = vrot.lane.b32.xlu0 %v1762, 48
        %v1957 = vpop.permute.xlu0 %1956
        %v1960 = vsel %vm1478, %v1955, 0
        %1962 = vmatpush.bf16.msra.mxu0 0
        %1963 = vmatpush.bf16.msra.mxu0 0
        %1964 = vmatpush.bf16.msra.mxu0 0
        %1965 = vmatpush.bf16.msra.mxu0 0
        %1966 = vmatpush.bf16.msra.mxu0 0
        %1967 = vmatpush.bf16.msra.mxu0 0
        %1968 = vmatpush.bf16.msra.mxu0 0
        %1969 = vmatpush.bf16.msra.mxu0 %v1957
        %1970 = vmatmul.bf16.gmra.mxu0 %v1960
        %v1971 = vpop.f32.mrf.mxu0
        %v1972 = vadd.f32 0.0, %v1971
        %v1973 = vpop.f32.mrf.mxu0
        %v1974 = vadd.f32 0.0, %v1973
        %1975 = vdwg.mxu0
        %1978 = vrot.lane.b32.xlu0 %v1972, 16
        %v1979 = vpop.permute.xlu0 %1978
        %1980 = vrot.lane.b32.xlu0 %v1974, 16
        %v1981 = vpop.permute.xlu0 %1980
        %1984 = vst.msk [vmem:[#allocation3 + $0x10] sm:$0xff] %vm1678, %v1979
        %1985 = vst.msk [vmem:[#allocation3 + $0x18] sm:$0xff] %vm1678, %v1981
        %1986 = vrot.lane.b32.xlu0 %v1761, 104
        %v1987 = vpop.permute.xlu0 %1986
        %1988 = vrot.lane.b32.xlu0 %v1762, 72
        %v1989 = vpop.permute.xlu0 %1988
        %v1991 = vsel %vm1457, %v1987, 0
        %v1994 = vsel %vm1457, %v1989, 0
        %1996 = vmatpush.bf16.xpose.msra.mxu0 0
        %1997 = vmatpush.bf16.xpose.msra.mxu0 0
        %1998 = vmatpush.bf16.xpose.msra.mxu0 0
        %1999 = vmatpush.bf16.xpose.msra.mxu0 0
        %2000 = vmatpush.bf16.xpose.msra.mxu0 0
        %2001 = vmatpush.bf16.xpose.msra.mxu0 0
        %2002 = vmatpush.bf16.xpose.msra.mxu0 0
        %2003 = vmatpush.bf16.xpose.msra.mxu0 %v1994
        %2004 = vmatmul.bf16.gmra.mxu0 %v1991
        %v2005 = vpop.f32.mrf.mxu0
        %v2006 = vadd.f32 %v1448, %v2005
        %v2007 = vpop.f32.mrf.mxu0
        %v2008 = vadd.f32 %v1449, %v2007
        %2009 = vdwg.mxu0
        %v2010 = vsel %vm1478, %v2006, -inf
        %2011 = vmax.xlane.f32.xlu0 %v2010
        %v2012 = vpop.xlane.xlu0 %2011
        %v2013 = vsel %vm1478, %v2008, -inf
        %2014 = vmax.xlane.f32.xlu0 %v2013
        %v2015 = vpop.xlane.xlu0 %2014
        %v2016 = vsub.f32 %v2006, %v2012
        %v2017 = vsub.f32 %v2008, %v2015
        %v2018 = vmul.f32 %v2016, 1.442695
        %v2019 = vpow.pop %v2018
        %v2020 = vmul.f32 %v2017, 1.442695
        %v2021 = vpow.pop %v2020
        %v2022 = vsel %vm1478, %v2019, 0.0
        %2023 = vadd.xlane.f32.xlu0 %v2022
        %v2024 = vpop.xlane.xlu0 %2023
        %v2025 = vsel %vm1478, %v2021, 0.0
        %2026 = vadd.xlane.f32.xlu0 %v2025
        %v2027 = vpop.xlane.xlu0 %2026
        %v2028 = vrcp.pop %v2024
        %v2029 = vrcp.pop %v2027
        %v2030 = vmul.f32 %v2019, %v2028
        %v2031 = vmul.f32 %v2021, %v2029
        %v2032 = vpack.c.bf16 %v2031, %v2030
        %2033 = vrot.lane.b32.xlu0 %v1762, 40
        %v2034 = vpop.permute.xlu0 %2033
        %v2037 = vsel %vm1478, %v2032, 0
        %2039 = vmatpush.bf16.msra.mxu0 0
        %2040 = vmatpush.bf16.msra.mxu0 0
        %2041 = vmatpush.bf16.msra.mxu0 0
        %2042 = vmatpush.bf16.msra.mxu0 0
        %2043 = vmatpush.bf16.msra.mxu0 0
        %2044 = vmatpush.bf16.msra.mxu0 0
        %2045 = vmatpush.bf16.msra.mxu0 0
        %2046 = vmatpush.bf16.msra.mxu0 %v2034
        %2047 = vmatmul.bf16.gmra.mxu0 %v2037
        %v2048 = vpop.f32.mrf.mxu0
        %v2049 = vadd.f32 0.0, %v2048
        %v2050 = vpop.f32.mrf.mxu0
        %v2051 = vadd.f32 0.0, %v2050
        %2052 = vdwg.mxu0
        %2055 = vrot.lane.b32.xlu0 %v2049, 24
        %v2056 = vpop.permute.xlu0 %2055
        %2057 = vrot.lane.b32.xlu0 %v2051, 24
        %v2058 = vpop.permute.xlu0 %2057
        %2061 = vst.msk [vmem:[#allocation3 + $0x10] sm:$0xff] %vm1756, %v2056
        %2062 = vst.msk [vmem:[#allocation3 + $0x18] sm:$0xff] %vm1756, %v2058
        %v2063 = vld [vmem:[#allocation3] sm:$0xff]
        %v2064 = vld [vmem:[#allocation3 + $0x8] sm:$0xff]
        %v2065 = vld [vmem:[#allocation3 + $0x10] sm:$0xff]
        %v2066 = vld [vmem:[#allocation3 + $0x18] sm:$0xff]
        %v2067 = vpack.c.bf16 %v2064, %v2063
        %v2068 = vpack.c.bf16 %v2066, %v2065
        %v2069 = vld [vmem:[%s1097] sm:$0xff]
        %v2070 = vld [vmem:[%s1097 + $0x8] sm:$0xff]
        %v2071 = vld [vmem:[%s1097 + $0x10] sm:$0xff]
        %v2072 = vld [vmem:[%s1097 + $0x18] sm:$0xff]
        %v2073 = vld [vmem:[%s911] sm:$0x1]
        %v2075 = vperm.slane %v2073, 0
        %v2078 = vsel %vm1291, %v2067, 0
        %v2081 = vsel %vm1291, %v2068, 0
        %2083 = vmatpush.msra.mxu0 0.0
        %2084 = vmatpush.msra.mxu0 0.0
        %2085 = vmatpush.msra.mxu0 0.0
        %2086 = vmatpush.msra.mxu0 0.0
        %2087 = vmatpush.msra.mxu0 0.0
        %2088 = vmatpush.msra.mxu0 0.0
        %2089 = vmatpush.msra.mxu0 0.0
        %2090 = vmatpush.msra.mxu0 0.0
        %2091 = vmatpush.msra.mxu0 0.0
        %2092 = vmatpush.msra.mxu0 0.0
        %2093 = vmatpush.msra.mxu0 0.0
        %2094 = vmatpush.msra.mxu0 0.0
        %2095 = vmatpush.msra.mxu0 %v2072
        %2096 = vmatpush.msra.mxu0 %v2071
        %2097 = vmatpush.msra.mxu0 %v2070
        %2098 = vmatpush.msra.mxu0 %v2069
        %2099 = vmatmul.bf16.gmra.mxu0 %v2078
        %v2100 = vpop.f32.mrf.mxu0
        %v2101 = vadd.f32 %v2075, %v2100
        %v2102 = vpop.f32.mrf.mxu0
        %v2103 = vadd.f32 %v2075, %v2102
        %2104 = vmatmul.bf16.gmra.mxu0 %v2081
        %v2105 = vpop.f32.mrf.mxu0
        %v2106 = vadd.f32 %v2075, %v2105
        %v2107 = vpop.f32.mrf.mxu0
        %v2108 = vadd.f32 %v2075, %v2107
        %2109 = vdwg.mxu0
        %v2110 = vadd.f32 %v1285, %v2101
        %v2111 = vadd.f32 %v1286, %v2103
        %v2112 = vadd.f32 %v1287, %v2106
        %v2113 = vadd.f32 %v1288, %v2108
        %v2114 = vld [vmem:[%s920] sm:$0x1]
        %v2115 = vld [vmem:[%s929] sm:$0x1]
        %v2116 = vsel %vm1291, %v2110, 0.0
        %2117 = vadd.xlane.f32.xlu0 %v2116
        %v2118 = vpop.xlane.xlu0 %2117
        %v2119 = vsel %vm1291, %v2111, 0.0
        %2120 = vadd.xlane.f32.xlu0 %v2119
        %v2121 = vpop.xlane.xlu0 %2120
        %v2122 = vsel %vm1291, %v2112, 0.0
        %2123 = vadd.xlane.f32.xlu0 %v2122
        %v2124 = vpop.xlane.xlu0 %2123
        %v2125 = vsel %vm1291, %v2113, 0.0
        %2126 = vadd.xlane.f32.xlu0 %v2125
        %v2127 = vpop.xlane.xlu0 %2126
        %v2128 = vmul.f32 %v2118, %v1310
        %v2129 = vmul.f32 %v2121, %v1310
        %v2130 = vmul.f32 %v2124, %v1310
        %v2131 = vmul.f32 %v2127, %v1310
        %v2132 = vsub.f32 %v2110, %v2128
        %v2133 = vsub.f32 %v2111, %v2129
        %v2134 = vsub.f32 %v2112, %v2130
        %v2135 = vsub.f32 %v2113, %v2131
        %v2136 = vmul.f32 %v2132, %v2132
        %v2137 = vmul.f32 %v2133, %v2133
        %v2138 = vmul.f32 %v2134, %v2134
        %v2139 = vmul.f32 %v2135, %v2135
        %v2140 = vsel %vm1291, %v2136, 0.0
        %2141 = vadd.xlane.f32.xlu0 %v2140
        %v2142 = vpop.xlane.xlu0 %2141
        %v2143 = vsel %vm1291, %v2137, 0.0
        %2144 = vadd.xlane.f32.xlu0 %v2143
        %v2145 = vpop.xlane.xlu0 %2144
        %v2146 = vsel %vm1291, %v2138, 0.0
        %2147 = vadd.xlane.f32.xlu0 %v2146
        %v2148 = vpop.xlane.xlu0 %2147
        %v2149 = vsel %vm1291, %v2139, 0.0
        %2150 = vadd.xlane.f32.xlu0 %v2149
        %v2151 = vpop.xlane.xlu0 %2150
        %v2152 = vmul.f32 %v2142, %v1310
        %v2153 = vmul.f32 %v2145, %v1310
        %v2154 = vmul.f32 %v2148, %v1310
        %v2155 = vmul.f32 %v2151, %v1310
        %v2156 = vadd.f32 %v2152, 1e-05
        %v2157 = vadd.f32 %v2153, 1e-05
        %v2158 = vadd.f32 %v2154, 1e-05
        %v2159 = vadd.f32 %v2155, 1e-05
        %v2160 = vrsqrt.pop %v2156
        %v2161 = vmul.f32 %v2160, %v2156
        %v2162 = vmul.f32 %v2161, %v2160
        %v2163 = vmul.f32 0.5, %v2162
        %v2164 = vsub.f32 1.5, %v2163
        %v2165 = vmul.f32 %v2160, %v2164
        %vm2166 = vweird.f32 %v2156
        %vm2167 = vweird.f32 %v2160
        %vm2168 = vmor %vm2166, %vm2167
        %v2169 = vsel %vm2168, %v2160, %v2165
        %v2170 = vrsqrt.pop %v2157
        %v2171 = vmul.f32 %v2170, %v2157
        %v2172 = vmul.f32 %v2171, %v2170
        %v2173 = vmul.f32 0.5, %v2172
        %v2174 = vsub.f32 1.5, %v2173
        %v2175 = vmul.f32 %v2170, %v2174
        %vm2176 = vweird.f32 %v2157
        %vm2177 = vweird.f32 %v2170
        %vm2178 = vmor %vm2176, %vm2177
        %v2179 = vsel %vm2178, %v2170, %v2175
        %v2180 = vrsqrt.pop %v2158
        %v2181 = vmul.f32 %v2180, %v2158
        %v2182 = vmul.f32 %v2181, %v2180
        %v2183 = vmul.f32 0.5, %v2182
        %v2184 = vsub.f32 1.5, %v2183
        %v2185 = vmul.f32 %v2180, %v2184
        %vm2186 = vweird.f32 %v2158
        %vm2187 = vweird.f32 %v2180
        %vm2188 = vmor %vm2186, %vm2187
        %v2189 = vsel %vm2188, %v2180, %v2185
        %v2190 = vrsqrt.pop %v2159
        %v2191 = vmul.f32 %v2190, %v2159
        %v2192 = vmul.f32 %v2191, %v2190
        %v2193 = vmul.f32 0.5, %v2192
        %v2194 = vsub.f32 1.5, %v2193
        %v2195 = vmul.f32 %v2190, %v2194
        %vm2196 = vweird.f32 %v2159
        %vm2197 = vweird.f32 %v2190
        %vm2198 = vmor %vm2196, %vm2197
        %v2199 = vsel %vm2198, %v2190, %v2195
        %v2200 = vmul.f32 %v2132, %v2169
        %v2201 = vmul.f32 %v2133, %v2179
        %v2202 = vmul.f32 %v2134, %v2189
        %v2203 = vmul.f32 %v2135, %v2199
        %v2205 = vperm.slane %v2114, 0
        %v2207 = vmul.f32 %v2200, %v2205
        %v2208 = vmul.f32 %v2201, %v2205
        %v2209 = vmul.f32 %v2202, %v2205
        %v2210 = vmul.f32 %v2203, %v2205
        %v2212 = vperm.slane %v2115, 0
        %v2214 = vadd.f32 %v2207, %v2212
        %v2215 = vadd.f32 %v2208, %v2212
        %v2216 = vadd.f32 %v2209, %v2212
        %v2217 = vadd.f32 %v2210, %v2212
        %v2218 = vpack.c.bf16 %v2215, %v2214
        %v2219 = vpack.c.bf16 %v2217, %v2216
        %v2220 = vld [vmem:[%s939] sm:$0xf]
        %v2221 = vld [vmem:[%s939 + $0x4] sm:$0xf]
        %v2222 = vld [vmem:[%s939 + $0x8] sm:$0xf]
        %v2223 = vld [vmem:[%s939 + $0xc] sm:$0xf]
        %v2224 = vld [vmem:[%s948] sm:$0x1]
        %v2226 = vperm.slane %v2224, 0
        %v2232 = vunpack.c.l.b16 %v2220
        %v2233 = vunpack.c.l.b16 %v2221
        %v2234 = vunpack.c.l.b16 %v2222
        %v2235 = vunpack.c.l.b16 %v2223
        %v2236 = vpack.c.b16 %v2233, %v2232
        %v2237 = vpack.c.b16 %v2235, %v2234
        %v2241 = vsel %vm1291, %v2218, 0
        %v2244 = vsel %vm1291, %v2219, 0
        %2246 = vmatpush.bf16.msra.mxu0 0
        %2247 = vmatpush.bf16.msra.mxu0 0
        %2248 = vmatpush.bf16.msra.mxu0 0
        %2249 = vmatpush.bf16.msra.mxu0 0
        %2250 = vmatpush.bf16.msra.mxu0 0
        %2251 = vmatpush.bf16.msra.mxu0 0
        %2252 = vmatpush.bf16.msra.mxu0 %v2237
        %2253 = vmatpush.bf16.msra.mxu0 %v2236
        %2254 = vmatmul.bf16.gmra.mxu0 %v2241
        %v2255 = vpop.f32.mrf.mxu0
        %v2256 = vadd.f32 %v2226, %v2255
        %v2257 = vpop.f32.mrf.mxu0
        %v2258 = vadd.f32 %v2226, %v2257
        %2259 = vmatmul.bf16.gmra.mxu0 %v2244
        %v2260 = vpop.f32.mrf.mxu0
        %v2261 = vadd.f32 %v2226, %v2260
        %v2262 = vpop.f32.mrf.mxu0
        %v2263 = vadd.f32 %v2226, %v2262
        %2264 = vdwg.mxu0
        %v2265 = vmul.f32 %v2256, 0.5
        %v2266 = vmul.f32 %v2258, 0.5
        %v2267 = vmul.f32 %v2261, 0.5
        %v2268 = vmul.f32 %v2263, 0.5
        %v2269 = vmul.f32 %v2256, 0.70710677
        %v2270 = vmul.f32 %v2258, 0.70710677
        %v2271 = vmul.f32 %v2261, 0.70710677
        %v2272 = vmul.f32 %v2263, 0.70710677
        %v2273 = vmul.f32 %v2269, %v2269
        %v2274 = vmin.f32 16.0, %v2273
        %v2275 = vmul.f32 %v2274, 2.1237322e-06
        %v2276 = vadd.f32 %v2275, 0.00028619796
        %v2277 = vmul.f32 %v2274, %v2276
        %v2278 = vadd.f32 %v2277, 0.0036580483
        %v2279 = vmul.f32 %v2274, %v2278
        %v2280 = vadd.f32 %v2279, 0.05243302
        %v2281 = vmul.f32 %v2274, %v2280
        %v2282 = vadd.f32 %v2281, 0.18741608
        %v2283 = vmul.f32 %v2274, %v2282
        %v2284 = vadd.f32 %v2283, 1.1283791
        %v2285 = vmul.f32 %v2269, %v2284
        %v2286 = vmul.f32 %v2274, 3.8918573e-05
        %v2287 = vadd.f32 %v2286, 0.001143296
        %v2288 = vmul.f32 %v2274, %v2287
        %v2289 = vadd.f32 %v2288, 0.014752088
        %v2290 = vmul.f32 %v2274, %v2289
        %v2291 = vadd.f32 %v2290, 0.112945676
        %v2292 = vmul.f32 %v2274, %v2291
        %v2293 = vadd.f32 %v2292, 0.4994258
        %v2294 = vmul.f32 %v2274, %v2293
        %v2295 = vadd.f32 %v2294, 1.0
        %v2296 = vrcp.pop %v2295
        %v2297 = vmul.f32 %v2295, %v2296
        %v2298 = vsub.f32 1.0, %v2297
        %v2299 = vmul.f32 %v2296, %v2298
        %v2300 = vadd.f32 %v2296, %v2299
        %vm2301 = vweird.f32 %v2295
        %vm2302 = vweird.f32 %v2296
        %vm2303 = vmor %vm2301, %vm2302
        %v2304 = vsel %vm2303, %v2296, %v2300
        %v2305 = vand.u32 2147483647, %v2295
        %vm2306 = vcmp.eq.f32.partialorder %v2305, 8.507059e+37
        %v2307 = vand.u32 %v2295, 2147483648
        %v2308 = vor.u32 1.1754944e-38, %v2307
        %v2309 = vsel %vm2306, %v2308, %v2304
        %v2310 = vmul.f32 %v2285, %v2309
        %v2311 = vmin.f32 %v2310, 1.0
        %v2312 = vmax.f32 %v2311, -1.0
        %v2313 = vmul.f32 %v2270, %v2270
        %v2314 = vmin.f32 16.0, %v2313
        %v2315 = vmul.f32 %v2314, 2.1237322e-06
        %v2316 = vadd.f32 %v2315, 0.00028619796
        %v2317 = vmul.f32 %v2314, %v2316
        %v2318 = vadd.f32 %v2317, 0.0036580483
        %v2319 = vmul.f32 %v2314, %v2318
        %v2320 = vadd.f32 %v2319, 0.05243302
        %v2321 = vmul.f32 %v2314, %v2320
        %v2322 = vadd.f32 %v2321, 0.18741608
        %v2323 = vmul.f32 %v2314, %v2322
        %v2324 = vadd.f32 %v2323, 1.1283791
        %v2325 = vmul.f32 %v2270, %v2324
        %v2326 = vmul.f32 %v2314, 3.8918573e-05
        %v2327 = vadd.f32 %v2326, 0.001143296
        %v2328 = vmul.f32 %v2314, %v2327
        %v2329 = vadd.f32 %v2328, 0.014752088
        %v2330 = vmul.f32 %v2314, %v2329
        %v2331 = vadd.f32 %v2330, 0.112945676
        %v2332 = vmul.f32 %v2314, %v2331
        %v2333 = vadd.f32 %v2332, 0.4994258
        %v2334 = vmul.f32 %v2314, %v2333
        %v2335 = vadd.f32 %v2334, 1.0
        %v2336 = vrcp.pop %v2335
        %v2337 = vmul.f32 %v2335, %v2336
        %v2338 = vsub.f32 1.0, %v2337
        %v2339 = vmul.f32 %v2336, %v2338
        %v2340 = vadd.f32 %v2336, %v2339
        %vm2341 = vweird.f32 %v2335
        %vm2342 = vweird.f32 %v2336
        %vm2343 = vmor %vm2341, %vm2342
        %v2344 = vsel %vm2343, %v2336, %v2340
        %v2345 = vand.u32 2147483647, %v2335
        %vm2346 = vcmp.eq.f32.partialorder %v2345, 8.507059e+37
        %v2347 = vand.u32 %v2335, 2147483648
        %v2348 = vor.u32 1.1754944e-38, %v2347
        %v2349 = vsel %vm2346, %v2348, %v2344
        %v2350 = vmul.f32 %v2325, %v2349
        %v2351 = vmin.f32 %v2350, 1.0
        %v2352 = vmax.f32 %v2351, -1.0
        %v2353 = vmul.f32 %v2271, %v2271
        %v2354 = vmin.f32 16.0, %v2353
        %v2355 = vmul.f32 %v2354, 2.1237322e-06
        %v2356 = vadd.f32 %v2355, 0.00028619796
        %v2357 = vmul.f32 %v2354, %v2356
        %v2358 = vadd.f32 %v2357, 0.0036580483
        %v2359 = vmul.f32 %v2354, %v2358
        %v2360 = vadd.f32 %v2359, 0.05243302
        %v2361 = vmul.f32 %v2354, %v2360
        %v2362 = vadd.f32 %v2361, 0.18741608
        %v2363 = vmul.f32 %v2354, %v2362
        %v2364 = vadd.f32 %v2363, 1.1283791
        %v2365 = vmul.f32 %v2271, %v2364
        %v2366 = vmul.f32 %v2354, 3.8918573e-05
        %v2367 = vadd.f32 %v2366, 0.001143296
        %v2368 = vmul.f32 %v2354, %v2367
        %v2369 = vadd.f32 %v2368, 0.014752088
        %v2370 = vmul.f32 %v2354, %v2369
        %v2371 = vadd.f32 %v2370, 0.112945676
        %v2372 = vmul.f32 %v2354, %v2371
        %v2373 = vadd.f32 %v2372, 0.4994258
        %v2374 = vmul.f32 %v2354, %v2373
        %v2375 = vadd.f32 %v2374, 1.0
        %v2376 = vrcp.pop %v2375
        %v2377 = vmul.f32 %v2375, %v2376
        %v2378 = vsub.f32 1.0, %v2377
        %v2379 = vmul.f32 %v2376, %v2378
        %v2380 = vadd.f32 %v2376, %v2379
        %vm2381 = vweird.f32 %v2375
        %vm2382 = vweird.f32 %v2376
        %vm2383 = vmor %vm2381, %vm2382
        %v2384 = vsel %vm2383, %v2376, %v2380
        %v2385 = vand.u32 2147483647, %v2375
        %vm2386 = vcmp.eq.f32.partialorder %v2385, 8.507059e+37
        %v2387 = vand.u32 %v2375, 2147483648
        %v2388 = vor.u32 1.1754944e-38, %v2387
        %v2389 = vsel %vm2386, %v2388, %v2384
        %v2390 = vmul.f32 %v2365, %v2389
        %v2391 = vmin.f32 %v2390, 1.0
        %v2392 = vmax.f32 %v2391, -1.0
        %v2393 = vmul.f32 %v2272, %v2272
        %v2394 = vmin.f32 16.0, %v2393
        %v2395 = vmul.f32 %v2394, 2.1237322e-06
        %v2396 = vadd.f32 %v2395, 0.00028619796
        %v2397 = vmul.f32 %v2394, %v2396
        %v2398 = vadd.f32 %v2397, 0.0036580483
        %v2399 = vmul.f32 %v2394, %v2398
        %v2400 = vadd.f32 %v2399, 0.05243302
        %v2401 = vmul.f32 %v2394, %v2400
        %v2402 = vadd.f32 %v2401, 0.18741608
        %v2403 = vmul.f32 %v2394, %v2402
        %v2404 = vadd.f32 %v2403, 1.1283791
        %v2405 = vmul.f32 %v2272, %v2404
        %v2406 = vmul.f32 %v2394, 3.8918573e-05
        %v2407 = vadd.f32 %v2406, 0.001143296
        %v2408 = vmul.f32 %v2394, %v2407
        %v2409 = vadd.f32 %v2408, 0.014752088
        %v2410 = vmul.f32 %v2394, %v2409
        %v2411 = vadd.f32 %v2410, 0.112945676
        %v2412 = vmul.f32 %v2394, %v2411
        %v2413 = vadd.f32 %v2412, 0.4994258
        %v2414 = vmul.f32 %v2394, %v2413
        %v2415 = vadd.f32 %v2414, 1.0
        %v2416 = vrcp.pop %v2415
        %v2417 = vmul.f32 %v2415, %v2416
        %v2418 = vsub.f32 1.0, %v2417
        %v2419 = vmul.f32 %v2416, %v2418
        %v2420 = vadd.f32 %v2416, %v2419
        %vm2421 = vweird.f32 %v2415
        %vm2422 = vweird.f32 %v2416
        %vm2423 = vmor %vm2421, %vm2422
        %v2424 = vsel %vm2423, %v2416, %v2420
        %v2425 = vand.u32 2147483647, %v2415
        %vm2426 = vcmp.eq.f32.partialorder %v2425, 8.507059e+37
        %v2427 = vand.u32 %v2415, 2147483648
        %v2428 = vor.u32 1.1754944e-38, %v2427
        %v2429 = vsel %vm2426, %v2428, %v2424
        %v2430 = vmul.f32 %v2405, %v2429
        %v2431 = vmin.f32 %v2430, 1.0
        %v2432 = vmax.f32 %v2431, -1.0
        %v2433 = vadd.f32 %v2312, 1.0
        %v2434 = vadd.f32 %v2352, 1.0
        %v2435 = vadd.f32 %v2392, 1.0
        %v2436 = vadd.f32 %v2432, 1.0
        %v2437 = vmul.f32 %v2265, %v2433
        %v2438 = vmul.f32 %v2266, %v2434
        %v2439 = vmul.f32 %v2267, %v2435
        %v2440 = vmul.f32 %v2268, %v2436
        %v2441 = vpack.c.bf16 %v2438, %v2437
        %v2442 = vpack.c.bf16 %v2440, %v2439
        %v2443 = vld [vmem:[%s1102] sm:$0xf]
        %v2444 = vld [vmem:[%s1102 + $0x4] sm:$0xf]
        %v2445 = vld [vmem:[%s1102 + $0x8] sm:$0xf]
        %v2446 = vld [vmem:[%s1102 + $0xc] sm:$0xf]
        %v2447 = vld [vmem:[%s1102 + $0x10] sm:$0xf]
        %v2448 = vld [vmem:[%s1102 + $0x14] sm:$0xf]
        %v2449 = vld [vmem:[%s1102 + $0x18] sm:$0xf]
        %v2450 = vld [vmem:[%s1102 + $0x1c] sm:$0xf]
        %v2451 = vld [vmem:[%s1102 + $0x20] sm:$0xf]
        %v2452 = vld [vmem:[%s1102 + $0x24] sm:$0xf]
        %v2453 = vld [vmem:[%s1102 + $0x28] sm:$0xf]
        %v2454 = vld [vmem:[%s1102 + $0x2c] sm:$0xf]
        %v2455 = vld [vmem:[%s1102 + $0x30] sm:$0xf]
        %v2456 = vld [vmem:[%s1102 + $0x34] sm:$0xf]
        %v2457 = vld [vmem:[%s1102 + $0x38] sm:$0xf]
        %v2458 = vld [vmem:[%s1102 + $0x3c] sm:$0xf]
        %v2459 = vld [vmem:[%s957] sm:$0x1]
        %v2461 = vperm.slane %v2459, 0
        %v2479 = vunpack.c.l.b16 %v2443
        %v2480 = vunpack.c.l.b16 %v2444
        %v2481 = vunpack.c.l.b16 %v2445
        %v2482 = vunpack.c.l.b16 %v2446
        %v2483 = vunpack.c.l.b16 %v2447
        %v2484 = vunpack.c.l.b16 %v2448
        %v2485 = vunpack.c.l.b16 %v2449
        %v2486 = vunpack.c.l.b16 %v2450
        %v2487 = vunpack.c.l.b16 %v2451
        %v2488 = vunpack.c.l.b16 %v2452
        %v2489 = vunpack.c.l.b16 %v2453
        %v2490 = vunpack.c.l.b16 %v2454
        %v2491 = vunpack.c.l.b16 %v2455
        %v2492 = vunpack.c.l.b16 %v2456
        %v2493 = vunpack.c.l.b16 %v2457
        %v2494 = vunpack.c.l.b16 %v2458
        %v2495 = vpack.c.b16 %v2480, %v2479
        %v2496 = vpack.c.b16 %v2482, %v2481
        %v2497 = vpack.c.b16 %v2484, %v2483
        %v2498 = vpack.c.b16 %v2486, %v2485
        %v2499 = vpack.c.b16 %v2488, %v2487
        %v2500 = vpack.c.b16 %v2490, %v2489
        %v2501 = vpack.c.b16 %v2492, %v2491
        %v2502 = vpack.c.b16 %v2494, %v2493
        %2511 = vmatpush.bf16.msra.mxu0 %v2502
        %2512 = vmatpush.bf16.msra.mxu0 %v2501
        %2513 = vmatpush.bf16.msra.mxu0 %v2500
        %2514 = vmatpush.bf16.msra.mxu0 %v2499
        %2515 = vmatpush.bf16.msra.mxu0 %v2498
        %2516 = vmatpush.bf16.msra.mxu0 %v2497
        %2517 = vmatpush.bf16.msra.mxu0 %v2496
        %2518 = vmatpush.bf16.msra.mxu0 %v2495
        %2519 = vmatmul.bf16.gmra.mxu0 %v2441
        %v2520 = vpop.f32.mrf.mxu0
        %v2521 = vadd.f32 %v2461, %v2520
        %v2522 = vpop.f32.mrf.mxu0
        %v2523 = vadd.f32 %v2461, %v2522
        %2524 = vmatmul.bf16.gmra.mxu0 %v2442
        %v2525 = vpop.f32.mrf.mxu0
        %v2526 = vadd.f32 %v2461, %v2525
        %v2527 = vpop.f32.mrf.mxu0
        %v2528 = vadd.f32 %v2461, %v2527
        %2529 = vdwg.mxu0
        %v2530 = vadd.f32 %v2110, %v2521
        %v2531 = vadd.f32 %v2111, %v2523
        %v2532 = vadd.f32 %v2112, %v2526
        %v2533 = vadd.f32 %v2113, %v2528
        %2534 = vst.msk [vmem:[#allocation2] sm:$0xff] %vm1291, %v2530
        %2535 = vst.msk [vmem:[#allocation2 + $0x8] sm:$0xff] %vm1291, %v2531
        %2536 = vst.msk [vmem:[#allocation2 + $0x10] sm:$0xff] %vm1291, %v2532
        %2537 = vst.msk [vmem:[#allocation2 + $0x18] sm:$0xff] %vm1291, %v2533
        %p2538 = scmp.eq.s32.totalorder %s43, 1
        // Predicated region
        $region157: #{tpu_custom_call.1} parent=107 // pred_check
          %p2539 = pneg %p2538
        $region158: #{tpu_custom_call.1} parent=107 // pred_check_branch
          %2541 = sbr.rel (%p2539) target = $region160
        $region159: #{tpu_custom_call.1} parent=107 // pred_region
          %v2542 = vld [vmem:[%s20] sm:$0x1]
          %v2543 = vld [vmem:[%s21] sm:$0x1]
          %v2544 = vsel %vm1291, %v2530, 0.0
          %2545 = vadd.xlane.f32.xlu0 %v2544
          %v2546 = vpop.xlane.xlu0 %2545
          %v2547 = vsel %vm1291, %v2531, 0.0
          %2548 = vadd.xlane.f32.xlu0 %v2547
          %v2549 = vpop.xlane.xlu0 %2548
          %v2550 = vsel %vm1291, %v2532, 0.0
          %2551 = vadd.xlane.f32.xlu0 %v2550
          %v2552 = vpop.xlane.xlu0 %2551
          %v2553 = vsel %vm1291, %v2533, 0.0
          %2554 = vadd.xlane.f32.xlu0 %v2553
          %v2555 = vpop.xlane.xlu0 %2554
          %v2556 = vmul.f32 %v2546, %v1310
          %v2557 = vmul.f32 %v2549, %v1310
          %v2558 = vmul.f32 %v2552, %v1310
          %v2559 = vmul.f32 %v2555, %v1310
          %v2560 = vsub.f32 %v2530, %v2556
          %v2561 = vsub.f32 %v2531, %v2557
          %v2562 = vsub.f32 %v2532, %v2558
          %v2563 = vsub.f32 %v2533, %v2559
          %v2564 = vmul.f32 %v2560, %v2560
          %v2565 = vmul.f32 %v2561, %v2561
          %v2566 = vmul.f32 %v2562, %v2562
          %v2567 = vmul.f32 %v2563, %v2563
          %v2568 = vsel %vm1291, %v2564, 0.0
          %2569 = vadd.xlane.f32.xlu0 %v2568
          %v2570 = vpop.xlane.xlu0 %2569
          %v2571 = vsel %vm1291, %v2565, 0.0
          %2572 = vadd.xlane.f32.xlu0 %v2571
          %v2573 = vpop.xlane.xlu0 %2572
          %v2574 = vsel %vm1291, %v2566, 0.0
          %2575 = vadd.xlane.f32.xlu0 %v2574
          %v2576 = vpop.xlane.xlu0 %2575
          %v2577 = vsel %vm1291, %v2567, 0.0
          %2578 = vadd.xlane.f32.xlu0 %v2577
          %v2579 = vpop.xlane.xlu0 %2578
          %v2580 = vmul.f32 %v2570, %v1310
          %v2581 = vmul.f32 %v2573, %v1310
          %v2582 = vmul.f32 %v2576, %v1310
          %v2583 = vmul.f32 %v2579, %v1310
          %v2584 = vadd.f32 %v2580, 1e-05
          %v2585 = vadd.f32 %v2581, 1e-05
          %v2586 = vadd.f32 %v2582, 1e-05
          %v2587 = vadd.f32 %v2583, 1e-05
          %v2588 = vrsqrt.pop %v2584
          %v2589 = vmul.f32 %v2588, %v2584
          %v2590 = vmul.f32 %v2589, %v2588
          %v2591 = vmul.f32 0.5, %v2590
          %v2592 = vsub.f32 1.5, %v2591
          %v2593 = vmul.f32 %v2588, %v2592
          %vm2594 = vweird.f32 %v2584
          %vm2595 = vweird.f32 %v2588
          %vm2596 = vmor %vm2594, %vm2595
          %v2597 = vsel %vm2596, %v2588, %v2593
          %v2598 = vrsqrt.pop %v2585
          %v2599 = vmul.f32 %v2598, %v2585
          %v2600 = vmul.f32 %v2599, %v2598
          %v2601 = vmul.f32 0.5, %v2600
          %v2602 = vsub.f32 1.5, %v2601
          %v2603 = vmul.f32 %v2598, %v2602
          %vm2604 = vweird.f32 %v2585
          %vm2605 = vweird.f32 %v2598
          %vm2606 = vmor %vm2604, %vm2605
          %v2607 = vsel %vm2606, %v2598, %v2603
          %v2608 = vrsqrt.pop %v2586
          %v2609 = vmul.f32 %v2608, %v2586
          %v2610 = vmul.f32 %v2609, %v2608
          %v2611 = vmul.f32 0.5, %v2610
          %v2612 = vsub.f32 1.5, %v2611
          %v2613 = vmul.f32 %v2608, %v2612
          %vm2614 = vweird.f32 %v2586
          %vm2615 = vweird.f32 %v2608
          %vm2616 = vmor %vm2614, %vm2615
          %v2617 = vsel %vm2616, %v2608, %v2613
          %v2618 = vrsqrt.pop %v2587
          %v2619 = vmul.f32 %v2618, %v2587
          %v2620 = vmul.f32 %v2619, %v2618
          %v2621 = vmul.f32 0.5, %v2620
          %v2622 = vsub.f32 1.5, %v2621
          %v2623 = vmul.f32 %v2618, %v2622
          %vm2624 = vweird.f32 %v2587
          %vm2625 = vweird.f32 %v2618
          %vm2626 = vmor %vm2624, %vm2625
          %v2627 = vsel %vm2626, %v2618, %v2623
          %v2628 = vmul.f32 %v2560, %v2597
          %v2629 = vmul.f32 %v2561, %v2607
          %v2630 = vmul.f32 %v2562, %v2617
          %v2631 = vmul.f32 %v2563, %v2627
          %v2633 = vperm.slane %v2542, 0
          %v2635 = vmul.f32 %v2628, %v2633
          %v2636 = vmul.f32 %v2629, %v2633
          %v2637 = vmul.f32 %v2630, %v2633
          %v2638 = vmul.f32 %v2631, %v2633
          %v2640 = vperm.slane %v2543, 0
          %v2642 = vadd.f32 %v2635, %v2640
          %v2643 = vadd.f32 %v2636, %v2640
          %v2644 = vadd.f32 %v2637, %v2640
          %v2645 = vadd.f32 %v2638, %v2640
          %2646 = vst.msk [vmem:[%s1075] sm:$0xff] %vm1291, %v2642
          %2647 = vst.msk [vmem:[%s1075 + $0x8] sm:$0xff] %vm1291, %v2643
          %s2648 = scalar_lea.vmem %s1075, 16 [#allocation18]
          %2649 = vst.msk [vmem:[%s2648] sm:$0xff] %vm1291, %v2644
          %2650 = vst.msk [vmem:[%s2648 + $0x8] sm:$0xff] %vm1291, %v2645
        $region160: #{tpu_custom_call.1} parent=107 // pred_fallthru
          _
        %s2651 = sand.u32 %s590, 1
        %s2652 = scalar_lea.sflag [#allocation6], %s2651
        %s2653 = sand.u32 %s590, 1
        %s2654 = smul.addr %s2653, 32
        %s2655 = scalar_lea.vmem [#allocation18], %s2654
        // Predicated region
        $region161: #{tpu_custom_call.1} parent=107 // pred_check
          %p2656 = pneg %p600
        $region162: #{tpu_custom_call.1} parent=107 // pred_check_branch
          %2658 = sbr.rel (%p2656) target = $region164
        $region163: #{tpu_custom_call.1} parent=107 // pred_region
          %s2659 = smul.u32 2, %s42
          %2661 = vsyncadd %s2652, 0
          %s2662 = smul.addr %s2659, 2
          %s2663 = smul.addr %s2662, 8
          %s2664 = scalar_lea.hbm %s22, %s2663
          %s2665 = sshll.u32 %s2655, 4
          %s2666 = int_to_ptr.vmem [resolvable:$true] %s2665
          %s2667 = sshll.u32 %s2664, 4
          %s2668 = int_to_ptr.hbm [resolvable:$true] %s2667
          %2673 = dma.vmem_to_hbm [thread:$0]  %s2666, 512, %s2668, %s2652, 128, 128, 8
        $region164: #{tpu_custom_call.1} parent=107 // pred_fallthru
          _
      $region108: #{tpu_custom_call.1} parent=5 // pred_fallthru
        _
      %p2674 = scmp.le.s32.totalorder 2, %s33
      // Predicated region
      $region165: #{tpu_custom_call.1} parent=5 // pred_check
        %p2675 = pneg %p2674
      $region166: #{tpu_custom_call.1} parent=5 // pred_check_branch
        %2677 = sbr.rel (%p2675) target = $region168
      $region167: #{tpu_custom_call.1} parent=5 // pred_region
        %s2678 = ssub.s32 %s33, 2
        // Predicated region
        $region169: #{tpu_custom_call.1} parent=167 // pred_check
          %p2679 = pneg %p606
        $region170: #{tpu_custom_call.1} parent=167 // pred_check_branch
          %2681 = sbr.rel (%p2679) target = $region172
        $region171: #{tpu_custom_call.1} parent=167 // pred_region
          %s2682 = sand.u32 %s591, 1
          %s2683 = scalar_lea.sflag [#allocation6], %s2682
          %s2684 = sand.u32 %s591, 1
          %s2685 = smul.addr %s2684, 32
          %s2686 = scalar_lea.vmem [#allocation18], %s2685
          %2688 = dma.done %s2683, 512
        $region172: #{tpu_custom_call.1} parent=167 // pred_fallthru
          _
      $region168: #{tpu_custom_call.1} parent=5 // pred_fallthru
        _
    $region6: #{tpu_custom_call.1} parent=1 // loop_footer
      %s37 = sadd.s32 1, %s33
    $region7: #{tpu_custom_call.1} parent=1 // loop_footer_branch
      %32 = sbr.rel target = $region3
    $region8: #{tpu_custom_call.1} parent=1 // loop_exit
      _
    %2689 = vsyncpa [#allocation5], 1
    %s2690 = scalar_lea.sflag [#allocation5], 1
    %2691 = vsyncpa %s2690, 1
    %2692 = vsyncpa [#allocation8], 1
    %2693 = vsyncpa [#allocation6], 1
    %s2694 = scalar_lea.sflag [#allocation6], 1
    %2695 = vsyncpa %s2694, 1

</llo_original>
